<compile_context>
chip_gen: v5e
topology: v5e:2x2
jax: 0.10.0
libtpu: 0.0.40
codegen_flags: <defaults>
</compile_context>

<pallas_src>
import functools

import jax
import jax.numpy as jnp
from jax.experimental import pallas as pl
from jax.experimental.pallas import tpu as pltpu


# ----------------------------------------------------------------------------
# Fused Pallas kernel: projections + both attention streams + unifyheads
# ----------------------------------------------------------------------------
def _fused_self_attention_kernel(
    feats_ref, inps_ref, mask_a_ref, mask_b_ref,
    wf_ref, bf_ref, wl_ref, bl_ref,
    wuv_ref, buv_ref, wul_ref, bul_ref,
    feats_out_ref, inps_out_ref,
    *, heads, e, t1, t2, nb):
    H = heads * e

    wf = wf_ref[...]                         # (H, 6H)  packed feats-sourced weights
    wl = wl_ref[...]                         # (H, 6H)  packed inps-sourced weights
    x_f = feats_ref[...]                     # (nb*t1, H)
    x_l = inps_ref[...]                      # (nb*t2, H)

    # Fused projections for the whole (folded) batch: two matmuls total.
    pf = jnp.dot(x_f, wf, preferred_element_type=jnp.float32) + bf_ref[...]   # (nb*t1, 6H)
    pl_ = jnp.dot(x_l, wl, preferred_element_type=jnp.float32) + bl_ref[...]  # (nb*t2, 6H)

    # slot layout (columns of pf / pl_), scales already folded in:
    #   pf : [q_vv, k_vv, v_vv, q_lv, k_vl, v_vl]
    #   pl_: [k_lv, v_lv, q_vl, q_ll, k_ll, v_ll]

    def attend(tq, q1, s_q1, k1, s_k1, v1, s_v1,
               q2, s_q2, k2, s_k2, v2, s_v2,
               mA, mB, wu_ref_, bu_ref_):
        # Joint attention over keys [part A | part B] with a split (two-tile)
        # softmax -- mathematically identical to softmax over the concatenation.
        acc = jnp.zeros((tq, H), jnp.float32)
        for hh in range(heads):
            def hsl(x, slot):
                base = slot * H + hh * e
                return x[:, base:base + e]
            # QK^T without materializing a transpose: contract the last dims.
            sA = jax.lax.dot_general(hsl(q1, s_q1), hsl(k1, s_k1),
                                     (((1,), (1,)), ((), ())),
                                     preferred_element_type=jnp.float32) + mA  # (tq, ta)
            sB = jax.lax.dot_general(hsl(q2, s_q2), hsl(k2, s_k2),
                                     (((1,), (1,)), ((), ())),
                                     preferred_element_type=jnp.float32) + mB  # (tq, tb)
            m = jnp.maximum(jnp.max(sA, axis=-1, keepdims=True),
                            jnp.max(sB, axis=-1, keepdims=True))
            pA = jnp.exp(sA - m)
            pB = jnp.exp(sB - m)
            inv = pl.reciprocal(jnp.sum(pA, axis=-1, keepdims=True)
                                + jnp.sum(pB, axis=-1, keepdims=True), approx=True)
            o = (jnp.dot(pA, hsl(v1, s_v1), preferred_element_type=jnp.float32)
                 + jnp.dot(pB, hsl(v2, s_v2), preferred_element_type=jnp.float32)) * inv
            # Fuse unifyheads: o_h @ Wu[h*e:(h+1)*e, :] accumulated per head
            # (== one matmul on the head-concatenated output, no lane concat).
            wu_h = wu_ref_[hh * e:(hh + 1) * e, :]                              # (e, H)
            acc = acc + jnp.dot(o.astype(wu_h.dtype), wu_h,
                                preferred_element_type=jnp.float32)
        return acc + bu_ref_[...]

    for bi in range(nb):                      # static loop (nb is 1 or b, tiny)
        pf_b = pf[bi * t1:(bi + 1) * t1, :]   # (t1, 6H)
        pl_b = pl_[bi * t2:(bi + 1) * t2, :]  # (t2, 6H)
        mA = mask_a_ref[bi]                   # (1, t1) additive mask (0 / -1e9)
        mB = mask_b_ref[bi]                   # (1, t2)

        # visual stream: queries from feats, keys/values from [feats | inps]
        out_v = attend(t1,
                       pf_b, 0, pf_b, 1, pf_b, 2,     # q_vv, k_vv, v_vv
                       pf_b, 3, pl_b, 0, pl_b, 1,     # q_lv, k_lv, v_lv
                       mA, mB, wuv_ref, buv_ref)
        # language stream: queries from inps, keys/values from [feats | inps]
        out_l = attend(t2,
                       pl_b, 2, pf_b, 4, pf_b, 5,     # q_vl, k_vl, v_vl
                       pl_b, 3, pl_b, 4, pl_b, 5,     # q_ll, k_ll, v_ll
                       mA, mB, wul_ref, bul_ref)

        feats_out_ref[bi * t1:(bi + 1) * t1, :] = out_v.astype(feats_out_ref.dtype)
        inps_out_ref[bi * t2:(bi + 1) * t2, :] = out_l.astype(inps_out_ref.dtype)


# ----------------------------------------------------------------------------
# Parameter init (PyTorch nn.Linear layout: W (out, in), b (out,))
# ----------------------------------------------------------------------------
_PROJ_NAMES = [
    "tokeys_v_v", "toqueries_v_v", "tovalues_v_v",
    "tokeys_l_v", "toqueries_l_v", "tovalues_l_v",
    "tokeys_v_l", "toqueries_v_l", "tovalues_v_l",
    "tokeys_l_l", "toqueries_l_l", "tovalues_l_l",
    "unifyheads_v", "unifyheads_l",
]

# slot order of the fused projection weights
_FEATS_SLOTS = ["toqueries_v_v", "tokeys_v_v", "tovalues_v_v",
                "toqueries_l_v", "tokeys_v_l", "tovalues_v_l"]
_INPS_SLOTS = ["tokeys_l_v", "tovalues_l_v", "toqueries_v_l",
               "toqueries_l_l", "tokeys_l_l", "tovalues_l_l"]


def init_params(key, hidden):
    params = {}
    for name in _PROJ_NAMES:
        key, kw, kb = jax.random.split(key, 3)
        params[name + "_w"] = 0.02 * jax.random.normal(kw, (hidden, hidden), jnp.float32)
        params[name + "_b"] = 0.02 * jax.random.normal(kb, (hidden,), jnp.float32)
    return params


def _pack_weights(params, heads, hidden, use_bf16=False):
    """Concatenate the 12 projection weights into 2 (in, 6*hidden) matrices,
    transpose to (in, out) so the kernel never transposes, and fold the torch
    1/e**0.25 scalings into the q/v weights+biases (mathematically identical:
    q*e^-1/2 dot k == (q*e^-1/4) dot (k*e^-1/4))."""
    e = hidden // heads
    q_scale = float(e) ** -0.5
    v_scale = float(e) ** -0.25
    wdt = jnp.bfloat16 if use_bf16 else jnp.float32

    def scale_for(name):
        if "toqueries" in name:
            return q_scale
        if "tovalues" in name:
            return v_scale
        return 1.0

    def pack(names):
        ws, bs = [], []
        for n in names:
            s = scale_for(n)
            ws.append(params[n + "_w"].T * s)       # (in, out)
            bs.append(params[n + "_b"] * s)
        return (jnp.concatenate(ws, axis=1).astype(wdt),
                jnp.concatenate(bs, axis=0)[None, :].astype(jnp.float32))

    wf, bf = pack(_FEATS_SLOTS)
    wl, bl = pack(_INPS_SLOTS)
    wuv = params["unifyheads_v_w"].T.astype(wdt)
    buv = params["unifyheads_v_b"][None, :].astype(jnp.float32)
    wul = params["unifyheads_l_w"].T.astype(wdt)
    bul = params["unifyheads_l_b"][None, :].astype(jnp.float32)
    return wf, bf, wl, bl, wuv, buv, wul, bul


def _device_has_two_tensorcores():
    # v7x has 2 TensorCores per chip; v5e/v6e have 1 (batch fold wins there).
    try:
        kind = jax.devices()[0].device_kind.lower()
    except Exception:
        return False
    return "v7" in kind


# ----------------------------------------------------------------------------
# Forward: single fused pallas_call
#   mode="fold": one grid step, batch folded into sublanes (best on v5e/v6e)
#   mode="grid": grid=(b,) parallel so batch shards across v7x's 2 TCs
# ----------------------------------------------------------------------------
def self_attention_forward(params, feats, inps, att_mask, heads,
                           mode="auto", use_bf16=False):
    b, t1, hidden = feats.shape
    t2 = inps.shape[1]
    e = hidden // heads
    total = t1 + t2

    wf, bf, wl, bl, wuv, buv, wul, bul = _pack_weights(params, heads, hidden, use_bf16)

    # Additive mask, split into the feats-key and inps-key parts, hoisted out of
    # the kernel: (b, 1, t) float blocks holding 0.0 / -1e9.  Never broadcast to
    # b*heads in HBM.
    add_mask = jnp.where(att_mask.reshape(b, 1, total), -1e9, 0.0).astype(jnp.float32)
    mask_a = add_mask[:, :, :t1]              # (b, 1, t1)
    mask_b = add_mask[:, :, t1:]              # (b, 1, t2)

    x_f = feats.reshape(b * t1, hidden)
    x_l = inps.reshape(b * t2, hidden)
    if use_bf16:
        x_f = x_f.astype(jnp.bfloat16)
        x_l = x_l.astype(jnp.bfloat16)

    if mode == "auto":
        mode = "grid" if (b >= 2 and _device_has_two_tensorcores()) else "fold"

    if mode == "grid":
        nb, grid = 1, (b,)
        fmap = lambda i: (i, 0)               # per-batch row block
        lmap = lambda i: (i, 0)
        mmap = lambda i: (i, 0, 0)
        feats_blk, inps_blk = (t1, hidden), (t2, hidden)
        maska_blk, maskb_blk = (1, 1, t1), (1, 1, t2)
        semantics = ("parallel",)             # shards batch over v7x's 2 TCs
    else:  # "fold": single grid step, whole batch in VMEM at once
        nb, grid = b, (1,)
        fmap = lambda i: (0, 0)
        lmap = lambda i: (0, 0)
        mmap = lambda i: (0, 0, 0)
        feats_blk, inps_blk = (b * t1, hidden), (b * t2, hidden)
        maska_blk, maskb_blk = (b, 1, t1), (b, 1, t2)
        semantics = ("arbitrary",)

    wmap = lambda i: (0, 0)                   # weights: same block every step (no re-DMA)

    kern = functools.partial(_fused_self_attention_kernel,
                             heads=heads, e=e, t1=t1, t2=t2, nb=nb)

    feats_out, inps_out = pl.pallas_call(
        kern,
        out_shape=(jax.ShapeDtypeStruct((b * t1, hidden), jnp.float32),
                   jax.ShapeDtypeStruct((b * t2, hidden), jnp.float32)),
        grid=grid,
        in_specs=[
            pl.BlockSpec(feats_blk, fmap),                 # feats rows
            pl.BlockSpec(inps_blk, lmap),                  # inps rows
            pl.BlockSpec(maska_blk, mmap),                 # additive mask (feats keys)
            pl.BlockSpec(maskb_blk, mmap),                 # additive mask (inps keys)
            pl.BlockSpec((hidden, 6 * hidden), wmap),      # W feats-sourced (packed)
            pl.BlockSpec((1, 6 * hidden), wmap),           # b feats-sourced (packed)
            pl.BlockSpec((hidden, 6 * hidden), wmap),      # W inps-sourced (packed)
            pl.BlockSpec((1, 6 * hidden), wmap),           # b inps-sourced (packed)
            pl.BlockSpec((hidden, hidden), wmap),          # unifyheads_v W
            pl.BlockSpec((1, hidden), wmap),               # unifyheads_v b
            pl.BlockSpec((hidden, hidden), wmap),          # unifyheads_l W
            pl.BlockSpec((1, hidden), wmap),               # unifyheads_l b
        ],
        out_specs=[
            pl.BlockSpec(feats_blk, fmap),
            pl.BlockSpec(inps_blk, lmap),
        ],
        compiler_params=pltpu.CompilerParams(dimension_semantics=semantics),
    )(x_f, x_l, mask_a, mask_b, wf, bf, wl, bl, wuv, buv, wul, bul)

    # dropout_v / dropout_l: identity in eval mode
    return feats_out.reshape(b, t1, hidden), inps_out.reshape(b, t2, hidden)


# ----------------------------------------------------------------------------
# Pure-JAX reference mirroring the torch code (correctness check)
# ----------------------------------------------------------------------------
def reference_forward(params, feats, inps, att_mask, heads):
    b, t1, hidden = feats.shape
    t2 = inps.shape[1]
    e = hidden // heads
    scale = e ** 0.25

    def lin(name, x):
        return x @ params[name + "_w"].T + params[name + "_b"]

    def sh(x, t):
        return (x.reshape(b, t, heads, e).transpose(0, 2, 1, 3)
                .reshape(b * heads, t, e)) / scale

    q_vv, k_vv, v_vv = sh(lin("toqueries_v_v", feats), t1), sh(lin("tokeys_v_v", feats), t1), sh(lin("tovalues_v_v", feats), t1)
    q_lv, k_lv, v_lv = sh(lin("toqueries_l_v", feats), t1), sh(lin("tokeys_l_v", inps), t2), sh(lin("tovalues_l_v", inps), t2)
    q_vl, k_vl, v_vl = sh(lin("toqueries_v_l", inps), t2), sh(lin("tokeys_v_l", feats), t1), sh(lin("tovalues_v_l", feats), t1)
    q_ll, k_ll, v_ll = sh(lin("toqueries_l_l", inps), t2), sh(lin("tokeys_l_l", inps), t2), sh(lin("tovalues_l_l", inps), t2)

    dot_vv = jnp.einsum("bqe,bke->bqk", q_vv, k_vv)
    dot_lv = jnp.einsum("bqe,bke->bqk", q_lv, k_lv)
    dot_vl = jnp.einsum("bqe,bke->bqk", q_vl, k_vl)
    dot_ll = jnp.einsum("bqe,bke->bqk", q_ll, k_ll)

    att_v = jnp.concatenate([dot_vv, dot_lv], axis=2).reshape(b, heads, t1, t1 + t2)
    att_l = jnp.concatenate([dot_vl, dot_ll], axis=2).reshape(b, heads, t2, t1 + t2)
    att_v = jnp.where(att_mask, -1e9, att_v).reshape(b * heads, t1, t1 + t2)
    att_l = jnp.where(att_mask, -1e9, att_l).reshape(b * heads, t2, t1 + t2)
    att_v = jax.nn.softmax(att_v, axis=2)
    att_l = jax.nn.softmax(att_l, axis=2)

    vals_v = jnp.concatenate([v_vv, v_lv], axis=1)
    vals_l = jnp.concatenate([v_vl, v_ll], axis=1)

    f = jnp.einsum("bqk,bke->bqe", att_v, vals_v)
    f = f.reshape(b, heads, t1, e).transpose(0, 2, 1, 3).reshape(b, t1, hidden)
    f = f @ params["unifyheads_v_w"].T + params["unifyheads_v_b"]
    i = jnp.einsum("bqk,bke->bqe", att_l, vals_l)
    i = i.reshape(b, heads, t2, e).transpose(0, 2, 1, 3).reshape(b, t2, hidden)
    i = i @ params["unifyheads_l_w"].T + params["unifyheads_l_b"]
    return f, i


# ----------------------------------------------------------------------------
if __name__ == "__main__":
    hidden, heads = 32, 4          # e = 8
    b, t1, t2 = 2, 16, 8

    key = jax.random.PRNGKey(0)
    kp, kf, ki = jax.random.split(key, 3)
    params = init_params(kp, hidden)
    feats = jax.random.normal(kf, (b, t1, hidden), jnp.float32)
    inps = jax.random.normal(ki, (b, t2, hidden), jnp.float32)

    # mask out the last 4 joint key positions of batch 1 (True = masked)
    att_mask = jnp.zeros((b, 1, 1, t1 + t2), dtype=bool)
    att_mask = att_mask.at[1, :, :, -4:].set(True)

    ref_f, ref_i = reference_forward(params, feats, inps, att_mask, heads)

    # Exercise both execution strategies: batch-folded single step (v5e/v6e
    # default) and parallel per-batch grid (v7x default).
    for mode in ("fold", "grid"):
        feats_out, inps_out = self_attention_forward(params, feats, inps,
                                                     att_mask, heads, mode=mode)
        jax.block_until_ready((feats_out, inps_out))
        assert feats_out.shape == (b, t1, hidden) and inps_out.shape == (b, t2, hidden)
        assert jnp.allclose(feats_out, ref_f, rtol=2e-3, atol=2e-3), mode
        assert jnp.allclose(inps_out, ref_i, rtol=2e-3, atol=2e-3), mode

    print("KERNEL_OK")
</pallas_src>

<mosaic_0001>
module attributes {stable_mosaic.version = 11 : i64} {
  func.func @_fused_self_attention_kernel(%arg0: i32, %arg1: memref<32x32xf32, #tpu.memory_space<vmem>>, %arg2: memref<16x32xf32, #tpu.memory_space<vmem>>, %arg3: memref<2x1x16xf32, #tpu.memory_space<vmem>>, %arg4: memref<2x1x8xf32, #tpu.memory_space<vmem>>, %arg5: memref<32x192xf32, #tpu.memory_space<vmem>>, %arg6: memref<1x192xf32, #tpu.memory_space<vmem>>, %arg7: memref<32x192xf32, #tpu.memory_space<vmem>>, %arg8: memref<1x192xf32, #tpu.memory_space<vmem>>, %arg9: memref<32x32xf32, #tpu.memory_space<vmem>>, %arg10: memref<1x32xf32, #tpu.memory_space<vmem>>, %arg11: memref<32x32xf32, #tpu.memory_space<vmem>>, %arg12: memref<1x32xf32, #tpu.memory_space<vmem>>, %arg13: memref<32x32xf32, #tpu.memory_space<vmem>>, %arg14: memref<16x32xf32, #tpu.memory_space<vmem>>) attributes {dimension_semantics = [#tpu.dimension_semantics<arbitrary>], iteration_bounds = array<i64: 1>, scalar_prefetch = 0 : i64, scratch_operands = 0 : i64, tpu.core_type = #tpu.core_type<tc>, window_params = [{pipeline_mode = #tpu.pipeline_mode<synchronous>, transform_indices = @transform_0, window_bounds = array<i64: 32, 32>}, {pipeline_mode = #tpu.pipeline_mode<synchronous>, transform_indices = @transform_1, window_bounds = array<i64: 16, 32>}, {pipeline_mode = #tpu.pipeline_mode<synchronous>, transform_indices = @transform_2, window_bounds = array<i64: 2, 1, 16>}, {pipeline_mode = #tpu.pipeline_mode<synchronous>, transform_indices = @transform_3, window_bounds = array<i64: 2, 1, 8>}, {pipeline_mode = #tpu.pipeline_mode<synchronous>, transform_indices = @transform_4, window_bounds = array<i64: 32, 192>}, {pipeline_mode = #tpu.pipeline_mode<synchronous>, transform_indices = @transform_5, window_bounds = array<i64: 1, 192>}, {pipeline_mode = #tpu.pipeline_mode<synchronous>, transform_indices = @transform_6, window_bounds = array<i64: 32, 192>}, {pipeline_mode = #tpu.pipeline_mode<synchronous>, transform_indices = @transform_7, window_bounds = array<i64: 1, 192>}, {pipeline_mode = #tpu.pipeline_mode<synchronous>, transform_indices = @transform_8, window_bounds = array<i64: 32, 32>}, {pipeline_mode = #tpu.pipeline_mode<synchronous>, transform_indices = @transform_9, window_bounds = array<i64: 1, 32>}, {pipeline_mode = #tpu.pipeline_mode<synchronous>, transform_indices = @transform_10, window_bounds = array<i64: 32, 32>}, {pipeline_mode = #tpu.pipeline_mode<synchronous>, transform_indices = @transform_11, window_bounds = array<i64: 1, 32>}, {pipeline_mode = #tpu.pipeline_mode<synchronous>, transform_indices = @transform_12, window_bounds = array<i64: 32, 32>}, {pipeline_mode = #tpu.pipeline_mode<synchronous>, transform_indices = @transform_13, window_bounds = array<i64: 16, 32>}]} {
    %c0 = arith.constant 0 : index
    %c0_0 = arith.constant 0 : index
    %0 = vector.load %arg5[%c0, %c0_0] : memref<32x192xf32, #tpu.memory_space<vmem>>, vector<32x192xf32>
    %c0_1 = arith.constant 0 : index
    %c0_2 = arith.constant 0 : index
    %1 = vector.load %arg7[%c0_1, %c0_2] : memref<32x192xf32, #tpu.memory_space<vmem>>, vector<32x192xf32>
    %c0_3 = arith.constant 0 : index
    %c0_4 = arith.constant 0 : index
    %2 = vector.load %arg1[%c0_3, %c0_4] : memref<32x32xf32, #tpu.memory_space<vmem>>, vector<32x32xf32>
    %c0_5 = arith.constant 0 : index
    %c0_6 = arith.constant 0 : index
    %3 = vector.load %arg2[%c0_5, %c0_6] : memref<16x32xf32, #tpu.memory_space<vmem>>, vector<16x32xf32>
    %cst = arith.constant dense<0.000000e+00> : vector<32x192xf32>
    %4 = tpu.matmul %2, %0, %cst {dimension_numbers = #tpu.dot_dimension_numbers<[1], [0], [0], [1], [0, 0, 1, 1], [], []>} : vector<32x32xf32>, vector<32x192xf32>, vector<32x192xf32> -> vector<32x192xf32>
    %c0_7 = arith.constant 0 : index
    %c0_8 = arith.constant 0 : index
    %5 = vector.load %arg6[%c0_7, %c0_8] : memref<1x192xf32, #tpu.memory_space<vmem>>, vector<1x192xf32>
    %6 = vector.broadcast %5 : vector<1x192xf32> to vector<32x192xf32>
    %7 = arith.addf %4, %6 : vector<32x192xf32>
    %cst_9 = arith.constant dense<0.000000e+00> : vector<16x192xf32>
    %8 = tpu.matmul %3, %1, %cst_9 {dimension_numbers = #tpu.dot_dimension_numbers<[1], [0], [0], [1], [0, 0, 1, 1], [], []>} : vector<16x32xf32>, vector<32x192xf32>, vector<16x192xf32> -> vector<16x192xf32>
    %c0_10 = arith.constant 0 : index
    %c0_11 = arith.constant 0 : index
    %9 = vector.load %arg8[%c0_10, %c0_11] : memref<1x192xf32, #tpu.memory_space<vmem>>, vector<1x192xf32>
    %10 = vector.broadcast %9 : vector<1x192xf32> to vector<16x192xf32>
    %11 = arith.addf %8, %10 : vector<16x192xf32>
    %12 = vector.extract_strided_slice %7 {offsets = [0, 0], sizes = [16, 192], strides = [1, 1]} : vector<32x192xf32> to vector<16x192xf32>
    %13 = vector.extract_strided_slice %11 {offsets = [0, 0], sizes = [8, 192], strides = [1, 1]} : vector<16x192xf32> to vector<8x192xf32>
    %c0_12 = arith.constant 0 : index
    %c0_13 = arith.constant 0 : index
    %c0_14 = arith.constant 0 : index
    %14 = vector.load %arg3[%c0_12, %c0_13, %c0_14] : memref<2x1x16xf32, #tpu.memory_space<vmem>>, vector<1x1x16xf32>
    %15 = vector.shape_cast %14 : vector<1x1x16xf32> to vector<1x16xf32>
    %c0_15 = arith.constant 0 : index
    %c0_16 = arith.constant 0 : index
    %c0_17 = arith.constant 0 : index
    %16 = vector.load %arg4[%c0_15, %c0_16, %c0_17] : memref<2x1x8xf32, #tpu.memory_space<vmem>>, vector<1x1x8xf32>
    %17 = vector.shape_cast %16 : vector<1x1x8xf32> to vector<1x8xf32>
    %cst_18 = arith.constant 0.000000e+00 : f32
    %18 = vector.broadcast %cst_18 : f32 to vector<16x32xf32>
    %19 = vector.extract_strided_slice %12 {offsets = [0, 0], sizes = [16, 8], strides = [1, 1]} : vector<16x192xf32> to vector<16x8xf32>
    %20 = vector.extract_strided_slice %12 {offsets = [0, 32], sizes = [16, 8], strides = [1, 1]} : vector<16x192xf32> to vector<16x8xf32>
    %cst_19 = arith.constant dense<0.000000e+00> : vector<16x16xf32>
    %21 = tpu.matmul %19, %20, %cst_19 {dimension_numbers = #tpu.dot_dimension_numbers<[1], [1], [0], [0], [0, 0, 1, 0], [], []>} : vector<16x8xf32>, vector<16x8xf32>, vector<16x16xf32> -> vector<16x16xf32>
    %22 = vector.broadcast %15 : vector<1x16xf32> to vector<16x16xf32>
    %23 = arith.addf %21, %22 : vector<16x16xf32>
    %24 = vector.extract_strided_slice %12 {offsets = [0, 96], sizes = [16, 8], strides = [1, 1]} : vector<16x192xf32> to vector<16x8xf32>
    %25 = vector.extract_strided_slice %13 {offsets = [0, 0], sizes = [8, 8], strides = [1, 1]} : vector<8x192xf32> to vector<8x8xf32>
    %cst_20 = arith.constant dense<0.000000e+00> : vector<16x8xf32>
    %26 = tpu.matmul %24, %25, %cst_20 {dimension_numbers = #tpu.dot_dimension_numbers<[1], [1], [0], [0], [0, 0, 1, 0], [], []>} : vector<16x8xf32>, vector<8x8xf32>, vector<16x8xf32> -> vector<16x8xf32>
    %27 = vector.broadcast %17 : vector<1x8xf32> to vector<16x8xf32>
    %28 = arith.addf %26, %27 : vector<16x8xf32>
    %cst_21 = arith.constant dense<0xFF800000> : vector<16xf32>
    %29 = vector.multi_reduction <maximumf>, %23, %cst_21 [1] : vector<16x16xf32> to vector<16xf32>
    %30 = vector.shape_cast %29 : vector<16xf32> to vector<16x1xf32>
    %cst_22 = arith.constant dense<0xFF800000> : vector<16xf32>
    %31 = vector.multi_reduction <maximumf>, %28, %cst_22 [1] : vector<16x8xf32> to vector<16xf32>
    %32 = vector.shape_cast %31 : vector<16xf32> to vector<16x1xf32>
    %33 = arith.maximumf %30, %32 : vector<16x1xf32>
    %34 = vector.broadcast %33 : vector<16x1xf32> to vector<16x16xf32>
    %35 = arith.subf %23, %34 : vector<16x16xf32>
    %36 = math.exp %35 : vector<16x16xf32>
    %37 = vector.broadcast %33 : vector<16x1xf32> to vector<16x8xf32>
    %38 = arith.subf %28, %37 : vector<16x8xf32>
    %39 = math.exp %38 : vector<16x8xf32>
    %cst_23 = arith.constant dense<0.000000e+00> : vector<16xf32>
    %40 = vector.multi_reduction <add>, %36, %cst_23 [1] : vector<16x16xf32> to vector<16xf32>
    %41 = vector.shape_cast %40 : vector<16xf32> to vector<16x1xf32>
    %cst_24 = arith.constant dense<0.000000e+00> : vector<16xf32>
    %42 = vector.multi_reduction <add>, %39, %cst_24 [1] : vector<16x8xf32> to vector<16xf32>
    %43 = vector.shape_cast %42 : vector<16xf32> to vector<16x1xf32>
    %44 = arith.addf %41, %43 : vector<16x1xf32>
    %45 = tpu.reciprocal %44 {approx = true} : vector<16x1xf32> -> vector<16x1xf32>
    %46 = vector.extract_strided_slice %12 {offsets = [0, 64], sizes = [16, 8], strides = [1, 1]} : vector<16x192xf32> to vector<16x8xf32>
    %cst_25 = arith.constant dense<0.000000e+00> : vector<16x8xf32>
    %47 = tpu.matmul %36, %46, %cst_25 {dimension_numbers = #tpu.dot_dimension_numbers<[1], [0], [0], [1], [0, 0, 1, 1], [], []>} : vector<16x16xf32>, vector<16x8xf32>, vector<16x8xf32> -> vector<16x8xf32>
    %48 = vector.extract_strided_slice %13 {offsets = [0, 32], sizes = [8, 8], strides = [1, 1]} : vector<8x192xf32> to vector<8x8xf32>
    %cst_26 = arith.constant dense<0.000000e+00> : vector<16x8xf32>
    %49 = tpu.matmul %39, %48, %cst_26 {dimension_numbers = #tpu.dot_dimension_numbers<[1], [0], [0], [1], [0, 0, 1, 1], [], []>} : vector<16x8xf32>, vector<8x8xf32>, vector<16x8xf32> -> vector<16x8xf32>
    %50 = arith.addf %47, %49 : vector<16x8xf32>
    %51 = vector.broadcast %45 : vector<16x1xf32> to vector<16x8xf32>
    %52 = arith.mulf %50, %51 : vector<16x8xf32>
    %c0_27 = arith.constant 0 : index
    %c0_28 = arith.constant 0 : index
    %53 = vector.load %arg9[%c0_27, %c0_28] : memref<32x32xf32, #tpu.memory_space<vmem>>, vector<8x32xf32>
    %cst_29 = arith.constant dense<0.000000e+00> : vector<16x32xf32>
    %54 = tpu.matmul %52, %53, %cst_29 {dimension_numbers = #tpu.dot_dimension_numbers<[1], [0], [0], [1], [0, 0, 1, 1], [], []>} : vector<16x8xf32>, vector<8x32xf32>, vector<16x32xf32> -> vector<16x32xf32>
    %55 = arith.addf %18, %54 : vector<16x32xf32>
    %56 = vector.extract_strided_slice %12 {offsets = [0, 8], sizes = [16, 8], strides = [1, 1]} : vector<16x192xf32> to vector<16x8xf32>
    %57 = vector.extract_strided_slice %12 {offsets = [0, 40], sizes = [16, 8], strides = [1, 1]} : vector<16x192xf32> to vector<16x8xf32>
    %cst_30 = arith.constant dense<0.000000e+00> : vector<16x16xf32>
    %58 = tpu.matmul %56, %57, %cst_30 {dimension_numbers = #tpu.dot_dimension_numbers<[1], [1], [0], [0], [0, 0, 1, 0], [], []>} : vector<16x8xf32>, vector<16x8xf32>, vector<16x16xf32> -> vector<16x16xf32>
    %59 = vector.broadcast %15 : vector<1x16xf32> to vector<16x16xf32>
    %60 = arith.addf %58, %59 : vector<16x16xf32>
    %61 = vector.extract_strided_slice %12 {offsets = [0, 104], sizes = [16, 8], strides = [1, 1]} : vector<16x192xf32> to vector<16x8xf32>
    %62 = vector.extract_strided_slice %13 {offsets = [0, 8], sizes = [8, 8], strides = [1, 1]} : vector<8x192xf32> to vector<8x8xf32>
    %cst_31 = arith.constant dense<0.000000e+00> : vector<16x8xf32>
    %63 = tpu.matmul %61, %62, %cst_31 {dimension_numbers = #tpu.dot_dimension_numbers<[1], [1], [0], [0], [0, 0, 1, 0], [], []>} : vector<16x8xf32>, vector<8x8xf32>, vector<16x8xf32> -> vector<16x8xf32>
    %64 = vector.broadcast %17 : vector<1x8xf32> to vector<16x8xf32>
    %65 = arith.addf %63, %64 : vector<16x8xf32>
    %cst_32 = arith.constant dense<0xFF800000> : vector<16xf32>
    %66 = vector.multi_reduction <maximumf>, %60, %cst_32 [1] : vector<16x16xf32> to vector<16xf32>
    %67 = vector.shape_cast %66 : vector<16xf32> to vector<16x1xf32>
    %cst_33 = arith.constant dense<0xFF800000> : vector<16xf32>
    %68 = vector.multi_reduction <maximumf>, %65, %cst_33 [1] : vector<16x8xf32> to vector<16xf32>
    %69 = vector.shape_cast %68 : vector<16xf32> to vector<16x1xf32>
    %70 = arith.maximumf %67, %69 : vector<16x1xf32>
    %71 = vector.broadcast %70 : vector<16x1xf32> to vector<16x16xf32>
    %72 = arith.subf %60, %71 : vector<16x16xf32>
    %73 = math.exp %72 : vector<16x16xf32>
    %74 = vector.broadcast %70 : vector<16x1xf32> to vector<16x8xf32>
    %75 = arith.subf %65, %74 : vector<16x8xf32>
    %76 = math.exp %75 : vector<16x8xf32>
    %cst_34 = arith.constant dense<0.000000e+00> : vector<16xf32>
    %77 = vector.multi_reduction <add>, %73, %cst_34 [1] : vector<16x16xf32> to vector<16xf32>
    %78 = vector.shape_cast %77 : vector<16xf32> to vector<16x1xf32>
    %cst_35 = arith.constant dense<0.000000e+00> : vector<16xf32>
    %79 = vector.multi_reduction <add>, %76, %cst_35 [1] : vector<16x8xf32> to vector<16xf32>
    %80 = vector.shape_cast %79 : vector<16xf32> to vector<16x1xf32>
    %81 = arith.addf %78, %80 : vector<16x1xf32>
    %82 = tpu.reciprocal %81 {approx = true} : vector<16x1xf32> -> vector<16x1xf32>
    %83 = vector.extract_strided_slice %12 {offsets = [0, 72], sizes = [16, 8], strides = [1, 1]} : vector<16x192xf32> to vector<16x8xf32>
    %cst_36 = arith.constant dense<0.000000e+00> : vector<16x8xf32>
    %84 = tpu.matmul %73, %83, %cst_36 {dimension_numbers = #tpu.dot_dimension_numbers<[1], [0], [0], [1], [0, 0, 1, 1], [], []>} : vector<16x16xf32>, vector<16x8xf32>, vector<16x8xf32> -> vector<16x8xf32>
    %85 = vector.extract_strided_slice %13 {offsets = [0, 40], sizes = [8, 8], strides = [1, 1]} : vector<8x192xf32> to vector<8x8xf32>
    %cst_37 = arith.constant dense<0.000000e+00> : vector<16x8xf32>
    %86 = tpu.matmul %76, %85, %cst_37 {dimension_numbers = #tpu.dot_dimension_numbers<[1], [0], [0], [1], [0, 0, 1, 1], [], []>} : vector<16x8xf32>, vector<8x8xf32>, vector<16x8xf32> -> vector<16x8xf32>
    %87 = arith.addf %84, %86 : vector<16x8xf32>
    %88 = vector.broadcast %82 : vector<16x1xf32> to vector<16x8xf32>
    %89 = arith.mulf %87, %88 : vector<16x8xf32>
    %c8 = arith.constant 8 : index
    %c0_38 = arith.constant 0 : index
    %90 = vector.load %arg9[%c8, %c0_38] : memref<32x32xf32, #tpu.memory_space<vmem>>, vector<8x32xf32>
    %cst_39 = arith.constant dense<0.000000e+00> : vector<16x32xf32>
    %91 = tpu.matmul %89, %90, %cst_39 {dimension_numbers = #tpu.dot_dimension_numbers<[1], [0], [0], [1], [0, 0, 1, 1], [], []>} : vector<16x8xf32>, vector<8x32xf32>, vector<16x32xf32> -> vector<16x32xf32>
    %92 = arith.addf %55, %91 : vector<16x32xf32>
    %93 = vector.extract_strided_slice %12 {offsets = [0, 16], sizes = [16, 8], strides = [1, 1]} : vector<16x192xf32> to vector<16x8xf32>
    %94 = vector.extract_strided_slice %12 {offsets = [0, 48], sizes = [16, 8], strides = [1, 1]} : vector<16x192xf32> to vector<16x8xf32>
    %cst_40 = arith.constant dense<0.000000e+00> : vector<16x16xf32>
    %95 = tpu.matmul %93, %94, %cst_40 {dimension_numbers = #tpu.dot_dimension_numbers<[1], [1], [0], [0], [0, 0, 1, 0], [], []>} : vector<16x8xf32>, vector<16x8xf32>, vector<16x16xf32> -> vector<16x16xf32>
    %96 = vector.broadcast %15 : vector<1x16xf32> to vector<16x16xf32>
    %97 = arith.addf %95, %96 : vector<16x16xf32>
    %98 = vector.extract_strided_slice %12 {offsets = [0, 112], sizes = [16, 8], strides = [1, 1]} : vector<16x192xf32> to vector<16x8xf32>
    %99 = vector.extract_strided_slice %13 {offsets = [0, 16], sizes = [8, 8], strides = [1, 1]} : vector<8x192xf32> to vector<8x8xf32>
    %cst_41 = arith.constant dense<0.000000e+00> : vector<16x8xf32>
    %100 = tpu.matmul %98, %99, %cst_41 {dimension_numbers = #tpu.dot_dimension_numbers<[1], [1], [0], [0], [0, 0, 1, 0], [], []>} : vector<16x8xf32>, vector<8x8xf32>, vector<16x8xf32> -> vector<16x8xf32>
    %101 = vector.broadcast %17 : vector<1x8xf32> to vector<16x8xf32>
    %102 = arith.addf %100, %101 : vector<16x8xf32>
    %cst_42 = arith.constant dense<0xFF800000> : vector<16xf32>
    %103 = vector.multi_reduction <maximumf>, %97, %cst_42 [1] : vector<16x16xf32> to vector<16xf32>
    %104 = vector.shape_cast %103 : vector<16xf32> to vector<16x1xf32>
    %cst_43 = arith.constant dense<0xFF800000> : vector<16xf32>
    %105 = vector.multi_reduction <maximumf>, %102, %cst_43 [1] : vector<16x8xf32> to vector<16xf32>
    %106 = vector.shape_cast %105 : vector<16xf32> to vector<16x1xf32>
    %107 = arith.maximumf %104, %106 : vector<16x1xf32>
    %108 = vector.broadcast %107 : vector<16x1xf32> to vector<16x16xf32>
    %109 = arith.subf %97, %108 : vector<16x16xf32>
    %110 = math.exp %109 : vector<16x16xf32>
    %111 = vector.broadcast %107 : vector<16x1xf32> to vector<16x8xf32>
    %112 = arith.subf %102, %111 : vector<16x8xf32>
    %113 = math.exp %112 : vector<16x8xf32>
    %cst_44 = arith.constant dense<0.000000e+00> : vector<16xf32>
    %114 = vector.multi_reduction <add>, %110, %cst_44 [1] : vector<16x16xf32> to vector<16xf32>
    %115 = vector.shape_cast %114 : vector<16xf32> to vector<16x1xf32>
    %cst_45 = arith.constant dense<0.000000e+00> : vector<16xf32>
    %116 = vector.multi_reduction <add>, %113, %cst_45 [1] : vector<16x8xf32> to vector<16xf32>
    %117 = vector.shape_cast %116 : vector<16xf32> to vector<16x1xf32>
    %118 = arith.addf %115, %117 : vector<16x1xf32>
    %119 = tpu.reciprocal %118 {approx = true} : vector<16x1xf32> -> vector<16x1xf32>
    %120 = vector.extract_strided_slice %12 {offsets = [0, 80], sizes = [16, 8], strides = [1, 1]} : vector<16x192xf32> to vector<16x8xf32>
    %cst_46 = arith.constant dense<0.000000e+00> : vector<16x8xf32>
    %121 = tpu.matmul %110, %120, %cst_46 {dimension_numbers = #tpu.dot_dimension_numbers<[1], [0], [0], [1], [0, 0, 1, 1], [], []>} : vector<16x16xf32>, vector<16x8xf32>, vector<16x8xf32> -> vector<16x8xf32>
    %122 = vector.extract_strided_slice %13 {offsets = [0, 48], sizes = [8, 8], strides = [1, 1]} : vector<8x192xf32> to vector<8x8xf32>
    %cst_47 = arith.constant dense<0.000000e+00> : vector<16x8xf32>
    %123 = tpu.matmul %113, %122, %cst_47 {dimension_numbers = #tpu.dot_dimension_numbers<[1], [0], [0], [1], [0, 0, 1, 1], [], []>} : vector<16x8xf32>, vector<8x8xf32>, vector<16x8xf32> -> vector<16x8xf32>
    %124 = arith.addf %121, %123 : vector<16x8xf32>
    %125 = vector.broadcast %119 : vector<16x1xf32> to vector<16x8xf32>
    %126 = arith.mulf %124, %125 : vector<16x8xf32>
    %c16 = arith.constant 16 : index
    %c0_48 = arith.constant 0 : index
    %127 = vector.load %arg9[%c16, %c0_48] : memref<32x32xf32, #tpu.memory_space<vmem>>, vector<8x32xf32>
    %cst_49 = arith.constant dense<0.000000e+00> : vector<16x32xf32>
    %128 = tpu.matmul %126, %127, %cst_49 {dimension_numbers = #tpu.dot_dimension_numbers<[1], [0], [0], [1], [0, 0, 1, 1], [], []>} : vector<16x8xf32>, vector<8x32xf32>, vector<16x32xf32> -> vector<16x32xf32>
    %129 = arith.addf %92, %128 : vector<16x32xf32>
    %130 = vector.extract_strided_slice %12 {offsets = [0, 24], sizes = [16, 8], strides = [1, 1]} : vector<16x192xf32> to vector<16x8xf32>
    %131 = vector.extract_strided_slice %12 {offsets = [0, 56], sizes = [16, 8], strides = [1, 1]} : vector<16x192xf32> to vector<16x8xf32>
    %cst_50 = arith.constant dense<0.000000e+00> : vector<16x16xf32>
    %132 = tpu.matmul %130, %131, %cst_50 {dimension_numbers = #tpu.dot_dimension_numbers<[1], [1], [0], [0], [0, 0, 1, 0], [], []>} : vector<16x8xf32>, vector<16x8xf32>, vector<16x16xf32> -> vector<16x16xf32>
    %133 = vector.broadcast %15 : vector<1x16xf32> to vector<16x16xf32>
    %134 = arith.addf %132, %133 : vector<16x16xf32>
    %135 = vector.extract_strided_slice %12 {offsets = [0, 120], sizes = [16, 8], strides = [1, 1]} : vector<16x192xf32> to vector<16x8xf32>
    %136 = vector.extract_strided_slice %13 {offsets = [0, 24], sizes = [8, 8], strides = [1, 1]} : vector<8x192xf32> to vector<8x8xf32>
    %cst_51 = arith.constant dense<0.000000e+00> : vector<16x8xf32>
    %137 = tpu.matmul %135, %136, %cst_51 {dimension_numbers = #tpu.dot_dimension_numbers<[1], [1], [0], [0], [0, 0, 1, 0], [], []>} : vector<16x8xf32>, vector<8x8xf32>, vector<16x8xf32> -> vector<16x8xf32>
    %138 = vector.broadcast %17 : vector<1x8xf32> to vector<16x8xf32>
    %139 = arith.addf %137, %138 : vector<16x8xf32>
    %cst_52 = arith.constant dense<0xFF800000> : vector<16xf32>
    %140 = vector.multi_reduction <maximumf>, %134, %cst_52 [1] : vector<16x16xf32> to vector<16xf32>
    %141 = vector.shape_cast %140 : vector<16xf32> to vector<16x1xf32>
    %cst_53 = arith.constant dense<0xFF800000> : vector<16xf32>
    %142 = vector.multi_reduction <maximumf>, %139, %cst_53 [1] : vector<16x8xf32> to vector<16xf32>
    %143 = vector.shape_cast %142 : vector<16xf32> to vector<16x1xf32>
    %144 = arith.maximumf %141, %143 : vector<16x1xf32>
    %145 = vector.broadcast %144 : vector<16x1xf32> to vector<16x16xf32>
    %146 = arith.subf %134, %145 : vector<16x16xf32>
    %147 = math.exp %146 : vector<16x16xf32>
    %148 = vector.broadcast %144 : vector<16x1xf32> to vector<16x8xf32>
    %149 = arith.subf %139, %148 : vector<16x8xf32>
    %150 = math.exp %149 : vector<16x8xf32>
    %cst_54 = arith.constant dense<0.000000e+00> : vector<16xf32>
    %151 = vector.multi_reduction <add>, %147, %cst_54 [1] : vector<16x16xf32> to vector<16xf32>
    %152 = vector.shape_cast %151 : vector<16xf32> to vector<16x1xf32>
    %cst_55 = arith.constant dense<0.000000e+00> : vector<16xf32>
    %153 = vector.multi_reduction <add>, %150, %cst_55 [1] : vector<16x8xf32> to vector<16xf32>
    %154 = vector.shape_cast %153 : vector<16xf32> to vector<16x1xf32>
    %155 = arith.addf %152, %154 : vector<16x1xf32>
    %156 = tpu.reciprocal %155 {approx = true} : vector<16x1xf32> -> vector<16x1xf32>
    %157 = vector.extract_strided_slice %12 {offsets = [0, 88], sizes = [16, 8], strides = [1, 1]} : vector<16x192xf32> to vector<16x8xf32>
    %cst_56 = arith.constant dense<0.000000e+00> : vector<16x8xf32>
    %158 = tpu.matmul %147, %157, %cst_56 {dimension_numbers = #tpu.dot_dimension_numbers<[1], [0], [0], [1], [0, 0, 1, 1], [], []>} : vector<16x16xf32>, vector<16x8xf32>, vector<16x8xf32> -> vector<16x8xf32>
    %159 = vector.extract_strided_slice %13 {offsets = [0, 56], sizes = [8, 8], strides = [1, 1]} : vector<8x192xf32> to vector<8x8xf32>
    %cst_57 = arith.constant dense<0.000000e+00> : vector<16x8xf32>
    %160 = tpu.matmul %150, %159, %cst_57 {dimension_numbers = #tpu.dot_dimension_numbers<[1], [0], [0], [1], [0, 0, 1, 1], [], []>} : vector<16x8xf32>, vector<8x8xf32>, vector<16x8xf32> -> vector<16x8xf32>
    %161 = arith.addf %158, %160 : vector<16x8xf32>
    %162 = vector.broadcast %156 : vector<16x1xf32> to vector<16x8xf32>
    %163 = arith.mulf %161, %162 : vector<16x8xf32>
    %c24 = arith.constant 24 : index
    %c0_58 = arith.constant 0 : index
    %164 = vector.load %arg9[%c24, %c0_58] : memref<32x32xf32, #tpu.memory_space<vmem>>, vector<8x32xf32>
    %cst_59 = arith.constant dense<0.000000e+00> : vector<16x32xf32>
    %165 = tpu.matmul %163, %164, %cst_59 {dimension_numbers = #tpu.dot_dimension_numbers<[1], [0], [0], [1], [0, 0, 1, 1], [], []>} : vector<16x8xf32>, vector<8x32xf32>, vector<16x32xf32> -> vector<16x32xf32>
    %166 = arith.addf %129, %165 : vector<16x32xf32>
    %c0_60 = arith.constant 0 : index
    %c0_61 = arith.constant 0 : index
    %167 = vector.load %arg10[%c0_60, %c0_61] : memref<1x32xf32, #tpu.memory_space<vmem>>, vector<1x32xf32>
    %168 = vector.broadcast %167 : vector<1x32xf32> to vector<16x32xf32>
    %169 = arith.addf %166, %168 : vector<16x32xf32>
    %cst_62 = arith.constant 0.000000e+00 : f32
    %170 = vector.broadcast %cst_62 : f32 to vector<8x32xf32>
    %171 = vector.extract_strided_slice %13 {offsets = [0, 64], sizes = [8, 8], strides = [1, 1]} : vector<8x192xf32> to vector<8x8xf32>
    %172 = vector.extract_strided_slice %12 {offsets = [0, 128], sizes = [16, 8], strides = [1, 1]} : vector<16x192xf32> to vector<16x8xf32>
    %cst_63 = arith.constant dense<0.000000e+00> : vector<8x16xf32>
    %173 = tpu.matmul %171, %172, %cst_63 {dimension_numbers = #tpu.dot_dimension_numbers<[1], [1], [0], [0], [0, 0, 1, 0], [], []>} : vector<8x8xf32>, vector<16x8xf32>, vector<8x16xf32> -> vector<8x16xf32>
    %174 = vector.broadcast %15 : vector<1x16xf32> to vector<8x16xf32>
    %175 = arith.addf %173, %174 : vector<8x16xf32>
    %176 = vector.extract_strided_slice %13 {offsets = [0, 96], sizes = [8, 8], strides = [1, 1]} : vector<8x192xf32> to vector<8x8xf32>
    %177 = vector.extract_strided_slice %13 {offsets = [0, 128], sizes = [8, 8], strides = [1, 1]} : vector<8x192xf32> to vector<8x8xf32>
    %cst_64 = arith.constant dense<0.000000e+00> : vector<8x8xf32>
    %178 = tpu.matmul %176, %177, %cst_64 {dimension_numbers = #tpu.dot_dimension_numbers<[1], [1], [0], [0], [0, 0, 1, 0], [], []>} : vector<8x8xf32>, vector<8x8xf32>, vector<8x8xf32> -> vector<8x8xf32>
    %179 = vector.broadcast %17 : vector<1x8xf32> to vector<8x8xf32>
    %180 = arith.addf %178, %179 : vector<8x8xf32>
    %cst_65 = arith.constant dense<0xFF800000> : vector<8xf32>
    %181 = vector.multi_reduction <maximumf>, %175, %cst_65 [1] : vector<8x16xf32> to vector<8xf32>
    %182 = vector.shape_cast %181 : vector<8xf32> to vector<8x1xf32>
    %cst_66 = arith.constant dense<0xFF800000> : vector<8xf32>
    %183 = vector.multi_reduction <maximumf>, %180, %cst_66 [1] : vector<8x8xf32> to vector<8xf32>
    %184 = vector.shape_cast %183 : vector<8xf32> to vector<8x1xf32>
    %185 = arith.maximumf %182, %184 : vector<8x1xf32>
    %186 = vector.broadcast %185 : vector<8x1xf32> to vector<8x16xf32>
    %187 = arith.subf %175, %186 : vector<8x16xf32>
    %188 = math.exp %187 : vector<8x16xf32>
    %189 = vector.broadcast %185 : vector<8x1xf32> to vector<8x8xf32>
    %190 = arith.subf %180, %189 : vector<8x8xf32>
    %191 = math.exp %190 : vector<8x8xf32>
    %cst_67 = arith.constant dense<0.000000e+00> : vector<8xf32>
    %192 = vector.multi_reduction <add>, %188, %cst_67 [1] : vector<8x16xf32> to vector<8xf32>
    %193 = vector.shape_cast %192 : vector<8xf32> to vector<8x1xf32>
    %cst_68 = arith.constant dense<0.000000e+00> : vector<8xf32>
    %194 = vector.multi_reduction <add>, %191, %cst_68 [1] : vector<8x8xf32> to vector<8xf32>
    %195 = vector.shape_cast %194 : vector<8xf32> to vector<8x1xf32>
    %196 = arith.addf %193, %195 : vector<8x1xf32>
    %197 = tpu.reciprocal %196 {approx = true} : vector<8x1xf32> -> vector<8x1xf32>
    %198 = vector.extract_strided_slice %12 {offsets = [0, 160], sizes = [16, 8], strides = [1, 1]} : vector<16x192xf32> to vector<16x8xf32>
    %cst_69 = arith.constant dense<0.000000e+00> : vector<8x8xf32>
    %199 = tpu.matmul %188, %198, %cst_69 {dimension_numbers = #tpu.dot_dimension_numbers<[1], [0], [0], [1], [0, 0, 1, 1], [], []>} : vector<8x16xf32>, vector<16x8xf32>, vector<8x8xf32> -> vector<8x8xf32>
    %200 = vector.extract_strided_slice %13 {offsets = [0, 160], sizes = [8, 8], strides = [1, 1]} : vector<8x192xf32> to vector<8x8xf32>
    %cst_70 = arith.constant dense<0.000000e+00> : vector<8x8xf32>
    %201 = tpu.matmul %191, %200, %cst_70 {dimension_numbers = #tpu.dot_dimension_numbers<[1], [0], [0], [1], [0, 0, 1, 1], [], []>} : vector<8x8xf32>, vector<8x8xf32>, vector<8x8xf32> -> vector<8x8xf32>
    %202 = arith.addf %199, %201 : vector<8x8xf32>
    %203 = vector.broadcast %197 : vector<8x1xf32> to vector<8x8xf32>
    %204 = arith.mulf %202, %203 : vector<8x8xf32>
    %c0_71 = arith.constant 0 : index
    %c0_72 = arith.constant 0 : index
    %205 = vector.load %arg11[%c0_71, %c0_72] : memref<32x32xf32, #tpu.memory_space<vmem>>, vector<8x32xf32>
    %cst_73 = arith.constant dense<0.000000e+00> : vector<8x32xf32>
    %206 = tpu.matmul %204, %205, %cst_73 {dimension_numbers = #tpu.dot_dimension_numbers<[1], [0], [0], [1], [0, 0, 1, 1], [], []>} : vector<8x8xf32>, vector<8x32xf32>, vector<8x32xf32> -> vector<8x32xf32>
    %207 = arith.addf %170, %206 : vector<8x32xf32>
    %208 = vector.extract_strided_slice %13 {offsets = [0, 72], sizes = [8, 8], strides = [1, 1]} : vector<8x192xf32> to vector<8x8xf32>
    %209 = vector.extract_strided_slice %12 {offsets = [0, 136], sizes = [16, 8], strides = [1, 1]} : vector<16x192xf32> to vector<16x8xf32>
    %cst_74 = arith.constant dense<0.000000e+00> : vector<8x16xf32>
    %210 = tpu.matmul %208, %209, %cst_74 {dimension_numbers = #tpu.dot_dimension_numbers<[1], [1], [0], [0], [0, 0, 1, 0], [], []>} : vector<8x8xf32>, vector<16x8xf32>, vector<8x16xf32> -> vector<8x16xf32>
    %211 = vector.broadcast %15 : vector<1x16xf32> to vector<8x16xf32>
    %212 = arith.addf %210, %211 : vector<8x16xf32>
    %213 = vector.extract_strided_slice %13 {offsets = [0, 104], sizes = [8, 8], strides = [1, 1]} : vector<8x192xf32> to vector<8x8xf32>
    %214 = vector.extract_strided_slice %13 {offsets = [0, 136], sizes = [8, 8], strides = [1, 1]} : vector<8x192xf32> to vector<8x8xf32>
    %cst_75 = arith.constant dense<0.000000e+00> : vector<8x8xf32>
    %215 = tpu.matmul %213, %214, %cst_75 {dimension_numbers = #tpu.dot_dimension_numbers<[1], [1], [0], [0], [0, 0, 1, 0], [], []>} : vector<8x8xf32>, vector<8x8xf32>, vector<8x8xf32> -> vector<8x8xf32>
    %216 = vector.broadcast %17 : vector<1x8xf32> to vector<8x8xf32>
    %217 = arith.addf %215, %216 : vector<8x8xf32>
    %cst_76 = arith.constant dense<0xFF800000> : vector<8xf32>
    %218 = vector.multi_reduction <maximumf>, %212, %cst_76 [1] : vector<8x16xf32> to vector<8xf32>
    %219 = vector.shape_cast %218 : vector<8xf32> to vector<8x1xf32>
    %cst_77 = arith.constant dense<0xFF800000> : vector<8xf32>
    %220 = vector.multi_reduction <maximumf>, %217, %cst_77 [1] : vector<8x8xf32> to vector<8xf32>
    %221 = vector.shape_cast %220 : vector<8xf32> to vector<8x1xf32>
    %222 = arith.maximumf %219, %221 : vector<8x1xf32>
    %223 = vector.broadcast %222 : vector<8x1xf32> to vector<8x16xf32>
    %224 = arith.subf %212, %223 : vector<8x16xf32>
    %225 = math.exp %224 : vector<8x16xf32>
    %226 = vector.broadcast %222 : vector<8x1xf32> to vector<8x8xf32>
    %227 = arith.subf %217, %226 : vector<8x8xf32>
    %228 = math.exp %227 : vector<8x8xf32>
    %cst_78 = arith.constant dense<0.000000e+00> : vector<8xf32>
    %229 = vector.multi_reduction <add>, %225, %cst_78 [1] : vector<8x16xf32> to vector<8xf32>
    %230 = vector.shape_cast %229 : vector<8xf32> to vector<8x1xf32>
    %cst_79 = arith.constant dense<0.000000e+00> : vector<8xf32>
    %231 = vector.multi_reduction <add>, %228, %cst_79 [1] : vector<8x8xf32> to vector<8xf32>
    %232 = vector.shape_cast %231 : vector<8xf32> to vector<8x1xf32>
    %233 = arith.addf %230, %232 : vector<8x1xf32>
    %234 = tpu.reciprocal %233 {approx = true} : vector<8x1xf32> -> vector<8x1xf32>
    %235 = vector.extract_strided_slice %12 {offsets = [0, 168], sizes = [16, 8], strides = [1, 1]} : vector<16x192xf32> to vector<16x8xf32>
    %cst_80 = arith.constant dense<0.000000e+00> : vector<8x8xf32>
    %236 = tpu.matmul %225, %235, %cst_80 {dimension_numbers = #tpu.dot_dimension_numbers<[1], [0], [0], [1], [0, 0, 1, 1], [], []>} : vector<8x16xf32>, vector<16x8xf32>, vector<8x8xf32> -> vector<8x8xf32>
    %237 = vector.extract_strided_slice %13 {offsets = [0, 168], sizes = [8, 8], strides = [1, 1]} : vector<8x192xf32> to vector<8x8xf32>
    %cst_81 = arith.constant dense<0.000000e+00> : vector<8x8xf32>
    %238 = tpu.matmul %228, %237, %cst_81 {dimension_numbers = #tpu.dot_dimension_numbers<[1], [0], [0], [1], [0, 0, 1, 1], [], []>} : vector<8x8xf32>, vector<8x8xf32>, vector<8x8xf32> -> vector<8x8xf32>
    %239 = arith.addf %236, %238 : vector<8x8xf32>
    %240 = vector.broadcast %234 : vector<8x1xf32> to vector<8x8xf32>
    %241 = arith.mulf %239, %240 : vector<8x8xf32>
    %c8_82 = arith.constant 8 : index
    %c0_83 = arith.constant 0 : index
    %242 = vector.load %arg11[%c8_82, %c0_83] : memref<32x32xf32, #tpu.memory_space<vmem>>, vector<8x32xf32>
    %cst_84 = arith.constant dense<0.000000e+00> : vector<8x32xf32>
    %243 = tpu.matmul %241, %242, %cst_84 {dimension_numbers = #tpu.dot_dimension_numbers<[1], [0], [0], [1], [0, 0, 1, 1], [], []>} : vector<8x8xf32>, vector<8x32xf32>, vector<8x32xf32> -> vector<8x32xf32>
    %244 = arith.addf %207, %243 : vector<8x32xf32>
    %245 = vector.extract_strided_slice %13 {offsets = [0, 80], sizes = [8, 8], strides = [1, 1]} : vector<8x192xf32> to vector<8x8xf32>
    %246 = vector.extract_strided_slice %12 {offsets = [0, 144], sizes = [16, 8], strides = [1, 1]} : vector<16x192xf32> to vector<16x8xf32>
    %cst_85 = arith.constant dense<0.000000e+00> : vector<8x16xf32>
    %247 = tpu.matmul %245, %246, %cst_85 {dimension_numbers = #tpu.dot_dimension_numbers<[1], [1], [0], [0], [0, 0, 1, 0], [], []>} : vector<8x8xf32>, vector<16x8xf32>, vector<8x16xf32> -> vector<8x16xf32>
    %248 = vector.broadcast %15 : vector<1x16xf32> to vector<8x16xf32>
    %249 = arith.addf %247, %248 : vector<8x16xf32>
    %250 = vector.extract_strided_slice %13 {offsets = [0, 112], sizes = [8, 8], strides = [1, 1]} : vector<8x192xf32> to vector<8x8xf32>
    %251 = vector.extract_strided_slice %13 {offsets = [0, 144], sizes = [8, 8], strides = [1, 1]} : vector<8x192xf32> to vector<8x8xf32>
    %cst_86 = arith.constant dense<0.000000e+00> : vector<8x8xf32>
    %252 = tpu.matmul %250, %251, %cst_86 {dimension_numbers = #tpu.dot_dimension_numbers<[1], [1], [0], [0], [0, 0, 1, 0], [], []>} : vector<8x8xf32>, vector<8x8xf32>, vector<8x8xf32> -> vector<8x8xf32>
    %253 = vector.broadcast %17 : vector<1x8xf32> to vector<8x8xf32>
    %254 = arith.addf %252, %253 : vector<8x8xf32>
    %cst_87 = arith.constant dense<0xFF800000> : vector<8xf32>
    %255 = vector.multi_reduction <maximumf>, %249, %cst_87 [1] : vector<8x16xf32> to vector<8xf32>
    %256 = vector.shape_cast %255 : vector<8xf32> to vector<8x1xf32>
    %cst_88 = arith.constant dense<0xFF800000> : vector<8xf32>
    %257 = vector.multi_reduction <maximumf>, %254, %cst_88 [1] : vector<8x8xf32> to vector<8xf32>
    %258 = vector.shape_cast %257 : vector<8xf32> to vector<8x1xf32>
    %259 = arith.maximumf %256, %258 : vector<8x1xf32>
    %260 = vector.broadcast %259 : vector<8x1xf32> to vector<8x16xf32>
    %261 = arith.subf %249, %260 : vector<8x16xf32>
    %262 = math.exp %261 : vector<8x16xf32>
    %263 = vector.broadcast %259 : vector<8x1xf32> to vector<8x8xf32>
    %264 = arith.subf %254, %263 : vector<8x8xf32>
    %265 = math.exp %264 : vector<8x8xf32>
    %cst_89 = arith.constant dense<0.000000e+00> : vector<8xf32>
    %266 = vector.multi_reduction <add>, %262, %cst_89 [1] : vector<8x16xf32> to vector<8xf32>
    %267 = vector.shape_cast %266 : vector<8xf32> to vector<8x1xf32>
    %cst_90 = arith.constant dense<0.000000e+00> : vector<8xf32>
    %268 = vector.multi_reduction <add>, %265, %cst_90 [1] : vector<8x8xf32> to vector<8xf32>
    %269 = vector.shape_cast %268 : vector<8xf32> to vector<8x1xf32>
    %270 = arith.addf %267, %269 : vector<8x1xf32>
    %271 = tpu.reciprocal %270 {approx = true} : vector<8x1xf32> -> vector<8x1xf32>
    %272 = vector.extract_strided_slice %12 {offsets = [0, 176], sizes = [16, 8], strides = [1, 1]} : vector<16x192xf32> to vector<16x8xf32>
    %cst_91 = arith.constant dense<0.000000e+00> : vector<8x8xf32>
    %273 = tpu.matmul %262, %272, %cst_91 {dimension_numbers = #tpu.dot_dimension_numbers<[1], [0], [0], [1], [0, 0, 1, 1], [], []>} : vector<8x16xf32>, vector<16x8xf32>, vector<8x8xf32> -> vector<8x8xf32>
    %274 = vector.extract_strided_slice %13 {offsets = [0, 176], sizes = [8, 8], strides = [1, 1]} : vector<8x192xf32> to vector<8x8xf32>
    %cst_92 = arith.constant dense<0.000000e+00> : vector<8x8xf32>
    %275 = tpu.matmul %265, %274, %cst_92 {dimension_numbers = #tpu.dot_dimension_numbers<[1], [0], [0], [1], [0, 0, 1, 1], [], []>} : vector<8x8xf32>, vector<8x8xf32>, vector<8x8xf32> -> vector<8x8xf32>
    %276 = arith.addf %273, %275 : vector<8x8xf32>
    %277 = vector.broadcast %271 : vector<8x1xf32> to vector<8x8xf32>
    %278 = arith.mulf %276, %277 : vector<8x8xf32>
    %c16_93 = arith.constant 16 : index
    %c0_94 = arith.constant 0 : index
    %279 = vector.load %arg11[%c16_93, %c0_94] : memref<32x32xf32, #tpu.memory_space<vmem>>, vector<8x32xf32>
    %cst_95 = arith.constant dense<0.000000e+00> : vector<8x32xf32>
    %280 = tpu.matmul %278, %279, %cst_95 {dimension_numbers = #tpu.dot_dimension_numbers<[1], [0], [0], [1], [0, 0, 1, 1], [], []>} : vector<8x8xf32>, vector<8x32xf32>, vector<8x32xf32> -> vector<8x32xf32>
    %281 = arith.addf %244, %280 : vector<8x32xf32>
    %282 = vector.extract_strided_slice %13 {offsets = [0, 88], sizes = [8, 8], strides = [1, 1]} : vector<8x192xf32> to vector<8x8xf32>
    %283 = vector.extract_strided_slice %12 {offsets = [0, 152], sizes = [16, 8], strides = [1, 1]} : vector<16x192xf32> to vector<16x8xf32>
    %cst_96 = arith.constant dense<0.000000e+00> : vector<8x16xf32>
    %284 = tpu.matmul %282, %283, %cst_96 {dimension_numbers = #tpu.dot_dimension_numbers<[1], [1], [0], [0], [0, 0, 1, 0], [], []>} : vector<8x8xf32>, vector<16x8xf32>, vector<8x16xf32> -> vector<8x16xf32>
    %285 = vector.broadcast %15 : vector<1x16xf32> to vector<8x16xf32>
    %286 = arith.addf %284, %285 : vector<8x16xf32>
    %287 = vector.extract_strided_slice %13 {offsets = [0, 120], sizes = [8, 8], strides = [1, 1]} : vector<8x192xf32> to vector<8x8xf32>
    %288 = vector.extract_strided_slice %13 {offsets = [0, 152], sizes = [8, 8], strides = [1, 1]} : vector<8x192xf32> to vector<8x8xf32>
    %cst_97 = arith.constant dense<0.000000e+00> : vector<8x8xf32>
    %289 = tpu.matmul %287, %288, %cst_97 {dimension_numbers = #tpu.dot_dimension_numbers<[1], [1], [0], [0], [0, 0, 1, 0], [], []>} : vector<8x8xf32>, vector<8x8xf32>, vector<8x8xf32> -> vector<8x8xf32>
    %290 = vector.broadcast %17 : vector<1x8xf32> to vector<8x8xf32>
    %291 = arith.addf %289, %290 : vector<8x8xf32>
    %cst_98 = arith.constant dense<0xFF800000> : vector<8xf32>
    %292 = vector.multi_reduction <maximumf>, %286, %cst_98 [1] : vector<8x16xf32> to vector<8xf32>
    %293 = vector.shape_cast %292 : vector<8xf32> to vector<8x1xf32>
    %cst_99 = arith.constant dense<0xFF800000> : vector<8xf32>
    %294 = vector.multi_reduction <maximumf>, %291, %cst_99 [1] : vector<8x8xf32> to vector<8xf32>
    %295 = vector.shape_cast %294 : vector<8xf32> to vector<8x1xf32>
    %296 = arith.maximumf %293, %295 : vector<8x1xf32>
    %297 = vector.broadcast %296 : vector<8x1xf32> to vector<8x16xf32>
    %298 = arith.subf %286, %297 : vector<8x16xf32>
    %299 = math.exp %298 : vector<8x16xf32>
    %300 = vector.broadcast %296 : vector<8x1xf32> to vector<8x8xf32>
    %301 = arith.subf %291, %300 : vector<8x8xf32>
    %302 = math.exp %301 : vector<8x8xf32>
    %cst_100 = arith.constant dense<0.000000e+00> : vector<8xf32>
    %303 = vector.multi_reduction <add>, %299, %cst_100 [1] : vector<8x16xf32> to vector<8xf32>
    %304 = vector.shape_cast %303 : vector<8xf32> to vector<8x1xf32>
    %cst_101 = arith.constant dense<0.000000e+00> : vector<8xf32>
    %305 = vector.multi_reduction <add>, %302, %cst_101 [1] : vector<8x8xf32> to vector<8xf32>
    %306 = vector.shape_cast %305 : vector<8xf32> to vector<8x1xf32>
    %307 = arith.addf %304, %306 : vector<8x1xf32>
    %308 = tpu.reciprocal %307 {approx = true} : vector<8x1xf32> -> vector<8x1xf32>
    %309 = vector.extract_strided_slice %12 {offsets = [0, 184], sizes = [16, 8], strides = [1, 1]} : vector<16x192xf32> to vector<16x8xf32>
    %cst_102 = arith.constant dense<0.000000e+00> : vector<8x8xf32>
    %310 = tpu.matmul %299, %309, %cst_102 {dimension_numbers = #tpu.dot_dimension_numbers<[1], [0], [0], [1], [0, 0, 1, 1], [], []>} : vector<8x16xf32>, vector<16x8xf32>, vector<8x8xf32> -> vector<8x8xf32>
    %311 = vector.extract_strided_slice %13 {offsets = [0, 184], sizes = [8, 8], strides = [1, 1]} : vector<8x192xf32> to vector<8x8xf32>
    %cst_103 = arith.constant dense<0.000000e+00> : vector<8x8xf32>
    %312 = tpu.matmul %302, %311, %cst_103 {dimension_numbers = #tpu.dot_dimension_numbers<[1], [0], [0], [1], [0, 0, 1, 1], [], []>} : vector<8x8xf32>, vector<8x8xf32>, vector<8x8xf32> -> vector<8x8xf32>
    %313 = arith.addf %310, %312 : vector<8x8xf32>
    %314 = vector.broadcast %308 : vector<8x1xf32> to vector<8x8xf32>
    %315 = arith.mulf %313, %314 : vector<8x8xf32>
    %c24_104 = arith.constant 24 : index
    %c0_105 = arith.constant 0 : index
    %316 = vector.load %arg11[%c24_104, %c0_105] : memref<32x32xf32, #tpu.memory_space<vmem>>, vector<8x32xf32>
    %cst_106 = arith.constant dense<0.000000e+00> : vector<8x32xf32>
    %317 = tpu.matmul %315, %316, %cst_106 {dimension_numbers = #tpu.dot_dimension_numbers<[1], [0], [0], [1], [0, 0, 1, 1], [], []>} : vector<8x8xf32>, vector<8x32xf32>, vector<8x32xf32> -> vector<8x32xf32>
    %318 = arith.addf %281, %317 : vector<8x32xf32>
    %c0_107 = arith.constant 0 : index
    %c0_108 = arith.constant 0 : index
    %319 = vector.load %arg12[%c0_107, %c0_108] : memref<1x32xf32, #tpu.memory_space<vmem>>, vector<1x32xf32>
    %320 = vector.broadcast %319 : vector<1x32xf32> to vector<8x32xf32>
    %321 = arith.addf %318, %320 : vector<8x32xf32>
    %c0_109 = arith.constant 0 : index
    %c0_110 = arith.constant 0 : index
    %322 = vector.load %arg13[%c0_109, %c0_110] : memref<32x32xf32, #tpu.memory_space<vmem>>, vector<16x32xf32>
    tpu.vector_store %arg13[%c0_109, %c0_110], %169 {strides = array<i32>} : memref<32x32xf32, #tpu.memory_space<vmem>>, vector<16x32xf32>,
    %c0_111 = arith.constant 0 : index
    %c0_112 = arith.constant 0 : index
    %323 = vector.load %arg14[%c0_111, %c0_112] : memref<16x32xf32, #tpu.memory_space<vmem>>, vector<8x32xf32>
    tpu.vector_store %arg14[%c0_111, %c0_112], %321 {strides = array<i32>} : memref<16x32xf32, #tpu.memory_space<vmem>>, vector<8x32xf32>,
    %324 = vector.extract_strided_slice %7 {offsets = [16, 0], sizes = [16, 192], strides = [1, 1]} : vector<32x192xf32> to vector<16x192xf32>
    %325 = vector.extract_strided_slice %11 {offsets = [8, 0], sizes = [8, 192], strides = [1, 1]} : vector<16x192xf32> to vector<8x192xf32>
    %c1 = arith.constant 1 : index
    %c0_113 = arith.constant 0 : index
    %c0_114 = arith.constant 0 : index
    %326 = vector.load %arg3[%c1, %c0_113, %c0_114] : memref<2x1x16xf32, #tpu.memory_space<vmem>>, vector<1x1x16xf32>
    %327 = vector.shape_cast %326 : vector<1x1x16xf32> to vector<1x16xf32>
    %c1_115 = arith.constant 1 : index
    %c0_116 = arith.constant 0 : index
    %c0_117 = arith.constant 0 : index
    %328 = vector.load %arg4[%c1_115, %c0_116, %c0_117] : memref<2x1x8xf32, #tpu.memory_space<vmem>>, vector<1x1x8xf32>
    %329 = vector.shape_cast %328 : vector<1x1x8xf32> to vector<1x8xf32>
    %cst_118 = arith.constant 0.000000e+00 : f32
    %330 = vector.broadcast %cst_118 : f32 to vector<16x32xf32>
    %331 = vector.extract_strided_slice %324 {offsets = [0, 0], sizes = [16, 8], strides = [1, 1]} : vector<16x192xf32> to vector<16x8xf32>
    %332 = vector.extract_strided_slice %324 {offsets = [0, 32], sizes = [16, 8], strides = [1, 1]} : vector<16x192xf32> to vector<16x8xf32>
    %cst_119 = arith.constant dense<0.000000e+00> : vector<16x16xf32>
    %333 = tpu.matmul %331, %332, %cst_119 {dimension_numbers = #tpu.dot_dimension_numbers<[1], [1], [0], [0], [0, 0, 1, 0], [], []>} : vector<16x8xf32>, vector<16x8xf32>, vector<16x16xf32> -> vector<16x16xf32>
    %334 = vector.broadcast %327 : vector<1x16xf32> to vector<16x16xf32>
    %335 = arith.addf %333, %334 : vector<16x16xf32>
    %336 = vector.extract_strided_slice %324 {offsets = [0, 96], sizes = [16, 8], strides = [1, 1]} : vector<16x192xf32> to vector<16x8xf32>
    %337 = vector.extract_strided_slice %325 {offsets = [0, 0], sizes = [8, 8], strides = [1, 1]} : vector<8x192xf32> to vector<8x8xf32>
    %cst_120 = arith.constant dense<0.000000e+00> : vector<16x8xf32>
    %338 = tpu.matmul %336, %337, %cst_120 {dimension_numbers = #tpu.dot_dimension_numbers<[1], [1], [0], [0], [0, 0, 1, 0], [], []>} : vector<16x8xf32>, vector<8x8xf32>, vector<16x8xf32> -> vector<16x8xf32>
    %339 = vector.broadcast %329 : vector<1x8xf32> to vector<16x8xf32>
    %340 = arith.addf %338, %339 : vector<16x8xf32>
    %cst_121 = arith.constant dense<0xFF800000> : vector<16xf32>
    %341 = vector.multi_reduction <maximumf>, %335, %cst_121 [1] : vector<16x16xf32> to vector<16xf32>
    %342 = vector.shape_cast %341 : vector<16xf32> to vector<16x1xf32>
    %cst_122 = arith.constant dense<0xFF800000> : vector<16xf32>
    %343 = vector.multi_reduction <maximumf>, %340, %cst_122 [1] : vector<16x8xf32> to vector<16xf32>
    %344 = vector.shape_cast %343 : vector<16xf32> to vector<16x1xf32>
    %345 = arith.maximumf %342, %344 : vector<16x1xf32>
    %346 = vector.broadcast %345 : vector<16x1xf32> to vector<16x16xf32>
    %347 = arith.subf %335, %346 : vector<16x16xf32>
    %348 = math.exp %347 : vector<16x16xf32>
    %349 = vector.broadcast %345 : vector<16x1xf32> to vector<16x8xf32>
    %350 = arith.subf %340, %349 : vector<16x8xf32>
    %351 = math.exp %350 : vector<16x8xf32>
    %cst_123 = arith.constant dense<0.000000e+00> : vector<16xf32>
    %352 = vector.multi_reduction <add>, %348, %cst_123 [1] : vector<16x16xf32> to vector<16xf32>
    %353 = vector.shape_cast %352 : vector<16xf32> to vector<16x1xf32>
    %cst_124 = arith.constant dense<0.000000e+00> : vector<16xf32>
    %354 = vector.multi_reduction <add>, %351, %cst_124 [1] : vector<16x8xf32> to vector<16xf32>
    %355 = vector.shape_cast %354 : vector<16xf32> to vector<16x1xf32>
    %356 = arith.addf %353, %355 : vector<16x1xf32>
    %357 = tpu.reciprocal %356 {approx = true} : vector<16x1xf32> -> vector<16x1xf32>
    %358 = vector.extract_strided_slice %324 {offsets = [0, 64], sizes = [16, 8], strides = [1, 1]} : vector<16x192xf32> to vector<16x8xf32>
    %cst_125 = arith.constant dense<0.000000e+00> : vector<16x8xf32>
    %359 = tpu.matmul %348, %358, %cst_125 {dimension_numbers = #tpu.dot_dimension_numbers<[1], [0], [0], [1], [0, 0, 1, 1], [], []>} : vector<16x16xf32>, vector<16x8xf32>, vector<16x8xf32> -> vector<16x8xf32>
    %360 = vector.extract_strided_slice %325 {offsets = [0, 32], sizes = [8, 8], strides = [1, 1]} : vector<8x192xf32> to vector<8x8xf32>
    %cst_126 = arith.constant dense<0.000000e+00> : vector<16x8xf32>
    %361 = tpu.matmul %351, %360, %cst_126 {dimension_numbers = #tpu.dot_dimension_numbers<[1], [0], [0], [1], [0, 0, 1, 1], [], []>} : vector<16x8xf32>, vector<8x8xf32>, vector<16x8xf32> -> vector<16x8xf32>
    %362 = arith.addf %359, %361 : vector<16x8xf32>
    %363 = vector.broadcast %357 : vector<16x1xf32> to vector<16x8xf32>
    %364 = arith.mulf %362, %363 : vector<16x8xf32>
    %c0_127 = arith.constant 0 : index
    %c0_128 = arith.constant 0 : index
    %365 = vector.load %arg9[%c0_127, %c0_128] : memref<32x32xf32, #tpu.memory_space<vmem>>, vector<8x32xf32>
    %cst_129 = arith.constant dense<0.000000e+00> : vector<16x32xf32>
    %366 = tpu.matmul %364, %365, %cst_129 {dimension_numbers = #tpu.dot_dimension_numbers<[1], [0], [0], [1], [0, 0, 1, 1], [], []>} : vector<16x8xf32>, vector<8x32xf32>, vector<16x32xf32> -> vector<16x32xf32>
    %367 = arith.addf %330, %366 : vector<16x32xf32>
    %368 = vector.extract_strided_slice %324 {offsets = [0, 8], sizes = [16, 8], strides = [1, 1]} : vector<16x192xf32> to vector<16x8xf32>
    %369 = vector.extract_strided_slice %324 {offsets = [0, 40], sizes = [16, 8], strides = [1, 1]} : vector<16x192xf32> to vector<16x8xf32>
    %cst_130 = arith.constant dense<0.000000e+00> : vector<16x16xf32>
    %370 = tpu.matmul %368, %369, %cst_130 {dimension_numbers = #tpu.dot_dimension_numbers<[1], [1], [0], [0], [0, 0, 1, 0], [], []>} : vector<16x8xf32>, vector<16x8xf32>, vector<16x16xf32> -> vector<16x16xf32>
    %371 = vector.broadcast %327 : vector<1x16xf32> to vector<16x16xf32>
    %372 = arith.addf %370, %371 : vector<16x16xf32>
    %373 = vector.extract_strided_slice %324 {offsets = [0, 104], sizes = [16, 8], strides = [1, 1]} : vector<16x192xf32> to vector<16x8xf32>
    %374 = vector.extract_strided_slice %325 {offsets = [0, 8], sizes = [8, 8], strides = [1, 1]} : vector<8x192xf32> to vector<8x8xf32>
    %cst_131 = arith.constant dense<0.000000e+00> : vector<16x8xf32>
    %375 = tpu.matmul %373, %374, %cst_131 {dimension_numbers = #tpu.dot_dimension_numbers<[1], [1], [0], [0], [0, 0, 1, 0], [], []>} : vector<16x8xf32>, vector<8x8xf32>, vector<16x8xf32> -> vector<16x8xf32>
    %376 = vector.broadcast %329 : vector<1x8xf32> to vector<16x8xf32>
    %377 = arith.addf %375, %376 : vector<16x8xf32>
    %cst_132 = arith.constant dense<0xFF800000> : vector<16xf32>
    %378 = vector.multi_reduction <maximumf>, %372, %cst_132 [1] : vector<16x16xf32> to vector<16xf32>
    %379 = vector.shape_cast %378 : vector<16xf32> to vector<16x1xf32>
    %cst_133 = arith.constant dense<0xFF800000> : vector<16xf32>
    %380 = vector.multi_reduction <maximumf>, %377, %cst_133 [1] : vector<16x8xf32> to vector<16xf32>
    %381 = vector.shape_cast %380 : vector<16xf32> to vector<16x1xf32>
    %382 = arith.maximumf %379, %381 : vector<16x1xf32>
    %383 = vector.broadcast %382 : vector<16x1xf32> to vector<16x16xf32>
    %384 = arith.subf %372, %383 : vector<16x16xf32>
    %385 = math.exp %384 : vector<16x16xf32>
    %386 = vector.broadcast %382 : vector<16x1xf32> to vector<16x8xf32>
    %387 = arith.subf %377, %386 : vector<16x8xf32>
    %388 = math.exp %387 : vector<16x8xf32>
    %cst_134 = arith.constant dense<0.000000e+00> : vector<16xf32>
    %389 = vector.multi_reduction <add>, %385, %cst_134 [1] : vector<16x16xf32> to vector<16xf32>
    %390 = vector.shape_cast %389 : vector<16xf32> to vector<16x1xf32>
    %cst_135 = arith.constant dense<0.000000e+00> : vector<16xf32>
    %391 = vector.multi_reduction <add>, %388, %cst_135 [1] : vector<16x8xf32> to vector<16xf32>
    %392 = vector.shape_cast %391 : vector<16xf32> to vector<16x1xf32>
    %393 = arith.addf %390, %392 : vector<16x1xf32>
    %394 = tpu.reciprocal %393 {approx = true} : vector<16x1xf32> -> vector<16x1xf32>
    %395 = vector.extract_strided_slice %324 {offsets = [0, 72], sizes = [16, 8], strides = [1, 1]} : vector<16x192xf32> to vector<16x8xf32>
    %cst_136 = arith.constant dense<0.000000e+00> : vector<16x8xf32>
    %396 = tpu.matmul %385, %395, %cst_136 {dimension_numbers = #tpu.dot_dimension_numbers<[1], [0], [0], [1], [0, 0, 1, 1], [], []>} : vector<16x16xf32>, vector<16x8xf32>, vector<16x8xf32> -> vector<16x8xf32>
    %397 = vector.extract_strided_slice %325 {offsets = [0, 40], sizes = [8, 8], strides = [1, 1]} : vector<8x192xf32> to vector<8x8xf32>
    %cst_137 = arith.constant dense<0.000000e+00> : vector<16x8xf32>
    %398 = tpu.matmul %388, %397, %cst_137 {dimension_numbers = #tpu.dot_dimension_numbers<[1], [0], [0], [1], [0, 0, 1, 1], [], []>} : vector<16x8xf32>, vector<8x8xf32>, vector<16x8xf32> -> vector<16x8xf32>
    %399 = arith.addf %396, %398 : vector<16x8xf32>
    %400 = vector.broadcast %394 : vector<16x1xf32> to vector<16x8xf32>
    %401 = arith.mulf %399, %400 : vector<16x8xf32>
    %c8_138 = arith.constant 8 : index
    %c0_139 = arith.constant 0 : index
    %402 = vector.load %arg9[%c8_138, %c0_139] : memref<32x32xf32, #tpu.memory_space<vmem>>, vector<8x32xf32>
    %cst_140 = arith.constant dense<0.000000e+00> : vector<16x32xf32>
    %403 = tpu.matmul %401, %402, %cst_140 {dimension_numbers = #tpu.dot_dimension_numbers<[1], [0], [0], [1], [0, 0, 1, 1], [], []>} : vector<16x8xf32>, vector<8x32xf32>, vector<16x32xf32> -> vector<16x32xf32>
    %404 = arith.addf %367, %403 : vector<16x32xf32>
    %405 = vector.extract_strided_slice %324 {offsets = [0, 16], sizes = [16, 8], strides = [1, 1]} : vector<16x192xf32> to vector<16x8xf32>
    %406 = vector.extract_strided_slice %324 {offsets = [0, 48], sizes = [16, 8], strides = [1, 1]} : vector<16x192xf32> to vector<16x8xf32>
    %cst_141 = arith.constant dense<0.000000e+00> : vector<16x16xf32>
    %407 = tpu.matmul %405, %406, %cst_141 {dimension_numbers = #tpu.dot_dimension_numbers<[1], [1], [0], [0], [0, 0, 1, 0], [], []>} : vector<16x8xf32>, vector<16x8xf32>, vector<16x16xf32> -> vector<16x16xf32>
    %408 = vector.broadcast %327 : vector<1x16xf32> to vector<16x16xf32>
    %409 = arith.addf %407, %408 : vector<16x16xf32>
    %410 = vector.extract_strided_slice %324 {offsets = [0, 112], sizes = [16, 8], strides = [1, 1]} : vector<16x192xf32> to vector<16x8xf32>
    %411 = vector.extract_strided_slice %325 {offsets = [0, 16], sizes = [8, 8], strides = [1, 1]} : vector<8x192xf32> to vector<8x8xf32>
    %cst_142 = arith.constant dense<0.000000e+00> : vector<16x8xf32>
    %412 = tpu.matmul %410, %411, %cst_142 {dimension_numbers = #tpu.dot_dimension_numbers<[1], [1], [0], [0], [0, 0, 1, 0], [], []>} : vector<16x8xf32>, vector<8x8xf32>, vector<16x8xf32> -> vector<16x8xf32>
    %413 = vector.broadcast %329 : vector<1x8xf32> to vector<16x8xf32>
    %414 = arith.addf %412, %413 : vector<16x8xf32>
    %cst_143 = arith.constant dense<0xFF800000> : vector<16xf32>
    %415 = vector.multi_reduction <maximumf>, %409, %cst_143 [1] : vector<16x16xf32> to vector<16xf32>
    %416 = vector.shape_cast %415 : vector<16xf32> to vector<16x1xf32>
    %cst_144 = arith.constant dense<0xFF800000> : vector<16xf32>
    %417 = vector.multi_reduction <maximumf>, %414, %cst_144 [1] : vector<16x8xf32> to vector<16xf32>
    %418 = vector.shape_cast %417 : vector<16xf32> to vector<16x1xf32>
    %419 = arith.maximumf %416, %418 : vector<16x1xf32>
    %420 = vector.broadcast %419 : vector<16x1xf32> to vector<16x16xf32>
    %421 = arith.subf %409, %420 : vector<16x16xf32>
    %422 = math.exp %421 : vector<16x16xf32>
    %423 = vector.broadcast %419 : vector<16x1xf32> to vector<16x8xf32>
    %424 = arith.subf %414, %423 : vector<16x8xf32>
    %425 = math.exp %424 : vector<16x8xf32>
    %cst_145 = arith.constant dense<0.000000e+00> : vector<16xf32>
    %426 = vector.multi_reduction <add>, %422, %cst_145 [1] : vector<16x16xf32> to vector<16xf32>
    %427 = vector.shape_cast %426 : vector<16xf32> to vector<16x1xf32>
    %cst_146 = arith.constant dense<0.000000e+00> : vector<16xf32>
    %428 = vector.multi_reduction <add>, %425, %cst_146 [1] : vector<16x8xf32> to vector<16xf32>
    %429 = vector.shape_cast %428 : vector<16xf32> to vector<16x1xf32>
    %430 = arith.addf %427, %429 : vector<16x1xf32>
    %431 = tpu.reciprocal %430 {approx = true} : vector<16x1xf32> -> vector<16x1xf32>
    %432 = vector.extract_strided_slice %324 {offsets = [0, 80], sizes = [16, 8], strides = [1, 1]} : vector<16x192xf32> to vector<16x8xf32>
    %cst_147 = arith.constant dense<0.000000e+00> : vector<16x8xf32>
    %433 = tpu.matmul %422, %432, %cst_147 {dimension_numbers = #tpu.dot_dimension_numbers<[1], [0], [0], [1], [0, 0, 1, 1], [], []>} : vector<16x16xf32>, vector<16x8xf32>, vector<16x8xf32> -> vector<16x8xf32>
    %434 = vector.extract_strided_slice %325 {offsets = [0, 48], sizes = [8, 8], strides = [1, 1]} : vector<8x192xf32> to vector<8x8xf32>
    %cst_148 = arith.constant dense<0.000000e+00> : vector<16x8xf32>
    %435 = tpu.matmul %425, %434, %cst_148 {dimension_numbers = #tpu.dot_dimension_numbers<[1], [0], [0], [1], [0, 0, 1, 1], [], []>} : vector<16x8xf32>, vector<8x8xf32>, vector<16x8xf32> -> vector<16x8xf32>
    %436 = arith.addf %433, %435 : vector<16x8xf32>
    %437 = vector.broadcast %431 : vector<16x1xf32> to vector<16x8xf32>
    %438 = arith.mulf %436, %437 : vector<16x8xf32>
    %c16_149 = arith.constant 16 : index
    %c0_150 = arith.constant 0 : index
    %439 = vector.load %arg9[%c16_149, %c0_150] : memref<32x32xf32, #tpu.memory_space<vmem>>, vector<8x32xf32>
    %cst_151 = arith.constant dense<0.000000e+00> : vector<16x32xf32>
    %440 = tpu.matmul %438, %439, %cst_151 {dimension_numbers = #tpu.dot_dimension_numbers<[1], [0], [0], [1], [0, 0, 1, 1], [], []>} : vector<16x8xf32>, vector<8x32xf32>, vector<16x32xf32> -> vector<16x32xf32>
    %441 = arith.addf %404, %440 : vector<16x32xf32>
    %442 = vector.extract_strided_slice %324 {offsets = [0, 24], sizes = [16, 8], strides = [1, 1]} : vector<16x192xf32> to vector<16x8xf32>
    %443 = vector.extract_strided_slice %324 {offsets = [0, 56], sizes = [16, 8], strides = [1, 1]} : vector<16x192xf32> to vector<16x8xf32>
    %cst_152 = arith.constant dense<0.000000e+00> : vector<16x16xf32>
    %444 = tpu.matmul %442, %443, %cst_152 {dimension_numbers = #tpu.dot_dimension_numbers<[1], [1], [0], [0], [0, 0, 1, 0], [], []>} : vector<16x8xf32>, vector<16x8xf32>, vector<16x16xf32> -> vector<16x16xf32>
    %445 = vector.broadcast %327 : vector<1x16xf32> to vector<16x16xf32>
    %446 = arith.addf %444, %445 : vector<16x16xf32>
    %447 = vector.extract_strided_slice %324 {offsets = [0, 120], sizes = [16, 8], strides = [1, 1]} : vector<16x192xf32> to vector<16x8xf32>
    %448 = vector.extract_strided_slice %325 {offsets = [0, 24], sizes = [8, 8], strides = [1, 1]} : vector<8x192xf32> to vector<8x8xf32>
    %cst_153 = arith.constant dense<0.000000e+00> : vector<16x8xf32>
    %449 = tpu.matmul %447, %448, %cst_153 {dimension_numbers = #tpu.dot_dimension_numbers<[1], [1], [0], [0], [0, 0, 1, 0], [], []>} : vector<16x8xf32>, vector<8x8xf32>, vector<16x8xf32> -> vector<16x8xf32>
    %450 = vector.broadcast %329 : vector<1x8xf32> to vector<16x8xf32>
    %451 = arith.addf %449, %450 : vector<16x8xf32>
    %cst_154 = arith.constant dense<0xFF800000> : vector<16xf32>
    %452 = vector.multi_reduction <maximumf>, %446, %cst_154 [1] : vector<16x16xf32> to vector<16xf32>
    %453 = vector.shape_cast %452 : vector<16xf32> to vector<16x1xf32>
    %cst_155 = arith.constant dense<0xFF800000> : vector<16xf32>
    %454 = vector.multi_reduction <maximumf>, %451, %cst_155 [1] : vector<16x8xf32> to vector<16xf32>
    %455 = vector.shape_cast %454 : vector<16xf32> to vector<16x1xf32>
    %456 = arith.maximumf %453, %455 : vector<16x1xf32>
    %457 = vector.broadcast %456 : vector<16x1xf32> to vector<16x16xf32>
    %458 = arith.subf %446, %457 : vector<16x16xf32>
    %459 = math.exp %458 : vector<16x16xf32>
    %460 = vector.broadcast %456 : vector<16x1xf32> to vector<16x8xf32>
    %461 = arith.subf %451, %460 : vector<16x8xf32>
    %462 = math.exp %461 : vector<16x8xf32>
    %cst_156 = arith.constant dense<0.000000e+00> : vector<16xf32>
    %463 = vector.multi_reduction <add>, %459, %cst_156 [1] : vector<16x16xf32> to vector<16xf32>
    %464 = vector.shape_cast %463 : vector<16xf32> to vector<16x1xf32>
    %cst_157 = arith.constant dense<0.000000e+00> : vector<16xf32>
    %465 = vector.multi_reduction <add>, %462, %cst_157 [1] : vector<16x8xf32> to vector<16xf32>
    %466 = vector.shape_cast %465 : vector<16xf32> to vector<16x1xf32>
    %467 = arith.addf %464, %466 : vector<16x1xf32>
    %468 = tpu.reciprocal %467 {approx = true} : vector<16x1xf32> -> vector<16x1xf32>
    %469 = vector.extract_strided_slice %324 {offsets = [0, 88], sizes = [16, 8], strides = [1, 1]} : vector<16x192xf32> to vector<16x8xf32>
    %cst_158 = arith.constant dense<0.000000e+00> : vector<16x8xf32>
    %470 = tpu.matmul %459, %469, %cst_158 {dimension_numbers = #tpu.dot_dimension_numbers<[1], [0], [0], [1], [0, 0, 1, 1], [], []>} : vector<16x16xf32>, vector<16x8xf32>, vector<16x8xf32> -> vector<16x8xf32>
    %471 = vector.extract_strided_slice %325 {offsets = [0, 56], sizes = [8, 8], strides = [1, 1]} : vector<8x192xf32> to vector<8x8xf32>
    %cst_159 = arith.constant dense<0.000000e+00> : vector<16x8xf32>
    %472 = tpu.matmul %462, %471, %cst_159 {dimension_numbers = #tpu.dot_dimension_numbers<[1], [0], [0], [1], [0, 0, 1, 1], [], []>} : vector<16x8xf32>, vector<8x8xf32>, vector<16x8xf32> -> vector<16x8xf32>
    %473 = arith.addf %470, %472 : vector<16x8xf32>
    %474 = vector.broadcast %468 : vector<16x1xf32> to vector<16x8xf32>
    %475 = arith.mulf %473, %474 : vector<16x8xf32>
    %c24_160 = arith.constant 24 : index
    %c0_161 = arith.constant 0 : index
    %476 = vector.load %arg9[%c24_160, %c0_161] : memref<32x32xf32, #tpu.memory_space<vmem>>, vector<8x32xf32>
    %cst_162 = arith.constant dense<0.000000e+00> : vector<16x32xf32>
    %477 = tpu.matmul %475, %476, %cst_162 {dimension_numbers = #tpu.dot_dimension_numbers<[1], [0], [0], [1], [0, 0, 1, 1], [], []>} : vector<16x8xf32>, vector<8x32xf32>, vector<16x32xf32> -> vector<16x32xf32>
    %478 = arith.addf %441, %477 : vector<16x32xf32>
    %c0_163 = arith.constant 0 : index
    %c0_164 = arith.constant 0 : index
    %479 = vector.load %arg10[%c0_163, %c0_164] : memref<1x32xf32, #tpu.memory_space<vmem>>, vector<1x32xf32>
    %480 = vector.broadcast %479 : vector<1x32xf32> to vector<16x32xf32>
    %481 = arith.addf %478, %480 : vector<16x32xf32>
    %cst_165 = arith.constant 0.000000e+00 : f32
    %482 = vector.broadcast %cst_165 : f32 to vector<8x32xf32>
    %483 = vector.extract_strided_slice %325 {offsets = [0, 64], sizes = [8, 8], strides = [1, 1]} : vector<8x192xf32> to vector<8x8xf32>
    %484 = vector.extract_strided_slice %324 {offsets = [0, 128], sizes = [16, 8], strides = [1, 1]} : vector<16x192xf32> to vector<16x8xf32>
    %cst_166 = arith.constant dense<0.000000e+00> : vector<8x16xf32>
    %485 = tpu.matmul %483, %484, %cst_166 {dimension_numbers = #tpu.dot_dimension_numbers<[1], [1], [0], [0], [0, 0, 1, 0], [], []>} : vector<8x8xf32>, vector<16x8xf32>, vector<8x16xf32> -> vector<8x16xf32>
    %486 = vector.broadcast %327 : vector<1x16xf32> to vector<8x16xf32>
    %487 = arith.addf %485, %486 : vector<8x16xf32>
    %488 = vector.extract_strided_slice %325 {offsets = [0, 96], sizes = [8, 8], strides = [1, 1]} : vector<8x192xf32> to vector<8x8xf32>
    %489 = vector.extract_strided_slice %325 {offsets = [0, 128], sizes = [8, 8], strides = [1, 1]} : vector<8x192xf32> to vector<8x8xf32>
    %cst_167 = arith.constant dense<0.000000e+00> : vector<8x8xf32>
    %490 = tpu.matmul %488, %489, %cst_167 {dimension_numbers = #tpu.dot_dimension_numbers<[1], [1], [0], [0], [0, 0, 1, 0], [], []>} : vector<8x8xf32>, vector<8x8xf32>, vector<8x8xf32> -> vector<8x8xf32>
    %491 = vector.broadcast %329 : vector<1x8xf32> to vector<8x8xf32>
    %492 = arith.addf %490, %491 : vector<8x8xf32>
    %cst_168 = arith.constant dense<0xFF800000> : vector<8xf32>
    %493 = vector.multi_reduction <maximumf>, %487, %cst_168 [1] : vector<8x16xf32> to vector<8xf32>
    %494 = vector.shape_cast %493 : vector<8xf32> to vector<8x1xf32>
    %cst_169 = arith.constant dense<0xFF800000> : vector<8xf32>
    %495 = vector.multi_reduction <maximumf>, %492, %cst_169 [1] : vector<8x8xf32> to vector<8xf32>
    %496 = vector.shape_cast %495 : vector<8xf32> to vector<8x1xf32>
    %497 = arith.maximumf %494, %496 : vector<8x1xf32>
    %498 = vector.broadcast %497 : vector<8x1xf32> to vector<8x16xf32>
    %499 = arith.subf %487, %498 : vector<8x16xf32>
    %500 = math.exp %499 : vector<8x16xf32>
    %501 = vector.broadcast %497 : vector<8x1xf32> to vector<8x8xf32>
    %502 = arith.subf %492, %501 : vector<8x8xf32>
    %503 = math.exp %502 : vector<8x8xf32>
    %cst_170 = arith.constant dense<0.000000e+00> : vector<8xf32>
    %504 = vector.multi_reduction <add>, %500, %cst_170 [1] : vector<8x16xf32> to vector<8xf32>
    %505 = vector.shape_cast %504 : vector<8xf32> to vector<8x1xf32>
    %cst_171 = arith.constant dense<0.000000e+00> : vector<8xf32>
    %506 = vector.multi_reduction <add>, %503, %cst_171 [1] : vector<8x8xf32> to vector<8xf32>
    %507 = vector.shape_cast %506 : vector<8xf32> to vector<8x1xf32>
    %508 = arith.addf %505, %507 : vector<8x1xf32>
    %509 = tpu.reciprocal %508 {approx = true} : vector<8x1xf32> -> vector<8x1xf32>
    %510 = vector.extract_strided_slice %324 {offsets = [0, 160], sizes = [16, 8], strides = [1, 1]} : vector<16x192xf32> to vector<16x8xf32>
    %cst_172 = arith.constant dense<0.000000e+00> : vector<8x8xf32>
    %511 = tpu.matmul %500, %510, %cst_172 {dimension_numbers = #tpu.dot_dimension_numbers<[1], [0], [0], [1], [0, 0, 1, 1], [], []>} : vector<8x16xf32>, vector<16x8xf32>, vector<8x8xf32> -> vector<8x8xf32>
    %512 = vector.extract_strided_slice %325 {offsets = [0, 160], sizes = [8, 8], strides = [1, 1]} : vector<8x192xf32> to vector<8x8xf32>
    %cst_173 = arith.constant dense<0.000000e+00> : vector<8x8xf32>
    %513 = tpu.matmul %503, %512, %cst_173 {dimension_numbers = #tpu.dot_dimension_numbers<[1], [0], [0], [1], [0, 0, 1, 1], [], []>} : vector<8x8xf32>, vector<8x8xf32>, vector<8x8xf32> -> vector<8x8xf32>
    %514 = arith.addf %511, %513 : vector<8x8xf32>
    %515 = vector.broadcast %509 : vector<8x1xf32> to vector<8x8xf32>
    %516 = arith.mulf %514, %515 : vector<8x8xf32>
    %c0_174 = arith.constant 0 : index
    %c0_175 = arith.constant 0 : index
    %517 = vector.load %arg11[%c0_174, %c0_175] : memref<32x32xf32, #tpu.memory_space<vmem>>, vector<8x32xf32>
    %cst_176 = arith.constant dense<0.000000e+00> : vector<8x32xf32>
    %518 = tpu.matmul %516, %517, %cst_176 {dimension_numbers = #tpu.dot_dimension_numbers<[1], [0], [0], [1], [0, 0, 1, 1], [], []>} : vector<8x8xf32>, vector<8x32xf32>, vector<8x32xf32> -> vector<8x32xf32>
    %519 = arith.addf %482, %518 : vector<8x32xf32>
    %520 = vector.extract_strided_slice %325 {offsets = [0, 72], sizes = [8, 8], strides = [1, 1]} : vector<8x192xf32> to vector<8x8xf32>
    %521 = vector.extract_strided_slice %324 {offsets = [0, 136], sizes = [16, 8], strides = [1, 1]} : vector<16x192xf32> to vector<16x8xf32>
    %cst_177 = arith.constant dense<0.000000e+00> : vector<8x16xf32>
    %522 = tpu.matmul %520, %521, %cst_177 {dimension_numbers = #tpu.dot_dimension_numbers<[1], [1], [0], [0], [0, 0, 1, 0], [], []>} : vector<8x8xf32>, vector<16x8xf32>, vector<8x16xf32> -> vector<8x16xf32>
    %523 = vector.broadcast %327 : vector<1x16xf32> to vector<8x16xf32>
    %524 = arith.addf %522, %523 : vector<8x16xf32>
    %525 = vector.extract_strided_slice %325 {offsets = [0, 104], sizes = [8, 8], strides = [1, 1]} : vector<8x192xf32> to vector<8x8xf32>
    %526 = vector.extract_strided_slice %325 {offsets = [0, 136], sizes = [8, 8], strides = [1, 1]} : vector<8x192xf32> to vector<8x8xf32>
    %cst_178 = arith.constant dense<0.000000e+00> : vector<8x8xf32>
    %527 = tpu.matmul %525, %526, %cst_178 {dimension_numbers = #tpu.dot_dimension_numbers<[1], [1], [0], [0], [0, 0, 1, 0], [], []>} : vector<8x8xf32>, vector<8x8xf32>, vector<8x8xf32> -> vector<8x8xf32>
    %528 = vector.broadcast %329 : vector<1x8xf32> to vector<8x8xf32>
    %529 = arith.addf %527, %528 : vector<8x8xf32>
    %cst_179 = arith.constant dense<0xFF800000> : vector<8xf32>
    %530 = vector.multi_reduction <maximumf>, %524, %cst_179 [1] : vector<8x16xf32> to vector<8xf32>
    %531 = vector.shape_cast %530 : vector<8xf32> to vector<8x1xf32>
    %cst_180 = arith.constant dense<0xFF800000> : vector<8xf32>
    %532 = vector.multi_reduction <maximumf>, %529, %cst_180 [1] : vector<8x8xf32> to vector<8xf32>
    %533 = vector.shape_cast %532 : vector<8xf32> to vector<8x1xf32>
    %534 = arith.maximumf %531, %533 : vector<8x1xf32>
    %535 = vector.broadcast %534 : vector<8x1xf32> to vector<8x16xf32>
    %536 = arith.subf %524, %535 : vector<8x16xf32>
    %537 = math.exp %536 : vector<8x16xf32>
    %538 = vector.broadcast %534 : vector<8x1xf32> to vector<8x8xf32>
    %539 = arith.subf %529, %538 : vector<8x8xf32>
    %540 = math.exp %539 : vector<8x8xf32>
    %cst_181 = arith.constant dense<0.000000e+00> : vector<8xf32>
    %541 = vector.multi_reduction <add>, %537, %cst_181 [1] : vector<8x16xf32> to vector<8xf32>
    %542 = vector.shape_cast %541 : vector<8xf32> to vector<8x1xf32>
    %cst_182 = arith.constant dense<0.000000e+00> : vector<8xf32>
    %543 = vector.multi_reduction <add>, %540, %cst_182 [1] : vector<8x8xf32> to vector<8xf32>
    %544 = vector.shape_cast %543 : vector<8xf32> to vector<8x1xf32>
    %545 = arith.addf %542, %544 : vector<8x1xf32>
    %546 = tpu.reciprocal %545 {approx = true} : vector<8x1xf32> -> vector<8x1xf32>
    %547 = vector.extract_strided_slice %324 {offsets = [0, 168], sizes = [16, 8], strides = [1, 1]} : vector<16x192xf32> to vector<16x8xf32>
    %cst_183 = arith.constant dense<0.000000e+00> : vector<8x8xf32>
    %548 = tpu.matmul %537, %547, %cst_183 {dimension_numbers = #tpu.dot_dimension_numbers<[1], [0], [0], [1], [0, 0, 1, 1], [], []>} : vector<8x16xf32>, vector<16x8xf32>, vector<8x8xf32> -> vector<8x8xf32>
    %549 = vector.extract_strided_slice %325 {offsets = [0, 168], sizes = [8, 8], strides = [1, 1]} : vector<8x192xf32> to vector<8x8xf32>
    %cst_184 = arith.constant dense<0.000000e+00> : vector<8x8xf32>
    %550 = tpu.matmul %540, %549, %cst_184 {dimension_numbers = #tpu.dot_dimension_numbers<[1], [0], [0], [1], [0, 0, 1, 1], [], []>} : vector<8x8xf32>, vector<8x8xf32>, vector<8x8xf32> -> vector<8x8xf32>
    %551 = arith.addf %548, %550 : vector<8x8xf32>
    %552 = vector.broadcast %546 : vector<8x1xf32> to vector<8x8xf32>
    %553 = arith.mulf %551, %552 : vector<8x8xf32>
    %c8_185 = arith.constant 8 : index
    %c0_186 = arith.constant 0 : index
    %554 = vector.load %arg11[%c8_185, %c0_186] : memref<32x32xf32, #tpu.memory_space<vmem>>, vector<8x32xf32>
    %cst_187 = arith.constant dense<0.000000e+00> : vector<8x32xf32>
    %555 = tpu.matmul %553, %554, %cst_187 {dimension_numbers = #tpu.dot_dimension_numbers<[1], [0], [0], [1], [0, 0, 1, 1], [], []>} : vector<8x8xf32>, vector<8x32xf32>, vector<8x32xf32> -> vector<8x32xf32>
    %556 = arith.addf %519, %555 : vector<8x32xf32>
    %557 = vector.extract_strided_slice %325 {offsets = [0, 80], sizes = [8, 8], strides = [1, 1]} : vector<8x192xf32> to vector<8x8xf32>
    %558 = vector.extract_strided_slice %324 {offsets = [0, 144], sizes = [16, 8], strides = [1, 1]} : vector<16x192xf32> to vector<16x8xf32>
    %cst_188 = arith.constant dense<0.000000e+00> : vector<8x16xf32>
    %559 = tpu.matmul %557, %558, %cst_188 {dimension_numbers = #tpu.dot_dimension_numbers<[1], [1], [0], [0], [0, 0, 1, 0], [], []>} : vector<8x8xf32>, vector<16x8xf32>, vector<8x16xf32> -> vector<8x16xf32>
    %560 = vector.broadcast %327 : vector<1x16xf32> to vector<8x16xf32>
    %561 = arith.addf %559, %560 : vector<8x16xf32>
    %562 = vector.extract_strided_slice %325 {offsets = [0, 112], sizes = [8, 8], strides = [1, 1]} : vector<8x192xf32> to vector<8x8xf32>
    %563 = vector.extract_strided_slice %325 {offsets = [0, 144], sizes = [8, 8], strides = [1, 1]} : vector<8x192xf32> to vector<8x8xf32>
    %cst_189 = arith.constant dense<0.000000e+00> : vector<8x8xf32>
    %564 = tpu.matmul %562, %563, %cst_189 {dimension_numbers = #tpu.dot_dimension_numbers<[1], [1], [0], [0], [0, 0, 1, 0], [], []>} : vector<8x8xf32>, vector<8x8xf32>, vector<8x8xf32> -> vector<8x8xf32>
    %565 = vector.broadcast %329 : vector<1x8xf32> to vector<8x8xf32>
    %566 = arith.addf %564, %565 : vector<8x8xf32>
    %cst_190 = arith.constant dense<0xFF800000> : vector<8xf32>
    %567 = vector.multi_reduction <maximumf>, %561, %cst_190 [1] : vector<8x16xf32> to vector<8xf32>
    %568 = vector.shape_cast %567 : vector<8xf32> to vector<8x1xf32>
    %cst_191 = arith.constant dense<0xFF800000> : vector<8xf32>
    %569 = vector.multi_reduction <maximumf>, %566, %cst_191 [1] : vector<8x8xf32> to vector<8xf32>
    %570 = vector.shape_cast %569 : vector<8xf32> to vector<8x1xf32>
    %571 = arith.maximumf %568, %570 : vector<8x1xf32>
    %572 = vector.broadcast %571 : vector<8x1xf32> to vector<8x16xf32>
    %573 = arith.subf %561, %572 : vector<8x16xf32>
    %574 = math.exp %573 : vector<8x16xf32>
    %575 = vector.broadcast %571 : vector<8x1xf32> to vector<8x8xf32>
    %576 = arith.subf %566, %575 : vector<8x8xf32>
    %577 = math.exp %576 : vector<8x8xf32>
    %cst_192 = arith.constant dense<0.000000e+00> : vector<8xf32>
    %578 = vector.multi_reduction <add>, %574, %cst_192 [1] : vector<8x16xf32> to vector<8xf32>
    %579 = vector.shape_cast %578 : vector<8xf32> to vector<8x1xf32>
    %cst_193 = arith.constant dense<0.000000e+00> : vector<8xf32>
    %580 = vector.multi_reduction <add>, %577, %cst_193 [1] : vector<8x8xf32> to vector<8xf32>
    %581 = vector.shape_cast %580 : vector<8xf32> to vector<8x1xf32>
    %582 = arith.addf %579, %581 : vector<8x1xf32>
    %583 = tpu.reciprocal %582 {approx = true} : vector<8x1xf32> -> vector<8x1xf32>
    %584 = vector.extract_strided_slice %324 {offsets = [0, 176], sizes = [16, 8], strides = [1, 1]} : vector<16x192xf32> to vector<16x8xf32>
    %cst_194 = arith.constant dense<0.000000e+00> : vector<8x8xf32>
    %585 = tpu.matmul %574, %584, %cst_194 {dimension_numbers = #tpu.dot_dimension_numbers<[1], [0], [0], [1], [0, 0, 1, 1], [], []>} : vector<8x16xf32>, vector<16x8xf32>, vector<8x8xf32> -> vector<8x8xf32>
    %586 = vector.extract_strided_slice %325 {offsets = [0, 176], sizes = [8, 8], strides = [1, 1]} : vector<8x192xf32> to vector<8x8xf32>
    %cst_195 = arith.constant dense<0.000000e+00> : vector<8x8xf32>
    %587 = tpu.matmul %577, %586, %cst_195 {dimension_numbers = #tpu.dot_dimension_numbers<[1], [0], [0], [1], [0, 0, 1, 1], [], []>} : vector<8x8xf32>, vector<8x8xf32>, vector<8x8xf32> -> vector<8x8xf32>
    %588 = arith.addf %585, %587 : vector<8x8xf32>
    %589 = vector.broadcast %583 : vector<8x1xf32> to vector<8x8xf32>
    %590 = arith.mulf %588, %589 : vector<8x8xf32>
    %c16_196 = arith.constant 16 : index
    %c0_197 = arith.constant 0 : index
    %591 = vector.load %arg11[%c16_196, %c0_197] : memref<32x32xf32, #tpu.memory_space<vmem>>, vector<8x32xf32>
    %cst_198 = arith.constant dense<0.000000e+00> : vector<8x32xf32>
    %592 = tpu.matmul %590, %591, %cst_198 {dimension_numbers = #tpu.dot_dimension_numbers<[1], [0], [0], [1], [0, 0, 1, 1], [], []>} : vector<8x8xf32>, vector<8x32xf32>, vector<8x32xf32> -> vector<8x32xf32>
    %593 = arith.addf %556, %592 : vector<8x32xf32>
    %594 = vector.extract_strided_slice %325 {offsets = [0, 88], sizes = [8, 8], strides = [1, 1]} : vector<8x192xf32> to vector<8x8xf32>
    %595 = vector.extract_strided_slice %324 {offsets = [0, 152], sizes = [16, 8], strides = [1, 1]} : vector<16x192xf32> to vector<16x8xf32>
    %cst_199 = arith.constant dense<0.000000e+00> : vector<8x16xf32>
    %596 = tpu.matmul %594, %595, %cst_199 {dimension_numbers = #tpu.dot_dimension_numbers<[1], [1], [0], [0], [0, 0, 1, 0], [], []>} : vector<8x8xf32>, vector<16x8xf32>, vector<8x16xf32> -> vector<8x16xf32>
    %597 = vector.broadcast %327 : vector<1x16xf32> to vector<8x16xf32>
    %598 = arith.addf %596, %597 : vector<8x16xf32>
    %599 = vector.extract_strided_slice %325 {offsets = [0, 120], sizes = [8, 8], strides = [1, 1]} : vector<8x192xf32> to vector<8x8xf32>
    %600 = vector.extract_strided_slice %325 {offsets = [0, 152], sizes = [8, 8], strides = [1, 1]} : vector<8x192xf32> to vector<8x8xf32>
    %cst_200 = arith.constant dense<0.000000e+00> : vector<8x8xf32>
    %601 = tpu.matmul %599, %600, %cst_200 {dimension_numbers = #tpu.dot_dimension_numbers<[1], [1], [0], [0], [0, 0, 1, 0], [], []>} : vector<8x8xf32>, vector<8x8xf32>, vector<8x8xf32> -> vector<8x8xf32>
    %602 = vector.broadcast %329 : vector<1x8xf32> to vector<8x8xf32>
    %603 = arith.addf %601, %602 : vector<8x8xf32>
    %cst_201 = arith.constant dense<0xFF800000> : vector<8xf32>
    %604 = vector.multi_reduction <maximumf>, %598, %cst_201 [1] : vector<8x16xf32> to vector<8xf32>
    %605 = vector.shape_cast %604 : vector<8xf32> to vector<8x1xf32>
    %cst_202 = arith.constant dense<0xFF800000> : vector<8xf32>
    %606 = vector.multi_reduction <maximumf>, %603, %cst_202 [1] : vector<8x8xf32> to vector<8xf32>
    %607 = vector.shape_cast %606 : vector<8xf32> to vector<8x1xf32>
    %608 = arith.maximumf %605, %607 : vector<8x1xf32>
    %609 = vector.broadcast %608 : vector<8x1xf32> to vector<8x16xf32>
    %610 = arith.subf %598, %609 : vector<8x16xf32>
    %611 = math.exp %610 : vector<8x16xf32>
    %612 = vector.broadcast %608 : vector<8x1xf32> to vector<8x8xf32>
    %613 = arith.subf %603, %612 : vector<8x8xf32>
    %614 = math.exp %613 : vector<8x8xf32>
    %cst_203 = arith.constant dense<0.000000e+00> : vector<8xf32>
    %615 = vector.multi_reduction <add>, %611, %cst_203 [1] : vector<8x16xf32> to vector<8xf32>
    %616 = vector.shape_cast %615 : vector<8xf32> to vector<8x1xf32>
    %cst_204 = arith.constant dense<0.000000e+00> : vector<8xf32>
    %617 = vector.multi_reduction <add>, %614, %cst_204 [1] : vector<8x8xf32> to vector<8xf32>
    %618 = vector.shape_cast %617 : vector<8xf32> to vector<8x1xf32>
    %619 = arith.addf %616, %618 : vector<8x1xf32>
    %620 = tpu.reciprocal %619 {approx = true} : vector<8x1xf32> -> vector<8x1xf32>
    %621 = vector.extract_strided_slice %324 {offsets = [0, 184], sizes = [16, 8], strides = [1, 1]} : vector<16x192xf32> to vector<16x8xf32>
    %cst_205 = arith.constant dense<0.000000e+00> : vector<8x8xf32>
    %622 = tpu.matmul %611, %621, %cst_205 {dimension_numbers = #tpu.dot_dimension_numbers<[1], [0], [0], [1], [0, 0, 1, 1], [], []>} : vector<8x16xf32>, vector<16x8xf32>, vector<8x8xf32> -> vector<8x8xf32>
    %623 = vector.extract_strided_slice %325 {offsets = [0, 184], sizes = [8, 8], strides = [1, 1]} : vector<8x192xf32> to vector<8x8xf32>
    %cst_206 = arith.constant dense<0.000000e+00> : vector<8x8xf32>
    %624 = tpu.matmul %614, %623, %cst_206 {dimension_numbers = #tpu.dot_dimension_numbers<[1], [0], [0], [1], [0, 0, 1, 1], [], []>} : vector<8x8xf32>, vector<8x8xf32>, vector<8x8xf32> -> vector<8x8xf32>
    %625 = arith.addf %622, %624 : vector<8x8xf32>
    %626 = vector.broadcast %620 : vector<8x1xf32> to vector<8x8xf32>
    %627 = arith.mulf %625, %626 : vector<8x8xf32>
    %c24_207 = arith.constant 24 : index
    %c0_208 = arith.constant 0 : index
    %628 = vector.load %arg11[%c24_207, %c0_208] : memref<32x32xf32, #tpu.memory_space<vmem>>, vector<8x32xf32>
    %cst_209 = arith.constant dense<0.000000e+00> : vector<8x32xf32>
    %629 = tpu.matmul %627, %628, %cst_209 {dimension_numbers = #tpu.dot_dimension_numbers<[1], [0], [0], [1], [0, 0, 1, 1], [], []>} : vector<8x8xf32>, vector<8x32xf32>, vector<8x32xf32> -> vector<8x32xf32>
    %630 = arith.addf %593, %629 : vector<8x32xf32>
    %c0_210 = arith.constant 0 : index
    %c0_211 = arith.constant 0 : index
    %631 = vector.load %arg12[%c0_210, %c0_211] : memref<1x32xf32, #tpu.memory_space<vmem>>, vector<1x32xf32>
    %632 = vector.broadcast %631 : vector<1x32xf32> to vector<8x32xf32>
    %633 = arith.addf %630, %632 : vector<8x32xf32>
    %c16_212 = arith.constant 16 : index
    %c0_213 = arith.constant 0 : index
    %634 = vector.load %arg13[%c16_212, %c0_213] : memref<32x32xf32, #tpu.memory_space<vmem>>, vector<16x32xf32>
    tpu.vector_store %arg13[%c16_212, %c0_213], %481 {strides = array<i32>} : memref<32x32xf32, #tpu.memory_space<vmem>>, vector<16x32xf32>,
    %c8_214 = arith.constant 8 : index
    %c0_215 = arith.constant 0 : index
    %635 = vector.load %arg14[%c8_214, %c0_215] : memref<16x32xf32, #tpu.memory_space<vmem>>, vector<8x32xf32>
    tpu.vector_store %arg14[%c8_214, %c0_215], %633 {strides = array<i32>} : memref<16x32xf32, #tpu.memory_space<vmem>>, vector<8x32xf32>,
    return
  }
  func.func @transform_0(%arg0: i32) -> (i32, i32) {
    %c0_i32 = arith.constant 0 : i32
    %c0_i32_0 = arith.constant 0 : i32
    %c0_i32_1 = arith.constant 0 : i32
    return %c0_i32, %c0_i32_0 : i32, i32
  }
  func.func @transform_1(%arg0: i32) -> (i32, i32) {
    %c0_i32 = arith.constant 0 : i32
    %c0_i32_0 = arith.constant 0 : i32
    %c0_i32_1 = arith.constant 0 : i32
    return %c0_i32, %c0_i32_0 : i32, i32
  }
  func.func @transform_2(%arg0: i32) -> (i32, i32, i32) {
    %c0_i32 = arith.constant 0 : i32
    %c0_i32_0 = arith.constant 0 : i32
    %c0_i32_1 = arith.constant 0 : i32
    %c0_i32_2 = arith.constant 0 : i32
    return %c0_i32, %c0_i32_0, %c0_i32_1 : i32, i32, i32
  }
  func.func @transform_3(%arg0: i32) -> (i32, i32, i32) {
    %c0_i32 = arith.constant 0 : i32
    %c0_i32_0 = arith.constant 0 : i32
    %c0_i32_1 = arith.constant 0 : i32
    %c0_i32_2 = arith.constant 0 : i32
    return %c0_i32, %c0_i32_0, %c0_i32_1 : i32, i32, i32
  }
  func.func @transform_4(%arg0: i32) -> (i32, i32) {
    %c0_i32 = arith.constant 0 : i32
    %c0_i32_0 = arith.constant 0 : i32
    %c0_i32_1 = arith.constant 0 : i32
    return %c0_i32, %c0_i32_0 : i32, i32
  }
  func.func @transform_5(%arg0: i32) -> (i32, i32) {
    %c0_i32 = arith.constant 0 : i32
    %c0_i32_0 = arith.constant 0 : i32
    %c0_i32_1 = arith.constant 0 : i32
    return %c0_i32, %c0_i32_0 : i32, i32
  }
  func.func @transform_6(%arg0: i32) -> (i32, i32) {
    %c0_i32 = arith.constant 0 : i32
    %c0_i32_0 = arith.constant 0 : i32
    %c0_i32_1 = arith.constant 0 : i32
    return %c0_i32, %c0_i32_0 : i32, i32
  }
  func.func @transform_7(%arg0: i32) -> (i32, i32) {
    %c0_i32 = arith.constant 0 : i32
    %c0_i32_0 = arith.constant 0 : i32
    %c0_i32_1 = arith.constant 0 : i32
    return %c0_i32, %c0_i32_0 : i32, i32
  }
  func.func @transform_8(%arg0: i32) -> (i32, i32) {
    %c0_i32 = arith.constant 0 : i32
    %c0_i32_0 = arith.constant 0 : i32
    %c0_i32_1 = arith.constant 0 : i32
    return %c0_i32, %c0_i32_0 : i32, i32
  }
  func.func @transform_9(%arg0: i32) -> (i32, i32) {
    %c0_i32 = arith.constant 0 : i32
    %c0_i32_0 = arith.constant 0 : i32
    %c0_i32_1 = arith.constant 0 : i32
    return %c0_i32, %c0_i32_0 : i32, i32
  }
  func.func @transform_10(%arg0: i32) -> (i32, i32) {
    %c0_i32 = arith.constant 0 : i32
    %c0_i32_0 = arith.constant 0 : i32
    %c0_i32_1 = arith.constant 0 : i32
    return %c0_i32, %c0_i32_0 : i32, i32
  }
  func.func @transform_11(%arg0: i32) -> (i32, i32) {
    %c0_i32 = arith.constant 0 : i32
    %c0_i32_0 = arith.constant 0 : i32
    %c0_i32_1 = arith.constant 0 : i32
    return %c0_i32, %c0_i32_0 : i32, i32
  }
  func.func @transform_12(%arg0: i32) -> (i32, i32) {
    %c0_i32 = arith.constant 0 : i32
    %c0_i32_0 = arith.constant 0 : i32
    %c0_i32_1 = arith.constant 0 : i32
    return %c0_i32, %c0_i32_0 : i32, i32
  }
  func.func @transform_13(%arg0: i32) -> (i32, i32) {
    %c0_i32 = arith.constant 0 : i32
    %c0_i32_0 = arith.constant 0 : i32
    %c0_i32_1 = arith.constant 0 : i32
    return %c0_i32, %c0_i32_0 : i32, i32
  }
}

</mosaic_0001>

<llo_original>
// kernel: tpu_custom_call.1
$region0: #{tpu_custom_call.1}
  #allocation0 [shape = 'u32[]', space=smem, size = 0x4, offset = 0x4, fixed_abs, tag = 'smem constant byte address 0x4 - core index']
  #allocation1 [shape = 'u32[72,128]{1,0:T(1,128)}', space=vmem, size = 0x9000, scoped, tag = 'internal scratch']
  %s0 = inlined_call_operand.hbm [shape: f32[32,32], index: 0, kind: input, shape index: {}]
  %s1 = inlined_call_operand.hbm [shape: f32[16,32], index: 1, kind: input, shape index: {}]
  %s2 = inlined_call_operand.hbm [shape: f32[2,1,16], index: 2, kind: input, shape index: {}]
  %s3 = inlined_call_operand.vmem [shape: f32[2,1,8], index: 3, kind: input, shape index: {}]
  %s4 = inlined_call_operand.hbm [shape: f32[32,192], index: 4, kind: input, shape index: {}]
  %s5 = inlined_call_operand.vmem [shape: f32[1,192], index: 5, kind: input, shape index: {}]
  %s6 = inlined_call_operand.hbm [shape: f32[32,192], index: 6, kind: input, shape index: {}]
  %s7 = inlined_call_operand.vmem [shape: f32[1,192], index: 7, kind: input, shape index: {}]
  %s8 = inlined_call_operand.hbm [shape: f32[32,32], index: 8, kind: input, shape index: {}]
  %s9 = inlined_call_operand.vmem [shape: f32[1,32], index: 9, kind: input, shape index: {}]
  %s10 = inlined_call_operand.hbm [shape: f32[32,32], index: 10, kind: input, shape index: {}]
  %s11 = inlined_call_operand.vmem [shape: f32[1,32], index: 11, kind: input, shape index: {}]
  %s12 = inlined_call_operand.hbm [shape: f32[32,32], index: 12, kind: output, shape index: {0}]
  %s13 = inlined_call_operand.hbm [shape: f32[16,32], index: 13, kind: output, shape index: {1}]
  %14 = xla_tuple %s12, %s13
  %s15 = sld [smem:[#allocation0]]
  $region94: #{tpu_custom_call.1} parent=0
    _
  %s17 = ssub.s32 1, %s15
  %s18 = scalar_select 0, %s17, %s15
  $region1: #{tpu_custom_call.1} parent=0
    #allocation2 [shape = 'u8[16384]{0}', space=vmem, size = 0x4000, scoped, tag = 'input window, operand 0, single buffered']
    #allocation3 [shape = 's32[1]{0}', space=sflag, size = 0x4, scoped, tag = 'scoped memory for tpu_custom_call.1']
    #allocation4 [shape = 's32[1]{0}', space=sflag, size = 0x4, scoped, tag = 'scoped memory for tpu_custom_call.1']
    #allocation5 [shape = 'u8[8192]{0}', space=vmem, size = 0x2000, scoped, tag = 'input window, operand 1, single buffered']
    #allocation6 [shape = 's32[1]{0}', space=sflag, size = 0x4, scoped, tag = 'scoped memory for tpu_custom_call.1']
    #allocation7 [shape = 'u8[1024]{0}', space=vmem, size = 0x400, scoped, tag = 'input window, operand 2, single buffered']
    #allocation8 [shape = 'u8[32768]{0}', space=vmem, size = 0x8000, scoped, tag = 'input window, operand 4, single buffered']
    #allocation9 [shape = 's32[1]{0}', space=sflag, size = 0x4, scoped, tag = 'scoped memory for tpu_custom_call.1']
    #allocation10 [shape = 'u8[32768]{0}', space=vmem, size = 0x8000, scoped, tag = 'input window, operand 6, single buffered']
    #allocation11 [shape = 'u8[16384]{0}', space=vmem, size = 0x4000, scoped, tag = 'input window, operand 8, single buffered']
    #allocation12 [shape = 's32[1]{0}', space=sflag, size = 0x4, scoped, tag = 'scoped memory for tpu_custom_call.1']
    #allocation13 [shape = 'u8[16384]{0}', space=vmem, size = 0x4000, scoped, tag = 'input window, operand 10, single buffered']
    #allocation14 [shape = 'u8[16384]{0}', space=vmem, size = 0x4000, scoped, tag = 'output window, operand 0, single buffered']
    #allocation15 [shape = 'u8[8192]{0}', space=vmem, size = 0x2000, scoped, tag = 'output window, operand 1, single buffered']
    #allocation16 [shape = 's32[1]{0}', space=sflag, size = 0x4, scoped, tag = 'scoped memory for tpu_custom_call.1']
    %19 = vsyncpa [#allocation3], 0
    %20 = vsyncpa [#allocation6], 0
    %21 = vsyncpa [#allocation9], 0
    %22 = vsyncpa [#allocation12], 0
    %23 = vsyncpa [#allocation4], 0
    %24 = vsyncpa [#allocation16], 0
    // Predicated region
    $region2: #{tpu_custom_call.1} parent=1 // pred_check
      _
    $region3: #{tpu_custom_call.1} parent=1 // pred_check_branch
      %26 = sbr.rel (0) target = $region5
    $region4: #{tpu_custom_call.1} parent=1 // pred_region
      %28 = vsyncadd [#allocation3], 0
      %s29 = sshll.u32 %s0, 4
      %s30 = int_to_ptr.hbm [resolvable:$true] %s29
      %s31 = sshll.u32 [#allocation2], 4
      %s32 = int_to_ptr.vmem [resolvable:$true] %s31
      %37 = dma.hbm_to_vmem [thread:$0]  %s30, 512, %s32, [#allocation3], 128, 128, 8
    $region5: #{tpu_custom_call.1} parent=1 // pred_fallthru
      _
    // Predicated region
    $region6: #{tpu_custom_call.1} parent=1 // pred_check
      _
    $region7: #{tpu_custom_call.1} parent=1 // pred_check_branch
      %39 = sbr.rel (0) target = $region9
    $region8: #{tpu_custom_call.1} parent=1 // pred_region
      %41 = vsyncadd [#allocation6], 0
      %s42 = sshll.u32 %s1, 4
      %s43 = int_to_ptr.hbm [resolvable:$true] %s42
      %s44 = sshll.u32 [#allocation5], 4
      %s45 = int_to_ptr.vmem [resolvable:$true] %s44
      %50 = dma.hbm_to_vmem [thread:$0]  %s43, 256, %s45, [#allocation6], 128, 128, 8
    $region9: #{tpu_custom_call.1} parent=1 // pred_fallthru
      _
    // Predicated region
    $region10: #{tpu_custom_call.1} parent=1 // pred_check
      _
    $region11: #{tpu_custom_call.1} parent=1 // pred_check_branch
      %52 = sbr.rel (0) target = $region13
    $region12: #{tpu_custom_call.1} parent=1 // pred_region
      %54 = vsyncadd [#allocation6], 0
      %s55 = sshll.u32 %s2, 4
      %s56 = int_to_ptr.hbm [resolvable:$true] %s55
      %s57 = sshll.u32 [#allocation7], 4
      %s58 = int_to_ptr.vmem [resolvable:$true] %s57
      %63 = dma.hbm_to_vmem [thread:$0]  %s56, 32, %s58, [#allocation6], 16, 16, 1
    $region13: #{tpu_custom_call.1} parent=1 // pred_fallthru
      _
    // Predicated region
    $region14: #{tpu_custom_call.1} parent=1 // pred_check
      _
    $region15: #{tpu_custom_call.1} parent=1 // pred_check_branch
      %65 = sbr.rel (0) target = $region17
    $region16: #{tpu_custom_call.1} parent=1 // pred_region
      _
    $region17: #{tpu_custom_call.1} parent=1 // pred_fallthru
      _
    // Predicated region
    $region18: #{tpu_custom_call.1} parent=1 // pred_check
      _
    $region19: #{tpu_custom_call.1} parent=1 // pred_check_branch
      %67 = sbr.rel (0) target = $region21
    $region20: #{tpu_custom_call.1} parent=1 // pred_region
      %69 = vsyncadd [#allocation9], 0
      %s70 = sshll.u32 %s4, 4
      %s71 = int_to_ptr.hbm [resolvable:$true] %s70
      %s72 = sshll.u32 [#allocation8], 4
      %s73 = int_to_ptr.vmem [resolvable:$true] %s72
      %78 = dma.hbm_to_vmem [thread:$0]  %s71, 1024, %s73, [#allocation9], 256, 256, 16
    $region21: #{tpu_custom_call.1} parent=1 // pred_fallthru
      _
    // Predicated region
    $region22: #{tpu_custom_call.1} parent=1 // pred_check
      _
    $region23: #{tpu_custom_call.1} parent=1 // pred_check_branch
      %80 = sbr.rel (0) target = $region25
    $region24: #{tpu_custom_call.1} parent=1 // pred_region
      _
    $region25: #{tpu_custom_call.1} parent=1 // pred_fallthru
      _
    // Predicated region
    $region26: #{tpu_custom_call.1} parent=1 // pred_check
      _
    $region27: #{tpu_custom_call.1} parent=1 // pred_check_branch
      %82 = sbr.rel (0) target = $region29
    $region28: #{tpu_custom_call.1} parent=1 // pred_region
      %84 = vsyncadd [#allocation9], 0
      %s85 = sshll.u32 %s6, 4
      %s86 = int_to_ptr.hbm [resolvable:$true] %s85
      %s87 = sshll.u32 [#allocation10], 4
      %s88 = int_to_ptr.vmem [resolvable:$true] %s87
      %93 = dma.hbm_to_vmem [thread:$0]  %s86, 1024, %s88, [#allocation9], 256, 256, 16
    $region29: #{tpu_custom_call.1} parent=1 // pred_fallthru
      _
    // Predicated region
    $region30: #{tpu_custom_call.1} parent=1 // pred_check
      _
    $region31: #{tpu_custom_call.1} parent=1 // pred_check_branch
      %95 = sbr.rel (0) target = $region33
    $region32: #{tpu_custom_call.1} parent=1 // pred_region
      _
    $region33: #{tpu_custom_call.1} parent=1 // pred_fallthru
      _
    // Predicated region
    $region34: #{tpu_custom_call.1} parent=1 // pred_check
      _
    $region35: #{tpu_custom_call.1} parent=1 // pred_check_branch
      %97 = sbr.rel (0) target = $region37
    $region36: #{tpu_custom_call.1} parent=1 // pred_region
      %99 = vsyncadd [#allocation12], 0
      %s100 = sshll.u32 %s8, 4
      %s101 = int_to_ptr.hbm [resolvable:$true] %s100
      %s102 = sshll.u32 [#allocation11], 4
      %s103 = int_to_ptr.vmem [resolvable:$true] %s102
      %108 = dma.hbm_to_vmem [thread:$0]  %s101, 512, %s103, [#allocation12], 128, 128, 8
    $region37: #{tpu_custom_call.1} parent=1 // pred_fallthru
      _
    // Predicated region
    $region38: #{tpu_custom_call.1} parent=1 // pred_check
      _
    $region39: #{tpu_custom_call.1} parent=1 // pred_check_branch
      %110 = sbr.rel (0) target = $region41
    $region40: #{tpu_custom_call.1} parent=1 // pred_region
      _
    $region41: #{tpu_custom_call.1} parent=1 // pred_fallthru
      _
    // Predicated region
    $region42: #{tpu_custom_call.1} parent=1 // pred_check
      _
    $region43: #{tpu_custom_call.1} parent=1 // pred_check_branch
      %112 = sbr.rel (0) target = $region45
    $region44: #{tpu_custom_call.1} parent=1 // pred_region
      %114 = vsyncadd [#allocation12], 0
      %s115 = sshll.u32 %s10, 4
      %s116 = int_to_ptr.hbm [resolvable:$true] %s115
      %s117 = sshll.u32 [#allocation13], 4
      %s118 = int_to_ptr.vmem [resolvable:$true] %s117
      %123 = dma.hbm_to_vmem [thread:$0]  %s116, 512, %s118, [#allocation12], 128, 128, 8
    $region45: #{tpu_custom_call.1} parent=1 // pred_fallthru
      _
    // Predicated region
    $region46: #{tpu_custom_call.1} parent=1 // pred_check
      _
    $region47: #{tpu_custom_call.1} parent=1 // pred_check_branch
      %125 = sbr.rel (0) target = $region49
    $region48: #{tpu_custom_call.1} parent=1 // pred_region
      _
    $region49: #{tpu_custom_call.1} parent=1 // pred_fallthru
      _
    // Predicated region
    $region50: #{tpu_custom_call.1} parent=1 // pred_check
      _
    $region51: #{tpu_custom_call.1} parent=1 // pred_check_branch
      %127 = sbr.rel (0) target = $region53
    $region52: #{tpu_custom_call.1} parent=1 // pred_region
      %129 = dma.done [#allocation3], 512
    $region53: #{tpu_custom_call.1} parent=1 // pred_fallthru
      _
    // Predicated region
    $region54: #{tpu_custom_call.1} parent=1 // pred_check
      _
    $region55: #{tpu_custom_call.1} parent=1 // pred_check_branch
      %131 = sbr.rel (0) target = $region57
    $region56: #{tpu_custom_call.1} parent=1 // pred_region
      %133 = dma.done [#allocation6], 256
    $region57: #{tpu_custom_call.1} parent=1 // pred_fallthru
      _
    // Predicated region
    $region58: #{tpu_custom_call.1} parent=1 // pred_check
      _
    $region59: #{tpu_custom_call.1} parent=1 // pred_check_branch
      %135 = sbr.rel (0) target = $region61
    $region60: #{tpu_custom_call.1} parent=1 // pred_region
      %137 = dma.done [#allocation6], 32
    $region61: #{tpu_custom_call.1} parent=1 // pred_fallthru
      _
    // Predicated region
    $region62: #{tpu_custom_call.1} parent=1 // pred_check
      _
    $region63: #{tpu_custom_call.1} parent=1 // pred_check_branch
      %139 = sbr.rel (0) target = $region65
    $region64: #{tpu_custom_call.1} parent=1 // pred_region
      %141 = dma.done [#allocation9], 1024
    $region65: #{tpu_custom_call.1} parent=1 // pred_fallthru
      _
    // Predicated region
    $region66: #{tpu_custom_call.1} parent=1 // pred_check
      _
    $region67: #{tpu_custom_call.1} parent=1 // pred_check_branch
      %143 = sbr.rel (0) target = $region69
    $region68: #{tpu_custom_call.1} parent=1 // pred_region
      %145 = dma.done [#allocation9], 1024
    $region69: #{tpu_custom_call.1} parent=1 // pred_fallthru
      _
    // Predicated region
    $region70: #{tpu_custom_call.1} parent=1 // pred_check
      _
    $region71: #{tpu_custom_call.1} parent=1 // pred_check_branch
      %147 = sbr.rel (0) target = $region73
    $region72: #{tpu_custom_call.1} parent=1 // pred_region
      %149 = dma.done [#allocation12], 512
    $region73: #{tpu_custom_call.1} parent=1 // pred_fallthru
      _
    // Predicated region
    $region74: #{tpu_custom_call.1} parent=1 // pred_check
      _
    $region75: #{tpu_custom_call.1} parent=1 // pred_check_branch
      %151 = sbr.rel (0) target = $region77
    $region76: #{tpu_custom_call.1} parent=1 // pred_region
      %153 = dma.done [#allocation12], 512
    $region77: #{tpu_custom_call.1} parent=1 // pred_fallthru
      _
    %v154 = vld [vmem:[#allocation8] sm:$0xff]
    %v155 = vld [vmem:[#allocation8 + $0x8] sm:$0xff]
    %v156 = vld [vmem:[#allocation8 + $0x10] sm:$0xff]
    %v157 = vld [vmem:[#allocation8 + $0x18] sm:$0xff]
    %v158 = vld [vmem:[#allocation8 + $0x20] sm:$0xff]
    %v159 = vld [vmem:[#allocation8 + $0x28] sm:$0xff]
    %v160 = vld [vmem:[#allocation8 + $0x30] sm:$0xff]
    %v161 = vld [vmem:[#allocation8 + $0x38] sm:$0xff]
    %v162 = vld [vmem:[#allocation10] sm:$0xff]
    %v163 = vld [vmem:[#allocation10 + $0x8] sm:$0xff]
    %v164 = vld [vmem:[#allocation10 + $0x10] sm:$0xff]
    %v165 = vld [vmem:[#allocation10 + $0x18] sm:$0xff]
    %v166 = vld [vmem:[#allocation10 + $0x20] sm:$0xff]
    %v167 = vld [vmem:[#allocation10 + $0x28] sm:$0xff]
    %v168 = vld [vmem:[#allocation10 + $0x30] sm:$0xff]
    %v169 = vld [vmem:[#allocation10 + $0x38] sm:$0xff]
    %v170 = vld [vmem:[#allocation2] sm:$0xff]
    %v171 = vld [vmem:[#allocation2 + $0x8] sm:$0xff]
    %v172 = vld [vmem:[#allocation2 + $0x10] sm:$0xff]
    %v173 = vld [vmem:[#allocation2 + $0x18] sm:$0xff]
    %v174 = vld [vmem:[#allocation5] sm:$0xff]
    %v175 = vld [vmem:[#allocation5 + $0x8] sm:$0xff]
    %v176 = vld [vmem:[%s5] sm:$0x3]
    %v178 = vperm.slane %v176, 0
    %v179 = vperm.slane %v176, 1
    %vm182 = vcmask 261120
    %v184 = vsel %vm182, %v170, 0
    %v187 = vsel %vm182, %v171, 0
    %v190 = vsel %vm182, %v172, 0
    %v193 = vsel %vm182, %v173, 0
    %195 = vmatpush.msra.mxu0 0.0
    %196 = vmatpush.msra.mxu0 0.0
    %197 = vmatpush.msra.mxu0 0.0
    %198 = vmatpush.msra.mxu0 0.0
    %199 = vmatpush.msra.mxu0 0.0
    %200 = vmatpush.msra.mxu0 0.0
    %201 = vmatpush.msra.mxu0 0.0
    %202 = vmatpush.msra.mxu0 0.0
    %203 = vmatpush.msra.mxu0 0.0
    %204 = vmatpush.msra.mxu0 0.0
    %205 = vmatpush.msra.mxu0 0.0
    %206 = vmatpush.msra.mxu0 0.0
    %207 = vmatpush.msra.mxu0 %v160
    %208 = vmatpush.msra.mxu0 %v158
    %209 = vmatpush.msra.mxu0 %v156
    %210 = vmatpush.msra.mxu0 %v154
    %211 = vmatmul.f32.gmra.mxu0 %v184
    %v212 = vpop.f32.mrf.mxu0
    %v213 = vadd.f32 %v178, %v212
    %214 = vmatmul.f32.gmra.mxu0 %v187
    %v215 = vpop.f32.mrf.mxu0
    %v216 = vadd.f32 %v178, %v215
    %217 = vmatmul.f32.gmra.mxu0 %v190
    %v218 = vpop.f32.mrf.mxu0
    %v219 = vadd.f32 %v178, %v218
    %220 = vmatmul.f32.gmra.mxu0 %v193
    %v221 = vpop.f32.mrf.mxu0
    %v222 = vadd.f32 %v178, %v221
    %223 = vdwg.mxu0
    %224 = vmatpush.msra.mxu0 0.0
    %225 = vmatpush.msra.mxu0 0.0
    %226 = vmatpush.msra.mxu0 0.0
    %227 = vmatpush.msra.mxu0 0.0
    %228 = vmatpush.msra.mxu0 0.0
    %229 = vmatpush.msra.mxu0 0.0
    %230 = vmatpush.msra.mxu0 0.0
    %231 = vmatpush.msra.mxu0 0.0
    %232 = vmatpush.msra.mxu0 0.0
    %233 = vmatpush.msra.mxu0 0.0
    %234 = vmatpush.msra.mxu0 0.0
    %235 = vmatpush.msra.mxu0 0.0
    %236 = vmatpush.msra.mxu0 %v161
    %237 = vmatpush.msra.mxu0 %v159
    %238 = vmatpush.msra.mxu0 %v157
    %239 = vmatpush.msra.mxu0 %v155
    %240 = vmatmul.f32.gmra.mxu0 %v184
    %v241 = vpop.f32.mrf.mxu0
    %v242 = vadd.f32 %v179, %v241
    %243 = vmatmul.f32.gmra.mxu0 %v187
    %v244 = vpop.f32.mrf.mxu0
    %v245 = vadd.f32 %v179, %v244
    %246 = vmatmul.f32.gmra.mxu0 %v190
    %v247 = vpop.f32.mrf.mxu0
    %v248 = vadd.f32 %v179, %v247
    %249 = vmatmul.f32.gmra.mxu0 %v193
    %v250 = vpop.f32.mrf.mxu0
    %v251 = vadd.f32 %v179, %v250
    %252 = vdwg.mxu0
    %v253 = vld [vmem:[%s7] sm:$0x3]
    %v255 = vperm.slane %v253, 0
    %v256 = vperm.slane %v253, 1
    %v260 = vsel %vm182, %v174, 0
    %v263 = vsel %vm182, %v175, 0
    %265 = vmatpush.msra.mxu0 0.0
    %266 = vmatpush.msra.mxu0 0.0
    %267 = vmatpush.msra.mxu0 0.0
    %268 = vmatpush.msra.mxu0 0.0
    %269 = vmatpush.msra.mxu0 0.0
    %270 = vmatpush.msra.mxu0 0.0
    %271 = vmatpush.msra.mxu0 0.0
    %272 = vmatpush.msra.mxu0 0.0
    %273 = vmatpush.msra.mxu0 0.0
    %274 = vmatpush.msra.mxu0 0.0
    %275 = vmatpush.msra.mxu0 0.0
    %276 = vmatpush.msra.mxu0 0.0
    %277 = vmatpush.msra.mxu0 %v168
    %278 = vmatpush.msra.mxu0 %v166
    %279 = vmatpush.msra.mxu0 %v164
    %280 = vmatpush.msra.mxu0 %v162
    %281 = vmatmul.f32.gmra.mxu0 %v260
    %v282 = vpop.f32.mrf.mxu0
    %v283 = vadd.f32 %v255, %v282
    %284 = vmatmul.f32.gmra.mxu0 %v263
    %v285 = vpop.f32.mrf.mxu0
    %v286 = vadd.f32 %v255, %v285
    %287 = vdwg.mxu0
    %288 = vmatpush.msra.mxu0 0.0
    %289 = vmatpush.msra.mxu0 0.0
    %290 = vmatpush.msra.mxu0 0.0
    %291 = vmatpush.msra.mxu0 0.0
    %292 = vmatpush.msra.mxu0 0.0
    %293 = vmatpush.msra.mxu0 0.0
    %294 = vmatpush.msra.mxu0 0.0
    %295 = vmatpush.msra.mxu0 0.0
    %296 = vmatpush.msra.mxu0 0.0
    %297 = vmatpush.msra.mxu0 0.0
    %298 = vmatpush.msra.mxu0 0.0
    %299 = vmatpush.msra.mxu0 0.0
    %300 = vmatpush.msra.mxu0 %v169
    %301 = vmatpush.msra.mxu0 %v167
    %302 = vmatpush.msra.mxu0 %v165
    %303 = vmatpush.msra.mxu0 %v163
    %304 = vmatmul.f32.gmra.mxu0 %v260
    %v305 = vpop.f32.mrf.mxu0
    %v306 = vadd.f32 %v256, %v305
    %307 = vmatmul.f32.gmra.mxu0 %v263
    %v308 = vpop.f32.mrf.mxu0
    %v309 = vadd.f32 %v256, %v308
    %310 = vdwg.mxu0
    %v311 = vld [vmem:[#allocation7] sm:$0x1]
    %v312 = vld [vmem:[%s3] sm:$0x1]
    %v314 = vperm.slane %v311, 0
    %318 = vrot.lane.b32.xlu0 %v213, 96
    %v319 = vpop.permute.xlu0 %318
    %320 = vrot.lane.b32.xlu0 %v216, 96
    %v321 = vpop.permute.xlu0 %320
    %vm322 = vcmask 64512
    %v323 = vsel %vm322, %v213, 0
    %v325 = vsel %vm322, %v216, 0
    %v327 = vsel %vm322, %v319, 0
    %v329 = vsel %vm322, %v321, 0
    %331 = vmatpush.xpose.msra.mxu0 0.0
    %332 = vmatpush.xpose.msra.mxu0 0.0
    %333 = vmatpush.xpose.msra.mxu0 0.0
    %334 = vmatpush.xpose.msra.mxu0 0.0
    %335 = vmatpush.xpose.msra.mxu0 0.0
    %336 = vmatpush.xpose.msra.mxu0 0.0
    %337 = vmatpush.xpose.msra.mxu0 0.0
    %338 = vmatpush.xpose.msra.mxu0 0.0
    %339 = vmatpush.xpose.msra.mxu0 0.0
    %340 = vmatpush.xpose.msra.mxu0 0.0
    %341 = vmatpush.xpose.msra.mxu0 0.0
    %342 = vmatpush.xpose.msra.mxu0 0.0
    %343 = vmatpush.xpose.msra.mxu0 0.0
    %344 = vmatpush.xpose.msra.mxu0 0.0
    %345 = vmatpush.xpose.msra.mxu0 %v329
    %346 = vmatpush.xpose.msra.mxu0 %v327
    %347 = vmatmul.f32.gmra.mxu0 %v323
    %v348 = vpop.f32.mrf.mxu0
    %v349 = vadd.f32 %v314, %v348
    %350 = vmatmul.f32.gmra.mxu0 %v325
    %v351 = vpop.f32.mrf.mxu0
    %v352 = vadd.f32 %v314, %v351
    %353 = vdwg.mxu0
    %v355 = vperm.slane %v312, 0
    %357 = vrot.lane.b32.xlu0 %v213, 32
    %v358 = vpop.permute.xlu0 %357
    %359 = vrot.lane.b32.xlu0 %v216, 32
    %v360 = vpop.permute.xlu0 %359
    %v361 = vsel %vm322, %v358, 0
    %v363 = vsel %vm322, %v360, 0
    %v366 = vsel %vm322, %v283, 0
    %368 = vmatpush.xpose.msra.mxu0 0.0
    %369 = vmatpush.xpose.msra.mxu0 0.0
    %370 = vmatpush.xpose.msra.mxu0 0.0
    %371 = vmatpush.xpose.msra.mxu0 0.0
    %372 = vmatpush.xpose.msra.mxu0 0.0
    %373 = vmatpush.xpose.msra.mxu0 0.0
    %374 = vmatpush.xpose.msra.mxu0 0.0
    %375 = vmatpush.xpose.msra.mxu0 0.0
    %376 = vmatpush.xpose.msra.mxu0 0.0
    %377 = vmatpush.xpose.msra.mxu0 0.0
    %378 = vmatpush.xpose.msra.mxu0 0.0
    %379 = vmatpush.xpose.msra.mxu0 0.0
    %380 = vmatpush.xpose.msra.mxu0 0.0
    %381 = vmatpush.xpose.msra.mxu0 0.0
    %382 = vmatpush.xpose.msra.mxu0 0.0
    %383 = vmatpush.xpose.msra.mxu0 %v366
    %384 = vmatmul.f32.gmra.mxu0 %v361
    %v385 = vpop.f32.mrf.mxu0
    %v386 = vadd.f32 %v355, %v385
    %387 = vmatmul.f32.gmra.mxu0 %v363
    %v388 = vpop.f32.mrf.mxu0
    %v389 = vadd.f32 %v355, %v388
    %390 = vdwg.mxu0
    %vm391 = vcmask 130048
    %v392 = vsel %vm391, %v349, -inf
    %393 = vmax.xlane.f32.xlu0 %v392
    %v394 = vpop.xlane.xlu0 %393
    %v395 = vsel %vm391, %v352, -inf
    %396 = vmax.xlane.f32.xlu0 %v395
    %v397 = vpop.xlane.xlu0 %396
    %v398 = vsel %vm322, %v386, -inf
    %399 = vmax.xlane.f32.xlu0 %v398
    %v400 = vpop.xlane.xlu0 %399
    %v401 = vsel %vm322, %v389, -inf
    %402 = vmax.xlane.f32.xlu0 %v401
    %v403 = vpop.xlane.xlu0 %402
    %v404 = vmax.f32 %v394, %v400
    %v405 = vmax.f32 %v397, %v403
    %v406 = vsub.f32 %v349, %v404
    %v407 = vsub.f32 %v352, %v405
    %v408 = vmul.f32 %v406, 1.442695
    %v409 = vpow.pop %v408
    %v410 = vmul.f32 %v407, 1.442695
    %v411 = vpow.pop %v410
    %v412 = vsub.f32 %v386, %v404
    %v413 = vsub.f32 %v389, %v405
    %v414 = vmul.f32 %v412, 1.442695
    %v415 = vpow.pop %v414
    %v416 = vmul.f32 %v413, 1.442695
    %v417 = vpow.pop %v416
    %v418 = vsel %vm391, %v409, 0.0
    %419 = vadd.xlane.f32.xlu0 %v418
    %v420 = vpop.xlane.xlu0 %419
    %v421 = vsel %vm391, %v411, 0.0
    %422 = vadd.xlane.f32.xlu0 %v421
    %v423 = vpop.xlane.xlu0 %422
    %v424 = vsel %vm322, %v415, 0.0
    %425 = vadd.xlane.f32.xlu0 %v424
    %v426 = vpop.xlane.xlu0 %425
    %v427 = vsel %vm322, %v417, 0.0
    %428 = vadd.xlane.f32.xlu0 %v427
    %v429 = vpop.xlane.xlu0 %428
    %v430 = vadd.f32 %v420, %v426
    %v431 = vadd.f32 %v423, %v429
    %v432 = vrcp.pop %v430
    %v433 = vrcp.pop %v431
    %434 = vrot.lane.b32.xlu0 %v283, 96
    %v435 = vpop.permute.xlu0 %434
    %v438 = vsel %vm322, %v415, 0
    %v441 = vsel %vm322, %v417, 0
    %443 = vmatpush.msra.mxu0 0.0
    %444 = vmatpush.msra.mxu0 0.0
    %445 = vmatpush.msra.mxu0 0.0
    %446 = vmatpush.msra.mxu0 0.0
    %447 = vmatpush.msra.mxu0 0.0
    %448 = vmatpush.msra.mxu0 0.0
    %449 = vmatpush.msra.mxu0 0.0
    %450 = vmatpush.msra.mxu0 0.0
    %451 = vmatpush.msra.mxu0 0.0
    %452 = vmatpush.msra.mxu0 0.0
    %453 = vmatpush.msra.mxu0 0.0
    %454 = vmatpush.msra.mxu0 0.0
    %455 = vmatpush.msra.mxu0 0.0
    %456 = vmatpush.msra.mxu0 0.0
    %457 = vmatpush.msra.mxu0 0.0
    %458 = vmatpush.msra.mxu0 %v435
    %459 = vmatmul.f32.gmra.mxu0 %v438
    %v460 = vpop.f32.mrf.mxu0
    %v461 = vadd.f32 0.0, %v460
    %462 = vmatmul.f32.gmra.mxu0 %v441
    %v463 = vpop.f32.mrf.mxu0
    %v464 = vadd.f32 0.0, %v463
    %465 = vdwg.mxu0
    %466 = vrot.lane.b32.xlu0 %v213, 64
    %v467 = vpop.permute.xlu0 %466
    %468 = vrot.lane.b32.xlu0 %v216, 64
    %v469 = vpop.permute.xlu0 %468
    %v473 = vsel %vm391, %v409, 0
    %v476 = vsel %vm391, %v411, 0
    %478 = vmatpush.msra.mxu0 0.0
    %479 = vmatpush.msra.mxu0 0.0
    %480 = vmatpush.msra.mxu0 0.0
    %481 = vmatpush.msra.mxu0 0.0
    %482 = vmatpush.msra.mxu0 0.0
    %483 = vmatpush.msra.mxu0 0.0
    %484 = vmatpush.msra.mxu0 0.0
    %485 = vmatpush.msra.mxu0 0.0
    %486 = vmatpush.msra.mxu0 0.0
    %487 = vmatpush.msra.mxu0 0.0
    %488 = vmatpush.msra.mxu0 0.0
    %489 = vmatpush.msra.mxu0 0.0
    %490 = vmatpush.msra.mxu0 0.0
    %491 = vmatpush.msra.mxu0 0.0
    %492 = vmatpush.msra.mxu0 %v469
    %493 = vmatpush.msra.mxu0 %v467
    %494 = vmatmul.f32.gmra.mxu0 %v473
    %v495 = vpop.f32.mrf.mxu0
    %v496 = vadd.f32 %v461, %v495
    %497 = vmatmul.f32.gmra.mxu0 %v476
    %v498 = vpop.f32.mrf.mxu0
    %v499 = vadd.f32 %v464, %v498
    %500 = vdwg.mxu0
    %v501 = vmul.f32 %v496, %v432
    %v502 = vmul.f32 %v499, %v433
    %v503 = vld [vmem:[#allocation11] sm:$0xff]
    %504 = vrot.lane.b32.xlu0 %v213, 120
    %v505 = vpop.permute.xlu0 %504
    %506 = vrot.lane.b32.xlu0 %v216, 120
    %v507 = vpop.permute.xlu0 %506
    %508 = vrot.lane.b32.xlu0 %v213, 88
    %v509 = vpop.permute.xlu0 %508
    %510 = vrot.lane.b32.xlu0 %v216, 88
    %v511 = vpop.permute.xlu0 %510
    %v512 = vsel %vm322, %v505, 0
    %v514 = vsel %vm322, %v507, 0
    %v516 = vsel %vm322, %v509, 0
    %v518 = vsel %vm322, %v511, 0
    %520 = vmatpush.xpose.msra.mxu0 0.0
    %521 = vmatpush.xpose.msra.mxu0 0.0
    %522 = vmatpush.xpose.msra.mxu0 0.0
    %523 = vmatpush.xpose.msra.mxu0 0.0
    %524 = vmatpush.xpose.msra.mxu0 0.0
    %525 = vmatpush.xpose.msra.mxu0 0.0
    %526 = vmatpush.xpose.msra.mxu0 0.0
    %527 = vmatpush.xpose.msra.mxu0 0.0
    %528 = vmatpush.xpose.msra.mxu0 0.0
    %529 = vmatpush.xpose.msra.mxu0 0.0
    %530 = vmatpush.xpose.msra.mxu0 0.0
    %531 = vmatpush.xpose.msra.mxu0 0.0
    %532 = vmatpush.xpose.msra.mxu0 0.0
    %533 = vmatpush.xpose.msra.mxu0 0.0
    %534 = vmatpush.xpose.msra.mxu0 %v518
    %535 = vmatpush.xpose.msra.mxu0 %v516
    %536 = vmatmul.f32.gmra.mxu0 %v512
    %v537 = vpop.f32.mrf.mxu0
    %v538 = vadd.f32 %v314, %v537
    %539 = vmatmul.f32.gmra.mxu0 %v514
    %v540 = vpop.f32.mrf.mxu0
    %v541 = vadd.f32 %v314, %v540
    %542 = vdwg.mxu0
    %543 = vrot.lane.b32.xlu0 %v213, 24
    %v544 = vpop.permute.xlu0 %543
    %545 = vrot.lane.b32.xlu0 %v216, 24
    %v546 = vpop.permute.xlu0 %545
    %547 = vrot.lane.b32.xlu0 %v283, 120
    %v548 = vpop.permute.xlu0 %547
    %v549 = vsel %vm322, %v544, 0
    %v551 = vsel %vm322, %v546, 0
    %v553 = vsel %vm322, %v548, 0
    %555 = vmatpush.xpose.msra.mxu0 0.0
    %556 = vmatpush.xpose.msra.mxu0 0.0
    %557 = vmatpush.xpose.msra.mxu0 0.0
    %558 = vmatpush.xpose.msra.mxu0 0.0
    %559 = vmatpush.xpose.msra.mxu0 0.0
    %560 = vmatpush.xpose.msra.mxu0 0.0
    %561 = vmatpush.xpose.msra.mxu0 0.0
    %562 = vmatpush.xpose.msra.mxu0 0.0
    %563 = vmatpush.xpose.msra.mxu0 0.0
    %564 = vmatpush.xpose.msra.mxu0 0.0
    %565 = vmatpush.xpose.msra.mxu0 0.0
    %566 = vmatpush.xpose.msra.mxu0 0.0
    %567 = vmatpush.xpose.msra.mxu0 0.0
    %568 = vmatpush.xpose.msra.mxu0 0.0
    %569 = vmatpush.xpose.msra.mxu0 0.0
    %570 = vmatpush.xpose.msra.mxu0 %v553
    %571 = vmatmul.f32.gmra.mxu0 %v549
    %v572 = vpop.f32.mrf.mxu0
    %v573 = vadd.f32 %v355, %v572
    %574 = vmatmul.f32.gmra.mxu0 %v551
    %v575 = vpop.f32.mrf.mxu0
    %v576 = vadd.f32 %v355, %v575
    %577 = vdwg.mxu0
    %v578 = vsel %vm391, %v538, -inf
    %579 = vmax.xlane.f32.xlu0 %v578
    %v580 = vpop.xlane.xlu0 %579
    %v581 = vsel %vm391, %v541, -inf
    %582 = vmax.xlane.f32.xlu0 %v581
    %v583 = vpop.xlane.xlu0 %582
    %v584 = vsel %vm322, %v573, -inf
    %585 = vmax.xlane.f32.xlu0 %v584
    %v586 = vpop.xlane.xlu0 %585
    %v587 = vsel %vm322, %v576, -inf
    %588 = vmax.xlane.f32.xlu0 %v587
    %v589 = vpop.xlane.xlu0 %588
    %v590 = vmax.f32 %v580, %v586
    %v591 = vmax.f32 %v583, %v589
    %v592 = vsub.f32 %v538, %v590
    %v593 = vsub.f32 %v541, %v591
    %v594 = vmul.f32 %v592, 1.442695
    %v595 = vpow.pop %v594
    %v596 = vmul.f32 %v593, 1.442695
    %v597 = vpow.pop %v596
    %v598 = vsub.f32 %v573, %v590
    %v599 = vsub.f32 %v576, %v591
    %v600 = vmul.f32 %v598, 1.442695
    %v601 = vpow.pop %v600
    %v602 = vmul.f32 %v599, 1.442695
    %v603 = vpow.pop %v602
    %v604 = vsel %vm391, %v595, 0.0
    %605 = vadd.xlane.f32.xlu0 %v604
    %v606 = vpop.xlane.xlu0 %605
    %v607 = vsel %vm391, %v597, 0.0
    %608 = vadd.xlane.f32.xlu0 %v607
    %v609 = vpop.xlane.xlu0 %608
    %v610 = vsel %vm322, %v601, 0.0
    %611 = vadd.xlane.f32.xlu0 %v610
    %v612 = vpop.xlane.xlu0 %611
    %v613 = vsel %vm322, %v603, 0.0
    %614 = vadd.xlane.f32.xlu0 %v613
    %v615 = vpop.xlane.xlu0 %614
    %v616 = vadd.f32 %v606, %v612
    %v617 = vadd.f32 %v609, %v615
    %v618 = vrcp.pop %v616
    %v619 = vrcp.pop %v617
    %620 = vrot.lane.b32.xlu0 %v283, 88
    %v621 = vpop.permute.xlu0 %620
    %v624 = vsel %vm322, %v601, 0
    %v627 = vsel %vm322, %v603, 0
    %629 = vmatpush.msra.mxu0 0.0
    %630 = vmatpush.msra.mxu0 0.0
    %631 = vmatpush.msra.mxu0 0.0
    %632 = vmatpush.msra.mxu0 0.0
    %633 = vmatpush.msra.mxu0 0.0
    %634 = vmatpush.msra.mxu0 0.0
    %635 = vmatpush.msra.mxu0 0.0
    %636 = vmatpush.msra.mxu0 0.0
    %637 = vmatpush.msra.mxu0 0.0
    %638 = vmatpush.msra.mxu0 0.0
    %639 = vmatpush.msra.mxu0 0.0
    %640 = vmatpush.msra.mxu0 0.0
    %641 = vmatpush.msra.mxu0 0.0
    %642 = vmatpush.msra.mxu0 0.0
    %643 = vmatpush.msra.mxu0 0.0
    %644 = vmatpush.msra.mxu0 %v621
    %645 = vmatmul.f32.gmra.mxu0 %v624
    %v646 = vpop.f32.mrf.mxu0
    %v647 = vadd.f32 0.0, %v646
    %648 = vmatmul.f32.gmra.mxu0 %v627
    %v649 = vpop.f32.mrf.mxu0
    %v650 = vadd.f32 0.0, %v649
    %651 = vdwg.mxu0
    %652 = vrot.lane.b32.xlu0 %v213, 56
    %v653 = vpop.permute.xlu0 %652
    %654 = vrot.lane.b32.xlu0 %v216, 56
    %v655 = vpop.permute.xlu0 %654
    %v659 = vsel %vm391, %v595, 0
    %v662 = vsel %vm391, %v597, 0
    %664 = vmatpush.msra.mxu0 0.0
    %665 = vmatpush.msra.mxu0 0.0
    %666 = vmatpush.msra.mxu0 0.0
    %667 = vmatpush.msra.mxu0 0.0
    %668 = vmatpush.msra.mxu0 0.0
    %669 = vmatpush.msra.mxu0 0.0
    %670 = vmatpush.msra.mxu0 0.0
    %671 = vmatpush.msra.mxu0 0.0
    %672 = vmatpush.msra.mxu0 0.0
    %673 = vmatpush.msra.mxu0 0.0
    %674 = vmatpush.msra.mxu0 0.0
    %675 = vmatpush.msra.mxu0 0.0
    %676 = vmatpush.msra.mxu0 0.0
    %677 = vmatpush.msra.mxu0 0.0
    %678 = vmatpush.msra.mxu0 %v655
    %679 = vmatpush.msra.mxu0 %v653
    %680 = vmatmul.f32.gmra.mxu0 %v659
    %v681 = vpop.f32.mrf.mxu0
    %v682 = vadd.f32 %v647, %v681
    %683 = vmatmul.f32.gmra.mxu0 %v662
    %v684 = vpop.f32.mrf.mxu0
    %v685 = vadd.f32 %v650, %v684
    %686 = vdwg.mxu0
    %v687 = vmul.f32 %v682, %v618
    %v688 = vmul.f32 %v685, %v619
    %v689 = vld [vmem:[#allocation11 + $0x8] sm:$0xff]
    %v691 = vsel %vm322, %v687, 0
    %v694 = vsel %vm322, %v688, 0
    %696 = vmatpush.msra.mxu0 0.0
    %697 = vmatpush.msra.mxu0 0.0
    %698 = vmatpush.msra.mxu0 0.0
    %699 = vmatpush.msra.mxu0 0.0
    %700 = vmatpush.msra.mxu0 0.0
    %701 = vmatpush.msra.mxu0 0.0
    %702 = vmatpush.msra.mxu0 0.0
    %703 = vmatpush.msra.mxu0 0.0
    %704 = vmatpush.msra.mxu0 0.0
    %705 = vmatpush.msra.mxu0 0.0
    %706 = vmatpush.msra.mxu0 0.0
    %707 = vmatpush.msra.mxu0 0.0
    %708 = vmatpush.msra.mxu0 0.0
    %709 = vmatpush.msra.mxu0 0.0
    %710 = vmatpush.msra.mxu0 0.0
    %711 = vmatpush.msra.mxu0 %v689
    %712 = vmatmul.f32.gmra.mxu0 %v691
    %v713 = vpop.f32.mrf.mxu0
    %v714 = vadd.f32 0.0, %v713
    %715 = vmatmul.f32.gmra.mxu0 %v694
    %v716 = vpop.f32.mrf.mxu0
    %v717 = vadd.f32 0.0, %v716
    %718 = vdwg.mxu0
    %v720 = vsel %vm322, %v501, 0
    %v723 = vsel %vm322, %v502, 0
    %725 = vmatpush.msra.mxu0 0.0
    %726 = vmatpush.msra.mxu0 0.0
    %727 = vmatpush.msra.mxu0 0.0
    %728 = vmatpush.msra.mxu0 0.0
    %729 = vmatpush.msra.mxu0 0.0
    %730 = vmatpush.msra.mxu0 0.0
    %731 = vmatpush.msra.mxu0 0.0
    %732 = vmatpush.msra.mxu0 0.0
    %733 = vmatpush.msra.mxu0 0.0
    %734 = vmatpush.msra.mxu0 0.0
    %735 = vmatpush.msra.mxu0 0.0
    %736 = vmatpush.msra.mxu0 0.0
    %737 = vmatpush.msra.mxu0 0.0
    %738 = vmatpush.msra.mxu0 0.0
    %739 = vmatpush.msra.mxu0 0.0
    %740 = vmatpush.msra.mxu0 %v503
    %741 = vmatmul.f32.gmra.mxu0 %v720
    %v742 = vpop.f32.mrf.mxu0
    %v743 = vadd.f32 %v714, %v742
    %744 = vmatmul.f32.gmra.mxu0 %v723
    %v745 = vpop.f32.mrf.mxu0
    %v746 = vadd.f32 %v717, %v745
    %747 = vdwg.mxu0
    %748 = vrot.lane.b32.xlu0 %v213, 112
    %v749 = vpop.permute.xlu0 %748
    %750 = vrot.lane.b32.xlu0 %v216, 112
    %v751 = vpop.permute.xlu0 %750
    %752 = vrot.lane.b32.xlu0 %v213, 80
    %v753 = vpop.permute.xlu0 %752
    %754 = vrot.lane.b32.xlu0 %v216, 80
    %v755 = vpop.permute.xlu0 %754
    %v756 = vsel %vm322, %v749, 0
    %v758 = vsel %vm322, %v751, 0
    %v760 = vsel %vm322, %v753, 0
    %v762 = vsel %vm322, %v755, 0
    %764 = vmatpush.xpose.msra.mxu0 0.0
    %765 = vmatpush.xpose.msra.mxu0 0.0
    %766 = vmatpush.xpose.msra.mxu0 0.0
    %767 = vmatpush.xpose.msra.mxu0 0.0
    %768 = vmatpush.xpose.msra.mxu0 0.0
    %769 = vmatpush.xpose.msra.mxu0 0.0
    %770 = vmatpush.xpose.msra.mxu0 0.0
    %771 = vmatpush.xpose.msra.mxu0 0.0
    %772 = vmatpush.xpose.msra.mxu0 0.0
    %773 = vmatpush.xpose.msra.mxu0 0.0
    %774 = vmatpush.xpose.msra.mxu0 0.0
    %775 = vmatpush.xpose.msra.mxu0 0.0
    %776 = vmatpush.xpose.msra.mxu0 0.0
    %777 = vmatpush.xpose.msra.mxu0 0.0
    %778 = vmatpush.xpose.msra.mxu0 %v762
    %779 = vmatpush.xpose.msra.mxu0 %v760
    %780 = vmatmul.f32.gmra.mxu0 %v756
    %v781 = vpop.f32.mrf.mxu0
    %v782 = vadd.f32 %v314, %v781
    %783 = vmatmul.f32.gmra.mxu0 %v758
    %v784 = vpop.f32.mrf.mxu0
    %v785 = vadd.f32 %v314, %v784
    %786 = vdwg.mxu0
    %787 = vrot.lane.b32.xlu0 %v213, 16
    %v788 = vpop.permute.xlu0 %787
    %789 = vrot.lane.b32.xlu0 %v216, 16
    %v790 = vpop.permute.xlu0 %789
    %791 = vrot.lane.b32.xlu0 %v283, 112
    %v792 = vpop.permute.xlu0 %791
    %v793 = vsel %vm322, %v788, 0
    %v795 = vsel %vm322, %v790, 0
    %v797 = vsel %vm322, %v792, 0
    %799 = vmatpush.xpose.msra.mxu0 0.0
    %800 = vmatpush.xpose.msra.mxu0 0.0
    %801 = vmatpush.xpose.msra.mxu0 0.0
    %802 = vmatpush.xpose.msra.mxu0 0.0
    %803 = vmatpush.xpose.msra.mxu0 0.0
    %804 = vmatpush.xpose.msra.mxu0 0.0
    %805 = vmatpush.xpose.msra.mxu0 0.0
    %806 = vmatpush.xpose.msra.mxu0 0.0
    %807 = vmatpush.xpose.msra.mxu0 0.0
    %808 = vmatpush.xpose.msra.mxu0 0.0
    %809 = vmatpush.xpose.msra.mxu0 0.0
    %810 = vmatpush.xpose.msra.mxu0 0.0
    %811 = vmatpush.xpose.msra.mxu0 0.0
    %812 = vmatpush.xpose.msra.mxu0 0.0
    %813 = vmatpush.xpose.msra.mxu0 0.0
    %814 = vmatpush.xpose.msra.mxu0 %v797
    %815 = vmatmul.f32.gmra.mxu0 %v793
    %v816 = vpop.f32.mrf.mxu0
    %v817 = vadd.f32 %v355, %v816
    %818 = vmatmul.f32.gmra.mxu0 %v795
    %v819 = vpop.f32.mrf.mxu0
    %v820 = vadd.f32 %v355, %v819
    %821 = vdwg.mxu0
    %v822 = vsel %vm391, %v782, -inf
    %823 = vmax.xlane.f32.xlu0 %v822
    %v824 = vpop.xlane.xlu0 %823
    %v825 = vsel %vm391, %v785, -inf
    %826 = vmax.xlane.f32.xlu0 %v825
    %v827 = vpop.xlane.xlu0 %826
    %v828 = vsel %vm322, %v817, -inf
    %829 = vmax.xlane.f32.xlu0 %v828
    %v830 = vpop.xlane.xlu0 %829
    %v831 = vsel %vm322, %v820, -inf
    %832 = vmax.xlane.f32.xlu0 %v831
    %v833 = vpop.xlane.xlu0 %832
    %v834 = vmax.f32 %v824, %v830
    %v835 = vmax.f32 %v827, %v833
    %v836 = vsub.f32 %v782, %v834
    %v837 = vsub.f32 %v785, %v835
    %v838 = vmul.f32 %v836, 1.442695
    %v839 = vpow.pop %v838
    %v840 = vmul.f32 %v837, 1.442695
    %v841 = vpow.pop %v840
    %v842 = vsub.f32 %v817, %v834
    %v843 = vsub.f32 %v820, %v835
    %v844 = vmul.f32 %v842, 1.442695
    %v845 = vpow.pop %v844
    %v846 = vmul.f32 %v843, 1.442695
    %v847 = vpow.pop %v846
    %v848 = vsel %vm391, %v839, 0.0
    %849 = vadd.xlane.f32.xlu0 %v848
    %v850 = vpop.xlane.xlu0 %849
    %v851 = vsel %vm391, %v841, 0.0
    %852 = vadd.xlane.f32.xlu0 %v851
    %v853 = vpop.xlane.xlu0 %852
    %v854 = vsel %vm322, %v845, 0.0
    %855 = vadd.xlane.f32.xlu0 %v854
    %v856 = vpop.xlane.xlu0 %855
    %v857 = vsel %vm322, %v847, 0.0
    %858 = vadd.xlane.f32.xlu0 %v857
    %v859 = vpop.xlane.xlu0 %858
    %v860 = vadd.f32 %v850, %v856
    %v861 = vadd.f32 %v853, %v859
    %v862 = vrcp.pop %v860
    %v863 = vrcp.pop %v861
    %864 = vrot.lane.b32.xlu0 %v283, 80
    %v865 = vpop.permute.xlu0 %864
    %v868 = vsel %vm322, %v845, 0
    %v871 = vsel %vm322, %v847, 0
    %873 = vmatpush.msra.mxu0 0.0
    %874 = vmatpush.msra.mxu0 0.0
    %875 = vmatpush.msra.mxu0 0.0
    %876 = vmatpush.msra.mxu0 0.0
    %877 = vmatpush.msra.mxu0 0.0
    %878 = vmatpush.msra.mxu0 0.0
    %879 = vmatpush.msra.mxu0 0.0
    %880 = vmatpush.msra.mxu0 0.0
    %881 = vmatpush.msra.mxu0 0.0
    %882 = vmatpush.msra.mxu0 0.0
    %883 = vmatpush.msra.mxu0 0.0
    %884 = vmatpush.msra.mxu0 0.0
    %885 = vmatpush.msra.mxu0 0.0
    %886 = vmatpush.msra.mxu0 0.0
    %887 = vmatpush.msra.mxu0 0.0
    %888 = vmatpush.msra.mxu0 %v865
    %889 = vmatmul.f32.gmra.mxu0 %v868
    %v890 = vpop.f32.mrf.mxu0
    %v891 = vadd.f32 0.0, %v890
    %892 = vmatmul.f32.gmra.mxu0 %v871
    %v893 = vpop.f32.mrf.mxu0
    %v894 = vadd.f32 0.0, %v893
    %895 = vdwg.mxu0
    %896 = vrot.lane.b32.xlu0 %v213, 48
    %v897 = vpop.permute.xlu0 %896
    %898 = vrot.lane.b32.xlu0 %v216, 48
    %v899 = vpop.permute.xlu0 %898
    %v903 = vsel %vm391, %v839, 0
    %v906 = vsel %vm391, %v841, 0
    %908 = vmatpush.msra.mxu0 0.0
    %909 = vmatpush.msra.mxu0 0.0
    %910 = vmatpush.msra.mxu0 0.0
    %911 = vmatpush.msra.mxu0 0.0
    %912 = vmatpush.msra.mxu0 0.0
    %913 = vmatpush.msra.mxu0 0.0
    %914 = vmatpush.msra.mxu0 0.0
    %915 = vmatpush.msra.mxu0 0.0
    %916 = vmatpush.msra.mxu0 0.0
    %917 = vmatpush.msra.mxu0 0.0
    %918 = vmatpush.msra.mxu0 0.0
    %919 = vmatpush.msra.mxu0 0.0
    %920 = vmatpush.msra.mxu0 0.0
    %921 = vmatpush.msra.mxu0 0.0
    %922 = vmatpush.msra.mxu0 %v899
    %923 = vmatpush.msra.mxu0 %v897
    %924 = vmatmul.f32.gmra.mxu0 %v903
    %v925 = vpop.f32.mrf.mxu0
    %v926 = vadd.f32 %v891, %v925
    %927 = vmatmul.f32.gmra.mxu0 %v906
    %v928 = vpop.f32.mrf.mxu0
    %v929 = vadd.f32 %v894, %v928
    %930 = vdwg.mxu0
    %v931 = vmul.f32 %v926, %v862
    %v932 = vmul.f32 %v929, %v863
    %v933 = vld [vmem:[#allocation11 + $0x10] sm:$0xff]
    %v935 = vsel %vm322, %v931, 0
    %v938 = vsel %vm322, %v932, 0
    %940 = vmatpush.msra.mxu0 0.0
    %941 = vmatpush.msra.mxu0 0.0
    %942 = vmatpush.msra.mxu0 0.0
    %943 = vmatpush.msra.mxu0 0.0
    %944 = vmatpush.msra.mxu0 0.0
    %945 = vmatpush.msra.mxu0 0.0
    %946 = vmatpush.msra.mxu0 0.0
    %947 = vmatpush.msra.mxu0 0.0
    %948 = vmatpush.msra.mxu0 0.0
    %949 = vmatpush.msra.mxu0 0.0
    %950 = vmatpush.msra.mxu0 0.0
    %951 = vmatpush.msra.mxu0 0.0
    %952 = vmatpush.msra.mxu0 0.0
    %953 = vmatpush.msra.mxu0 0.0
    %954 = vmatpush.msra.mxu0 0.0
    %955 = vmatpush.msra.mxu0 %v933
    %956 = vmatmul.f32.gmra.mxu0 %v935
    %v957 = vpop.f32.mrf.mxu0
    %v958 = vadd.f32 0.0, %v957
    %959 = vmatmul.f32.gmra.mxu0 %v938
    %v960 = vpop.f32.mrf.mxu0
    %v961 = vadd.f32 0.0, %v960
    %962 = vdwg.mxu0
    %v963 = vadd.f32 %v743, %v958
    %v964 = vadd.f32 %v746, %v961
    %965 = vrot.lane.b32.xlu0 %v213, 104
    %v966 = vpop.permute.xlu0 %965
    %967 = vrot.lane.b32.xlu0 %v216, 104
    %v968 = vpop.permute.xlu0 %967
    %969 = vrot.lane.b32.xlu0 %v213, 72
    %v970 = vpop.permute.xlu0 %969
    %971 = vrot.lane.b32.xlu0 %v216, 72
    %v972 = vpop.permute.xlu0 %971
    %v973 = vsel %vm322, %v966, 0
    %v975 = vsel %vm322, %v968, 0
    %v977 = vsel %vm322, %v970, 0
    %v979 = vsel %vm322, %v972, 0
    %981 = vmatpush.xpose.msra.mxu0 0.0
    %982 = vmatpush.xpose.msra.mxu0 0.0
    %983 = vmatpush.xpose.msra.mxu0 0.0
    %984 = vmatpush.xpose.msra.mxu0 0.0
    %985 = vmatpush.xpose.msra.mxu0 0.0
    %986 = vmatpush.xpose.msra.mxu0 0.0
    %987 = vmatpush.xpose.msra.mxu0 0.0
    %988 = vmatpush.xpose.msra.mxu0 0.0
    %989 = vmatpush.xpose.msra.mxu0 0.0
    %990 = vmatpush.xpose.msra.mxu0 0.0
    %991 = vmatpush.xpose.msra.mxu0 0.0
    %992 = vmatpush.xpose.msra.mxu0 0.0
    %993 = vmatpush.xpose.msra.mxu0 0.0
    %994 = vmatpush.xpose.msra.mxu0 0.0
    %995 = vmatpush.xpose.msra.mxu0 %v979
    %996 = vmatpush.xpose.msra.mxu0 %v977
    %997 = vmatmul.f32.gmra.mxu0 %v973
    %v998 = vpop.f32.mrf.mxu0
    %v999 = vadd.f32 %v314, %v998
    %1000 = vmatmul.f32.gmra.mxu0 %v975
    %v1001 = vpop.f32.mrf.mxu0
    %v1002 = vadd.f32 %v314, %v1001
    %1003 = vdwg.mxu0
    %1004 = vrot.lane.b32.xlu0 %v213, 8
    %v1005 = vpop.permute.xlu0 %1004
    %1006 = vrot.lane.b32.xlu0 %v216, 8
    %v1007 = vpop.permute.xlu0 %1006
    %1008 = vrot.lane.b32.xlu0 %v283, 104
    %v1009 = vpop.permute.xlu0 %1008
    %v1010 = vsel %vm322, %v1005, 0
    %v1012 = vsel %vm322, %v1007, 0
    %v1014 = vsel %vm322, %v1009, 0
    %1016 = vmatpush.xpose.msra.mxu0 0.0
    %1017 = vmatpush.xpose.msra.mxu0 0.0
    %1018 = vmatpush.xpose.msra.mxu0 0.0
    %1019 = vmatpush.xpose.msra.mxu0 0.0
    %1020 = vmatpush.xpose.msra.mxu0 0.0
    %1021 = vmatpush.xpose.msra.mxu0 0.0
    %1022 = vmatpush.xpose.msra.mxu0 0.0
    %1023 = vmatpush.xpose.msra.mxu0 0.0
    %1024 = vmatpush.xpose.msra.mxu0 0.0
    %1025 = vmatpush.xpose.msra.mxu0 0.0
    %1026 = vmatpush.xpose.msra.mxu0 0.0
    %1027 = vmatpush.xpose.msra.mxu0 0.0
    %1028 = vmatpush.xpose.msra.mxu0 0.0
    %1029 = vmatpush.xpose.msra.mxu0 0.0
    %1030 = vmatpush.xpose.msra.mxu0 0.0
    %1031 = vmatpush.xpose.msra.mxu0 %v1014
    %1032 = vmatmul.f32.gmra.mxu0 %v1010
    %v1033 = vpop.f32.mrf.mxu0
    %v1034 = vadd.f32 %v355, %v1033
    %1035 = vmatmul.f32.gmra.mxu0 %v1012
    %v1036 = vpop.f32.mrf.mxu0
    %v1037 = vadd.f32 %v355, %v1036
    %1038 = vdwg.mxu0
    %v1039 = vsel %vm391, %v999, -inf
    %1040 = vmax.xlane.f32.xlu0 %v1039
    %v1041 = vpop.xlane.xlu0 %1040
    %v1042 = vsel %vm391, %v1002, -inf
    %1043 = vmax.xlane.f32.xlu0 %v1042
    %v1044 = vpop.xlane.xlu0 %1043
    %v1045 = vsel %vm322, %v1034, -inf
    %1046 = vmax.xlane.f32.xlu0 %v1045
    %v1047 = vpop.xlane.xlu0 %1046
    %v1048 = vsel %vm322, %v1037, -inf
    %1049 = vmax.xlane.f32.xlu0 %v1048
    %v1050 = vpop.xlane.xlu0 %1049
    %v1051 = vmax.f32 %v1041, %v1047
    %v1052 = vmax.f32 %v1044, %v1050
    %v1053 = vsub.f32 %v999, %v1051
    %v1054 = vsub.f32 %v1002, %v1052
    %v1055 = vmul.f32 %v1053, 1.442695
    %v1056 = vpow.pop %v1055
    %v1057 = vmul.f32 %v1054, 1.442695
    %v1058 = vpow.pop %v1057
    %v1059 = vsub.f32 %v1034, %v1051
    %v1060 = vsub.f32 %v1037, %v1052
    %v1061 = vmul.f32 %v1059, 1.442695
    %v1062 = vpow.pop %v1061
    %v1063 = vmul.f32 %v1060, 1.442695
    %v1064 = vpow.pop %v1063
    %v1065 = vsel %vm391, %v1056, 0.0
    %1066 = vadd.xlane.f32.xlu0 %v1065
    %v1067 = vpop.xlane.xlu0 %1066
    %v1068 = vsel %vm391, %v1058, 0.0
    %1069 = vadd.xlane.f32.xlu0 %v1068
    %v1070 = vpop.xlane.xlu0 %1069
    %v1071 = vsel %vm322, %v1062, 0.0
    %1072 = vadd.xlane.f32.xlu0 %v1071
    %v1073 = vpop.xlane.xlu0 %1072
    %v1074 = vsel %vm322, %v1064, 0.0
    %1075 = vadd.xlane.f32.xlu0 %v1074
    %v1076 = vpop.xlane.xlu0 %1075
    %v1077 = vadd.f32 %v1067, %v1073
    %v1078 = vadd.f32 %v1070, %v1076
    %v1079 = vrcp.pop %v1077
    %v1080 = vrcp.pop %v1078
    %1081 = vrot.lane.b32.xlu0 %v283, 72
    %v1082 = vpop.permute.xlu0 %1081
    %v1085 = vsel %vm322, %v1062, 0
    %v1088 = vsel %vm322, %v1064, 0
    %1090 = vmatpush.msra.mxu0 0.0
    %1091 = vmatpush.msra.mxu0 0.0
    %1092 = vmatpush.msra.mxu0 0.0
    %1093 = vmatpush.msra.mxu0 0.0
    %1094 = vmatpush.msra.mxu0 0.0
    %1095 = vmatpush.msra.mxu0 0.0
    %1096 = vmatpush.msra.mxu0 0.0
    %1097 = vmatpush.msra.mxu0 0.0
    %1098 = vmatpush.msra.mxu0 0.0
    %1099 = vmatpush.msra.mxu0 0.0
    %1100 = vmatpush.msra.mxu0 0.0
    %1101 = vmatpush.msra.mxu0 0.0
    %1102 = vmatpush.msra.mxu0 0.0
    %1103 = vmatpush.msra.mxu0 0.0
    %1104 = vmatpush.msra.mxu0 0.0
    %1105 = vmatpush.msra.mxu0 %v1082
    %1106 = vmatmul.f32.gmra.mxu0 %v1085
    %v1107 = vpop.f32.mrf.mxu0
    %v1108 = vadd.f32 0.0, %v1107
    %1109 = vmatmul.f32.gmra.mxu0 %v1088
    %v1110 = vpop.f32.mrf.mxu0
    %v1111 = vadd.f32 0.0, %v1110
    %1112 = vdwg.mxu0
    %1113 = vrot.lane.b32.xlu0 %v213, 40
    %v1114 = vpop.permute.xlu0 %1113
    %1115 = vrot.lane.b32.xlu0 %v216, 40
    %v1116 = vpop.permute.xlu0 %1115
    %v1120 = vsel %vm391, %v1056, 0
    %v1123 = vsel %vm391, %v1058, 0
    %1125 = vmatpush.msra.mxu0 0.0
    %1126 = vmatpush.msra.mxu0 0.0
    %1127 = vmatpush.msra.mxu0 0.0
    %1128 = vmatpush.msra.mxu0 0.0
    %1129 = vmatpush.msra.mxu0 0.0
    %1130 = vmatpush.msra.mxu0 0.0
    %1131 = vmatpush.msra.mxu0 0.0
    %1132 = vmatpush.msra.mxu0 0.0
    %1133 = vmatpush.msra.mxu0 0.0
    %1134 = vmatpush.msra.mxu0 0.0
    %1135 = vmatpush.msra.mxu0 0.0
    %1136 = vmatpush.msra.mxu0 0.0
    %1137 = vmatpush.msra.mxu0 0.0
    %1138 = vmatpush.msra.mxu0 0.0
    %1139 = vmatpush.msra.mxu0 %v1116
    %1140 = vmatpush.msra.mxu0 %v1114
    %1141 = vmatmul.f32.gmra.mxu0 %v1120
    %v1142 = vpop.f32.mrf.mxu0
    %v1143 = vadd.f32 %v1108, %v1142
    %1144 = vmatmul.f32.gmra.mxu0 %v1123
    %v1145 = vpop.f32.mrf.mxu0
    %v1146 = vadd.f32 %v1111, %v1145
    %1147 = vdwg.mxu0
    %v1148 = vmul.f32 %v1143, %v1079
    %v1149 = vmul.f32 %v1146, %v1080
    %v1150 = vld [vmem:[#allocation11 + $0x18] sm:$0xff]
    %v1152 = vsel %vm322, %v1148, 0
    %v1155 = vsel %vm322, %v1149, 0
    %1157 = vmatpush.msra.mxu0 0.0
    %1158 = vmatpush.msra.mxu0 0.0
    %1159 = vmatpush.msra.mxu0 0.0
    %1160 = vmatpush.msra.mxu0 0.0
    %1161 = vmatpush.msra.mxu0 0.0
    %1162 = vmatpush.msra.mxu0 0.0
    %1163 = vmatpush.msra.mxu0 0.0
    %1164 = vmatpush.msra.mxu0 0.0
    %1165 = vmatpush.msra.mxu0 0.0
    %1166 = vmatpush.msra.mxu0 0.0
    %1167 = vmatpush.msra.mxu0 0.0
    %1168 = vmatpush.msra.mxu0 0.0
    %1169 = vmatpush.msra.mxu0 0.0
    %1170 = vmatpush.msra.mxu0 0.0
    %1171 = vmatpush.msra.mxu0 0.0
    %1172 = vmatpush.msra.mxu0 %v1150
    %1173 = vmatmul.f32.gmra.mxu0 %v1152
    %v1174 = vpop.f32.mrf.mxu0
    %v1175 = vadd.f32 0.0, %v1174
    %1176 = vmatmul.f32.gmra.mxu0 %v1155
    %v1177 = vpop.f32.mrf.mxu0
    %v1178 = vadd.f32 0.0, %v1177
    %1179 = vdwg.mxu0
    %v1180 = vadd.f32 %v963, %v1175
    %v1181 = vadd.f32 %v964, %v1178
    %v1182 = vld [vmem:[%s9] sm:$0x1]
    %v1184 = vperm.slane %v1182, 0
    %v1186 = vadd.f32 %v1180, %v1184
    %v1187 = vadd.f32 %v1181, %v1184
    %1188 = vrot.lane.b32.xlu0 %v283, 64
    %v1189 = vpop.permute.xlu0 %1188
    %v1190 = vsel %vm322, %v1189, 0
    %v1193 = vsel %vm322, %v242, 0
    %v1196 = vsel %vm322, %v245, 0
    %1198 = vmatpush.xpose.msra.mxu0 0.0
    %1199 = vmatpush.xpose.msra.mxu0 0.0
    %1200 = vmatpush.xpose.msra.mxu0 0.0
    %1201 = vmatpush.xpose.msra.mxu0 0.0
    %1202 = vmatpush.xpose.msra.mxu0 0.0
    %1203 = vmatpush.xpose.msra.mxu0 0.0
    %1204 = vmatpush.xpose.msra.mxu0 0.0
    %1205 = vmatpush.xpose.msra.mxu0 0.0
    %1206 = vmatpush.xpose.msra.mxu0 0.0
    %1207 = vmatpush.xpose.msra.mxu0 0.0
    %1208 = vmatpush.xpose.msra.mxu0 0.0
    %1209 = vmatpush.xpose.msra.mxu0 0.0
    %1210 = vmatpush.xpose.msra.mxu0 0.0
    %1211 = vmatpush.xpose.msra.mxu0 0.0
    %1212 = vmatpush.xpose.msra.mxu0 %v1196
    %1213 = vmatpush.xpose.msra.mxu0 %v1193
    %1214 = vmatmul.f32.gmra.mxu0 %v1190
    %v1215 = vpop.f32.mrf.mxu0
    %v1216 = vadd.f32 %v314, %v1215
    %1217 = vdwg.mxu0
    %1218 = vrot.lane.b32.xlu0 %v283, 32
    %v1219 = vpop.permute.xlu0 %1218
    %v1220 = vsel %vm322, %v1219, 0
    %v1223 = vsel %vm322, %v306, 0
    %1225 = vmatpush.xpose.msra.mxu0 0.0
    %1226 = vmatpush.xpose.msra.mxu0 0.0
    %1227 = vmatpush.xpose.msra.mxu0 0.0
    %1228 = vmatpush.xpose.msra.mxu0 0.0
    %1229 = vmatpush.xpose.msra.mxu0 0.0
    %1230 = vmatpush.xpose.msra.mxu0 0.0
    %1231 = vmatpush.xpose.msra.mxu0 0.0
    %1232 = vmatpush.xpose.msra.mxu0 0.0
    %1233 = vmatpush.xpose.msra.mxu0 0.0
    %1234 = vmatpush.xpose.msra.mxu0 0.0
    %1235 = vmatpush.xpose.msra.mxu0 0.0
    %1236 = vmatpush.xpose.msra.mxu0 0.0
    %1237 = vmatpush.xpose.msra.mxu0 0.0
    %1238 = vmatpush.xpose.msra.mxu0 0.0
    %1239 = vmatpush.xpose.msra.mxu0 0.0
    %1240 = vmatpush.xpose.msra.mxu0 %v1223
    %1241 = vmatmul.f32.gmra.mxu0 %v1220
    %v1242 = vpop.f32.mrf.mxu0
    %v1243 = vadd.f32 %v355, %v1242
    %1244 = vdwg.mxu0
    %v1245 = vsel %vm391, %v1216, -inf
    %1246 = vmax.xlane.f32.xlu0 %v1245
    %v1247 = vpop.xlane.xlu0 %1246
    %v1248 = vsel %vm322, %v1243, -inf
    %1249 = vmax.xlane.f32.xlu0 %v1248
    %v1250 = vpop.xlane.xlu0 %1249
    %v1251 = vmax.f32 %v1247, %v1250
    %v1252 = vsub.f32 %v1216, %v1251
    %v1253 = vmul.f32 %v1252, 1.442695
    %v1254 = vpow.pop %v1253
    %v1255 = vsub.f32 %v1243, %v1251
    %v1256 = vmul.f32 %v1255, 1.442695
    %v1257 = vpow.pop %v1256
    %v1258 = vsel %vm391, %v1254, 0.0
    %1259 = vadd.xlane.f32.xlu0 %v1258
    %v1260 = vpop.xlane.xlu0 %1259
    %v1261 = vsel %vm322, %v1257, 0.0
    %1262 = vadd.xlane.f32.xlu0 %v1261
    %v1263 = vpop.xlane.xlu0 %1262
    %v1264 = vadd.f32 %v1260, %v1263
    %v1265 = vrcp.pop %v1264
    %1266 = vrot.lane.b32.xlu0 %v306, 96
    %v1267 = vpop.permute.xlu0 %1266
    %v1270 = vsel %vm322, %v1257, 0
    %1272 = vmatpush.msra.mxu0 0.0
    %1273 = vmatpush.msra.mxu0 0.0
    %1274 = vmatpush.msra.mxu0 0.0
    %1275 = vmatpush.msra.mxu0 0.0
    %1276 = vmatpush.msra.mxu0 0.0
    %1277 = vmatpush.msra.mxu0 0.0
    %1278 = vmatpush.msra.mxu0 0.0
    %1279 = vmatpush.msra.mxu0 0.0
    %1280 = vmatpush.msra.mxu0 0.0
    %1281 = vmatpush.msra.mxu0 0.0
    %1282 = vmatpush.msra.mxu0 0.0
    %1283 = vmatpush.msra.mxu0 0.0
    %1284 = vmatpush.msra.mxu0 0.0
    %1285 = vmatpush.msra.mxu0 0.0
    %1286 = vmatpush.msra.mxu0 0.0
    %1287 = vmatpush.msra.mxu0 %v1267
    %1288 = vmatmul.f32.gmra.mxu0 %v1270
    %v1289 = vpop.f32.mrf.mxu0
    %v1290 = vadd.f32 0.0, %v1289
    %1291 = vdwg.mxu0
    %1292 = vrot.lane.b32.xlu0 %v242, 96
    %v1293 = vpop.permute.xlu0 %1292
    %1294 = vrot.lane.b32.xlu0 %v245, 96
    %v1295 = vpop.permute.xlu0 %1294
    %v1299 = vsel %vm391, %v1254, 0
    %1301 = vmatpush.msra.mxu0 0.0
    %1302 = vmatpush.msra.mxu0 0.0
    %1303 = vmatpush.msra.mxu0 0.0
    %1304 = vmatpush.msra.mxu0 0.0
    %1305 = vmatpush.msra.mxu0 0.0
    %1306 = vmatpush.msra.mxu0 0.0
    %1307 = vmatpush.msra.mxu0 0.0
    %1308 = vmatpush.msra.mxu0 0.0
    %1309 = vmatpush.msra.mxu0 0.0
    %1310 = vmatpush.msra.mxu0 0.0
    %1311 = vmatpush.msra.mxu0 0.0
    %1312 = vmatpush.msra.mxu0 0.0
    %1313 = vmatpush.msra.mxu0 0.0
    %1314 = vmatpush.msra.mxu0 0.0
    %1315 = vmatpush.msra.mxu0 %v1295
    %1316 = vmatpush.msra.mxu0 %v1293
    %1317 = vmatmul.f32.gmra.mxu0 %v1299
    %v1318 = vpop.f32.mrf.mxu0
    %v1319 = vadd.f32 %v1290, %v1318
    %1320 = vdwg.mxu0
    %v1321 = vmul.f32 %v1319, %v1265
    %v1322 = vld [vmem:[#allocation13] sm:$0xff]
    %1323 = vrot.lane.b32.xlu0 %v283, 56
    %v1324 = vpop.permute.xlu0 %1323
    %1325 = vrot.lane.b32.xlu0 %v242, 120
    %v1326 = vpop.permute.xlu0 %1325
    %1327 = vrot.lane.b32.xlu0 %v245, 120
    %v1328 = vpop.permute.xlu0 %1327
    %v1329 = vsel %vm322, %v1324, 0
    %v1331 = vsel %vm322, %v1326, 0
    %v1333 = vsel %vm322, %v1328, 0
    %1335 = vmatpush.xpose.msra.mxu0 0.0
    %1336 = vmatpush.xpose.msra.mxu0 0.0
    %1337 = vmatpush.xpose.msra.mxu0 0.0
    %1338 = vmatpush.xpose.msra.mxu0 0.0
    %1339 = vmatpush.xpose.msra.mxu0 0.0
    %1340 = vmatpush.xpose.msra.mxu0 0.0
    %1341 = vmatpush.xpose.msra.mxu0 0.0
    %1342 = vmatpush.xpose.msra.mxu0 0.0
    %1343 = vmatpush.xpose.msra.mxu0 0.0
    %1344 = vmatpush.xpose.msra.mxu0 0.0
    %1345 = vmatpush.xpose.msra.mxu0 0.0
    %1346 = vmatpush.xpose.msra.mxu0 0.0
    %1347 = vmatpush.xpose.msra.mxu0 0.0
    %1348 = vmatpush.xpose.msra.mxu0 0.0
    %1349 = vmatpush.xpose.msra.mxu0 %v1333
    %1350 = vmatpush.xpose.msra.mxu0 %v1331
    %1351 = vmatmul.f32.gmra.mxu0 %v1329
    %v1352 = vpop.f32.mrf.mxu0
    %v1353 = vadd.f32 %v314, %v1352
    %1354 = vdwg.mxu0
    %1355 = vrot.lane.b32.xlu0 %v283, 24
    %v1356 = vpop.permute.xlu0 %1355
    %1357 = vrot.lane.b32.xlu0 %v306, 120
    %v1358 = vpop.permute.xlu0 %1357
    %v1359 = vsel %vm322, %v1356, 0
    %v1361 = vsel %vm322, %v1358, 0
    %1363 = vmatpush.xpose.msra.mxu0 0.0
    %1364 = vmatpush.xpose.msra.mxu0 0.0
    %1365 = vmatpush.xpose.msra.mxu0 0.0
    %1366 = vmatpush.xpose.msra.mxu0 0.0
    %1367 = vmatpush.xpose.msra.mxu0 0.0
    %1368 = vmatpush.xpose.msra.mxu0 0.0
    %1369 = vmatpush.xpose.msra.mxu0 0.0
    %1370 = vmatpush.xpose.msra.mxu0 0.0
    %1371 = vmatpush.xpose.msra.mxu0 0.0
    %1372 = vmatpush.xpose.msra.mxu0 0.0
    %1373 = vmatpush.xpose.msra.mxu0 0.0
    %1374 = vmatpush.xpose.msra.mxu0 0.0
    %1375 = vmatpush.xpose.msra.mxu0 0.0
    %1376 = vmatpush.xpose.msra.mxu0 0.0
    %1377 = vmatpush.xpose.msra.mxu0 0.0
    %1378 = vmatpush.xpose.msra.mxu0 %v1361
    %1379 = vmatmul.f32.gmra.mxu0 %v1359
    %v1380 = vpop.f32.mrf.mxu0
    %v1381 = vadd.f32 %v355, %v1380
    %1382 = vdwg.mxu0
    %v1383 = vsel %vm391, %v1353, -inf
    %1384 = vmax.xlane.f32.xlu0 %v1383
    %v1385 = vpop.xlane.xlu0 %1384
    %v1386 = vsel %vm322, %v1381, -inf
    %1387 = vmax.xlane.f32.xlu0 %v1386
    %v1388 = vpop.xlane.xlu0 %1387
    %v1389 = vmax.f32 %v1385, %v1388
    %v1390 = vsub.f32 %v1353, %v1389
    %v1391 = vmul.f32 %v1390, 1.442695
    %v1392 = vpow.pop %v1391
    %v1393 = vsub.f32 %v1381, %v1389
    %v1394 = vmul.f32 %v1393, 1.442695
    %v1395 = vpow.pop %v1394
    %v1396 = vsel %vm391, %v1392, 0.0
    %1397 = vadd.xlane.f32.xlu0 %v1396
    %v1398 = vpop.xlane.xlu0 %1397
    %v1399 = vsel %vm322, %v1395, 0.0
    %1400 = vadd.xlane.f32.xlu0 %v1399
    %v1401 = vpop.xlane.xlu0 %1400
    %v1402 = vadd.f32 %v1398, %v1401
    %v1403 = vrcp.pop %v1402
    %1404 = vrot.lane.b32.xlu0 %v306, 88
    %v1405 = vpop.permute.xlu0 %1404
    %v1408 = vsel %vm322, %v1395, 0
    %1410 = vmatpush.msra.mxu0 0.0
    %1411 = vmatpush.msra.mxu0 0.0
    %1412 = vmatpush.msra.mxu0 0.0
    %1413 = vmatpush.msra.mxu0 0.0
    %1414 = vmatpush.msra.mxu0 0.0
    %1415 = vmatpush.msra.mxu0 0.0
    %1416 = vmatpush.msra.mxu0 0.0
    %1417 = vmatpush.msra.mxu0 0.0
    %1418 = vmatpush.msra.mxu0 0.0
    %1419 = vmatpush.msra.mxu0 0.0
    %1420 = vmatpush.msra.mxu0 0.0
    %1421 = vmatpush.msra.mxu0 0.0
    %1422 = vmatpush.msra.mxu0 0.0
    %1423 = vmatpush.msra.mxu0 0.0
    %1424 = vmatpush.msra.mxu0 0.0
    %1425 = vmatpush.msra.mxu0 %v1405
    %1426 = vmatmul.f32.gmra.mxu0 %v1408
    %v1427 = vpop.f32.mrf.mxu0
    %v1428 = vadd.f32 0.0, %v1427
    %1429 = vdwg.mxu0
    %1430 = vrot.lane.b32.xlu0 %v242, 88
    %v1431 = vpop.permute.xlu0 %1430
    %1432 = vrot.lane.b32.xlu0 %v245, 88
    %v1433 = vpop.permute.xlu0 %1432
    %v1437 = vsel %vm391, %v1392, 0
    %1439 = vmatpush.msra.mxu0 0.0
    %1440 = vmatpush.msra.mxu0 0.0
    %1441 = vmatpush.msra.mxu0 0.0
    %1442 = vmatpush.msra.mxu0 0.0
    %1443 = vmatpush.msra.mxu0 0.0
    %1444 = vmatpush.msra.mxu0 0.0
    %1445 = vmatpush.msra.mxu0 0.0
    %1446 = vmatpush.msra.mxu0 0.0
    %1447 = vmatpush.msra.mxu0 0.0
    %1448 = vmatpush.msra.mxu0 0.0
    %1449 = vmatpush.msra.mxu0 0.0
    %1450 = vmatpush.msra.mxu0 0.0
    %1451 = vmatpush.msra.mxu0 0.0
    %1452 = vmatpush.msra.mxu0 0.0
    %1453 = vmatpush.msra.mxu0 %v1433
    %1454 = vmatpush.msra.mxu0 %v1431
    %1455 = vmatmul.f32.gmra.mxu0 %v1437
    %v1456 = vpop.f32.mrf.mxu0
    %v1457 = vadd.f32 %v1428, %v1456
    %1458 = vdwg.mxu0
    %v1459 = vmul.f32 %v1457, %v1403
    %v1460 = vld [vmem:[#allocation13 + $0x8] sm:$0xff]
    %v1462 = vsel %vm322, %v1459, 0
    %1464 = vmatpush.msra.mxu0 0.0
    %1465 = vmatpush.msra.mxu0 0.0
    %1466 = vmatpush.msra.mxu0 0.0
    %1467 = vmatpush.msra.mxu0 0.0
    %1468 = vmatpush.msra.mxu0 0.0
    %1469 = vmatpush.msra.mxu0 0.0
    %1470 = vmatpush.msra.mxu0 0.0
    %1471 = vmatpush.msra.mxu0 0.0
    %1472 = vmatpush.msra.mxu0 0.0
    %1473 = vmatpush.msra.mxu0 0.0
    %1474 = vmatpush.msra.mxu0 0.0
    %1475 = vmatpush.msra.mxu0 0.0
    %1476 = vmatpush.msra.mxu0 0.0
    %1477 = vmatpush.msra.mxu0 0.0
    %1478 = vmatpush.msra.mxu0 0.0
    %1479 = vmatpush.msra.mxu0 %v1460
    %1480 = vmatmul.f32.gmra.mxu0 %v1462
    %v1481 = vpop.f32.mrf.mxu0
    %v1482 = vadd.f32 0.0, %v1481
    %1483 = vdwg.mxu0
    %v1485 = vsel %vm322, %v1321, 0
    %1487 = vmatpush.msra.mxu0 0.0
    %1488 = vmatpush.msra.mxu0 0.0
    %1489 = vmatpush.msra.mxu0 0.0
    %1490 = vmatpush.msra.mxu0 0.0
    %1491 = vmatpush.msra.mxu0 0.0
    %1492 = vmatpush.msra.mxu0 0.0
    %1493 = vmatpush.msra.mxu0 0.0
    %1494 = vmatpush.msra.mxu0 0.0
    %1495 = vmatpush.msra.mxu0 0.0
    %1496 = vmatpush.msra.mxu0 0.0
    %1497 = vmatpush.msra.mxu0 0.0
    %1498 = vmatpush.msra.mxu0 0.0
    %1499 = vmatpush.msra.mxu0 0.0
    %1500 = vmatpush.msra.mxu0 0.0
    %1501 = vmatpush.msra.mxu0 0.0
    %1502 = vmatpush.msra.mxu0 %v1322
    %1503 = vmatmul.f32.gmra.mxu0 %v1485
    %v1504 = vpop.f32.mrf.mxu0
    %v1505 = vadd.f32 %v1482, %v1504
    %1506 = vdwg.mxu0
    %1507 = vrot.lane.b32.xlu0 %v283, 48
    %v1508 = vpop.permute.xlu0 %1507
    %1509 = vrot.lane.b32.xlu0 %v242, 112
    %v1510 = vpop.permute.xlu0 %1509
    %1511 = vrot.lane.b32.xlu0 %v245, 112
    %v1512 = vpop.permute.xlu0 %1511
    %v1513 = vsel %vm322, %v1508, 0
    %v1515 = vsel %vm322, %v1510, 0
    %v1517 = vsel %vm322, %v1512, 0
    %1519 = vmatpush.xpose.msra.mxu0 0.0
    %1520 = vmatpush.xpose.msra.mxu0 0.0
    %1521 = vmatpush.xpose.msra.mxu0 0.0
    %1522 = vmatpush.xpose.msra.mxu0 0.0
    %1523 = vmatpush.xpose.msra.mxu0 0.0
    %1524 = vmatpush.xpose.msra.mxu0 0.0
    %1525 = vmatpush.xpose.msra.mxu0 0.0
    %1526 = vmatpush.xpose.msra.mxu0 0.0
    %1527 = vmatpush.xpose.msra.mxu0 0.0
    %1528 = vmatpush.xpose.msra.mxu0 0.0
    %1529 = vmatpush.xpose.msra.mxu0 0.0
    %1530 = vmatpush.xpose.msra.mxu0 0.0
    %1531 = vmatpush.xpose.msra.mxu0 0.0
    %1532 = vmatpush.xpose.msra.mxu0 0.0
    %1533 = vmatpush.xpose.msra.mxu0 %v1517
    %1534 = vmatpush.xpose.msra.mxu0 %v1515
    %1535 = vmatmul.f32.gmra.mxu0 %v1513
    %v1536 = vpop.f32.mrf.mxu0
    %v1537 = vadd.f32 %v314, %v1536
    %1538 = vdwg.mxu0
    %1539 = vrot.lane.b32.xlu0 %v283, 16
    %v1540 = vpop.permute.xlu0 %1539
    %1541 = vrot.lane.b32.xlu0 %v306, 112
    %v1542 = vpop.permute.xlu0 %1541
    %v1543 = vsel %vm322, %v1540, 0
    %v1545 = vsel %vm322, %v1542, 0
    %1547 = vmatpush.xpose.msra.mxu0 0.0
    %1548 = vmatpush.xpose.msra.mxu0 0.0
    %1549 = vmatpush.xpose.msra.mxu0 0.0
    %1550 = vmatpush.xpose.msra.mxu0 0.0
    %1551 = vmatpush.xpose.msra.mxu0 0.0
    %1552 = vmatpush.xpose.msra.mxu0 0.0
    %1553 = vmatpush.xpose.msra.mxu0 0.0
    %1554 = vmatpush.xpose.msra.mxu0 0.0
    %1555 = vmatpush.xpose.msra.mxu0 0.0
    %1556 = vmatpush.xpose.msra.mxu0 0.0
    %1557 = vmatpush.xpose.msra.mxu0 0.0
    %1558 = vmatpush.xpose.msra.mxu0 0.0
    %1559 = vmatpush.xpose.msra.mxu0 0.0
    %1560 = vmatpush.xpose.msra.mxu0 0.0
    %1561 = vmatpush.xpose.msra.mxu0 0.0
    %1562 = vmatpush.xpose.msra.mxu0 %v1545
    %1563 = vmatmul.f32.gmra.mxu0 %v1543
    %v1564 = vpop.f32.mrf.mxu0
    %v1565 = vadd.f32 %v355, %v1564
    %1566 = vdwg.mxu0
    %v1567 = vsel %vm391, %v1537, -inf
    %1568 = vmax.xlane.f32.xlu0 %v1567
    %v1569 = vpop.xlane.xlu0 %1568
    %v1570 = vsel %vm322, %v1565, -inf
    %1571 = vmax.xlane.f32.xlu0 %v1570
    %v1572 = vpop.xlane.xlu0 %1571
    %v1573 = vmax.f32 %v1569, %v1572
    %v1574 = vsub.f32 %v1537, %v1573
    %v1575 = vmul.f32 %v1574, 1.442695
    %v1576 = vpow.pop %v1575
    %v1577 = vsub.f32 %v1565, %v1573
    %v1578 = vmul.f32 %v1577, 1.442695
    %v1579 = vpow.pop %v1578
    %v1580 = vsel %vm391, %v1576, 0.0
    %1581 = vadd.xlane.f32.xlu0 %v1580
    %v1582 = vpop.xlane.xlu0 %1581
    %v1583 = vsel %vm322, %v1579, 0.0
    %1584 = vadd.xlane.f32.xlu0 %v1583
    %v1585 = vpop.xlane.xlu0 %1584
    %v1586 = vadd.f32 %v1582, %v1585
    %v1587 = vrcp.pop %v1586
    %1588 = vrot.lane.b32.xlu0 %v306, 80
    %v1589 = vpop.permute.xlu0 %1588
    %v1592 = vsel %vm322, %v1579, 0
    %1594 = vmatpush.msra.mxu0 0.0
    %1595 = vmatpush.msra.mxu0 0.0
    %1596 = vmatpush.msra.mxu0 0.0
    %1597 = vmatpush.msra.mxu0 0.0
    %1598 = vmatpush.msra.mxu0 0.0
    %1599 = vmatpush.msra.mxu0 0.0
    %1600 = vmatpush.msra.mxu0 0.0
    %1601 = vmatpush.msra.mxu0 0.0
    %1602 = vmatpush.msra.mxu0 0.0
    %1603 = vmatpush.msra.mxu0 0.0
    %1604 = vmatpush.msra.mxu0 0.0
    %1605 = vmatpush.msra.mxu0 0.0
    %1606 = vmatpush.msra.mxu0 0.0
    %1607 = vmatpush.msra.mxu0 0.0
    %1608 = vmatpush.msra.mxu0 0.0
    %1609 = vmatpush.msra.mxu0 %v1589
    %1610 = vmatmul.f32.gmra.mxu0 %v1592
    %v1611 = vpop.f32.mrf.mxu0
    %v1612 = vadd.f32 0.0, %v1611
    %1613 = vdwg.mxu0
    %1614 = vrot.lane.b32.xlu0 %v242, 80
    %v1615 = vpop.permute.xlu0 %1614
    %1616 = vrot.lane.b32.xlu0 %v245, 80
    %v1617 = vpop.permute.xlu0 %1616
    %v1621 = vsel %vm391, %v1576, 0
    %1623 = vmatpush.msra.mxu0 0.0
    %1624 = vmatpush.msra.mxu0 0.0
    %1625 = vmatpush.msra.mxu0 0.0
    %1626 = vmatpush.msra.mxu0 0.0
    %1627 = vmatpush.msra.mxu0 0.0
    %1628 = vmatpush.msra.mxu0 0.0
    %1629 = vmatpush.msra.mxu0 0.0
    %1630 = vmatpush.msra.mxu0 0.0
    %1631 = vmatpush.msra.mxu0 0.0
    %1632 = vmatpush.msra.mxu0 0.0
    %1633 = vmatpush.msra.mxu0 0.0
    %1634 = vmatpush.msra.mxu0 0.0
    %1635 = vmatpush.msra.mxu0 0.0
    %1636 = vmatpush.msra.mxu0 0.0
    %1637 = vmatpush.msra.mxu0 %v1617
    %1638 = vmatpush.msra.mxu0 %v1615
    %1639 = vmatmul.f32.gmra.mxu0 %v1621
    %v1640 = vpop.f32.mrf.mxu0
    %v1641 = vadd.f32 %v1612, %v1640
    %1642 = vdwg.mxu0
    %v1643 = vmul.f32 %v1641, %v1587
    %v1644 = vld [vmem:[#allocation13 + $0x10] sm:$0xff]
    %v1646 = vsel %vm322, %v1643, 0
    %1648 = vmatpush.msra.mxu0 0.0
    %1649 = vmatpush.msra.mxu0 0.0
    %1650 = vmatpush.msra.mxu0 0.0
    %1651 = vmatpush.msra.mxu0 0.0
    %1652 = vmatpush.msra.mxu0 0.0
    %1653 = vmatpush.msra.mxu0 0.0
    %1654 = vmatpush.msra.mxu0 0.0
    %1655 = vmatpush.msra.mxu0 0.0
    %1656 = vmatpush.msra.mxu0 0.0
    %1657 = vmatpush.msra.mxu0 0.0
    %1658 = vmatpush.msra.mxu0 0.0
    %1659 = vmatpush.msra.mxu0 0.0
    %1660 = vmatpush.msra.mxu0 0.0
    %1661 = vmatpush.msra.mxu0 0.0
    %1662 = vmatpush.msra.mxu0 0.0
    %1663 = vmatpush.msra.mxu0 %v1644
    %1664 = vmatmul.f32.gmra.mxu0 %v1646
    %v1665 = vpop.f32.mrf.mxu0
    %v1666 = vadd.f32 0.0, %v1665
    %1667 = vdwg.mxu0
    %v1668 = vadd.f32 %v1505, %v1666
    %1669 = vrot.lane.b32.xlu0 %v283, 40
    %v1670 = vpop.permute.xlu0 %1669
    %1671 = vrot.lane.b32.xlu0 %v242, 104
    %v1672 = vpop.permute.xlu0 %1671
    %1673 = vrot.lane.b32.xlu0 %v245, 104
    %v1674 = vpop.permute.xlu0 %1673
    %v1675 = vsel %vm322, %v1670, 0
    %v1677 = vsel %vm322, %v1672, 0
    %v1679 = vsel %vm322, %v1674, 0
    %1681 = vmatpush.xpose.msra.mxu0 0.0
    %1682 = vmatpush.xpose.msra.mxu0 0.0
    %1683 = vmatpush.xpose.msra.mxu0 0.0
    %1684 = vmatpush.xpose.msra.mxu0 0.0
    %1685 = vmatpush.xpose.msra.mxu0 0.0
    %1686 = vmatpush.xpose.msra.mxu0 0.0
    %1687 = vmatpush.xpose.msra.mxu0 0.0
    %1688 = vmatpush.xpose.msra.mxu0 0.0
    %1689 = vmatpush.xpose.msra.mxu0 0.0
    %1690 = vmatpush.xpose.msra.mxu0 0.0
    %1691 = vmatpush.xpose.msra.mxu0 0.0
    %1692 = vmatpush.xpose.msra.mxu0 0.0
    %1693 = vmatpush.xpose.msra.mxu0 0.0
    %1694 = vmatpush.xpose.msra.mxu0 0.0
    %1695 = vmatpush.xpose.msra.mxu0 %v1679
    %1696 = vmatpush.xpose.msra.mxu0 %v1677
    %1697 = vmatmul.f32.gmra.mxu0 %v1675
    %v1698 = vpop.f32.mrf.mxu0
    %v1699 = vadd.f32 %v314, %v1698
    %1700 = vdwg.mxu0
    %1701 = vrot.lane.b32.xlu0 %v283, 8
    %v1702 = vpop.permute.xlu0 %1701
    %1703 = vrot.lane.b32.xlu0 %v306, 104
    %v1704 = vpop.permute.xlu0 %1703
    %v1705 = vsel %vm322, %v1702, 0
    %v1707 = vsel %vm322, %v1704, 0
    %1709 = vmatpush.xpose.msra.mxu0 0.0
    %1710 = vmatpush.xpose.msra.mxu0 0.0
    %1711 = vmatpush.xpose.msra.mxu0 0.0
    %1712 = vmatpush.xpose.msra.mxu0 0.0
    %1713 = vmatpush.xpose.msra.mxu0 0.0
    %1714 = vmatpush.xpose.msra.mxu0 0.0
    %1715 = vmatpush.xpose.msra.mxu0 0.0
    %1716 = vmatpush.xpose.msra.mxu0 0.0
    %1717 = vmatpush.xpose.msra.mxu0 0.0
    %1718 = vmatpush.xpose.msra.mxu0 0.0
    %1719 = vmatpush.xpose.msra.mxu0 0.0
    %1720 = vmatpush.xpose.msra.mxu0 0.0
    %1721 = vmatpush.xpose.msra.mxu0 0.0
    %1722 = vmatpush.xpose.msra.mxu0 0.0
    %1723 = vmatpush.xpose.msra.mxu0 0.0
    %1724 = vmatpush.xpose.msra.mxu0 %v1707
    %1725 = vmatmul.f32.gmra.mxu0 %v1705
    %v1726 = vpop.f32.mrf.mxu0
    %v1727 = vadd.f32 %v355, %v1726
    %1728 = vdwg.mxu0
    %v1729 = vsel %vm391, %v1699, -inf
    %1730 = vmax.xlane.f32.xlu0 %v1729
    %v1731 = vpop.xlane.xlu0 %1730
    %v1732 = vsel %vm322, %v1727, -inf
    %1733 = vmax.xlane.f32.xlu0 %v1732
    %v1734 = vpop.xlane.xlu0 %1733
    %v1735 = vmax.f32 %v1731, %v1734
    %v1736 = vsub.f32 %v1699, %v1735
    %v1737 = vmul.f32 %v1736, 1.442695
    %v1738 = vpow.pop %v1737
    %v1739 = vsub.f32 %v1727, %v1735
    %v1740 = vmul.f32 %v1739, 1.442695
    %v1741 = vpow.pop %v1740
    %v1742 = vsel %vm391, %v1738, 0.0
    %1743 = vadd.xlane.f32.xlu0 %v1742
    %v1744 = vpop.xlane.xlu0 %1743
    %v1745 = vsel %vm322, %v1741, 0.0
    %1746 = vadd.xlane.f32.xlu0 %v1745
    %v1747 = vpop.xlane.xlu0 %1746
    %v1748 = vadd.f32 %v1744, %v1747
    %v1749 = vrcp.pop %v1748
    %1750 = vrot.lane.b32.xlu0 %v306, 72
    %v1751 = vpop.permute.xlu0 %1750
    %v1754 = vsel %vm322, %v1741, 0
    %1756 = vmatpush.msra.mxu0 0.0
    %1757 = vmatpush.msra.mxu0 0.0
    %1758 = vmatpush.msra.mxu0 0.0
    %1759 = vmatpush.msra.mxu0 0.0
    %1760 = vmatpush.msra.mxu0 0.0
    %1761 = vmatpush.msra.mxu0 0.0
    %1762 = vmatpush.msra.mxu0 0.0
    %1763 = vmatpush.msra.mxu0 0.0
    %1764 = vmatpush.msra.mxu0 0.0
    %1765 = vmatpush.msra.mxu0 0.0
    %1766 = vmatpush.msra.mxu0 0.0
    %1767 = vmatpush.msra.mxu0 0.0
    %1768 = vmatpush.msra.mxu0 0.0
    %1769 = vmatpush.msra.mxu0 0.0
    %1770 = vmatpush.msra.mxu0 0.0
    %1771 = vmatpush.msra.mxu0 %v1751
    %1772 = vmatmul.f32.gmra.mxu0 %v1754
    %v1773 = vpop.f32.mrf.mxu0
    %v1774 = vadd.f32 0.0, %v1773
    %1775 = vdwg.mxu0
    %1776 = vrot.lane.b32.xlu0 %v242, 72
    %v1777 = vpop.permute.xlu0 %1776
    %1778 = vrot.lane.b32.xlu0 %v245, 72
    %v1779 = vpop.permute.xlu0 %1778
    %v1783 = vsel %vm391, %v1738, 0
    %1785 = vmatpush.msra.mxu0 0.0
    %1786 = vmatpush.msra.mxu0 0.0
    %1787 = vmatpush.msra.mxu0 0.0
    %1788 = vmatpush.msra.mxu0 0.0
    %1789 = vmatpush.msra.mxu0 0.0
    %1790 = vmatpush.msra.mxu0 0.0
    %1791 = vmatpush.msra.mxu0 0.0
    %1792 = vmatpush.msra.mxu0 0.0
    %1793 = vmatpush.msra.mxu0 0.0
    %1794 = vmatpush.msra.mxu0 0.0
    %1795 = vmatpush.msra.mxu0 0.0
    %1796 = vmatpush.msra.mxu0 0.0
    %1797 = vmatpush.msra.mxu0 0.0
    %1798 = vmatpush.msra.mxu0 0.0
    %1799 = vmatpush.msra.mxu0 %v1779
    %1800 = vmatpush.msra.mxu0 %v1777
    %1801 = vmatmul.f32.gmra.mxu0 %v1783
    %v1802 = vpop.f32.mrf.mxu0
    %v1803 = vadd.f32 %v1774, %v1802
    %1804 = vdwg.mxu0
    %v1805 = vmul.f32 %v1803, %v1749
    %v1806 = vld [vmem:[#allocation13 + $0x18] sm:$0xff]
    %v1808 = vsel %vm322, %v1805, 0
    %1810 = vmatpush.msra.mxu0 0.0
    %1811 = vmatpush.msra.mxu0 0.0
    %1812 = vmatpush.msra.mxu0 0.0
    %1813 = vmatpush.msra.mxu0 0.0
    %1814 = vmatpush.msra.mxu0 0.0
    %1815 = vmatpush.msra.mxu0 0.0
    %1816 = vmatpush.msra.mxu0 0.0
    %1817 = vmatpush.msra.mxu0 0.0
    %1818 = vmatpush.msra.mxu0 0.0
    %1819 = vmatpush.msra.mxu0 0.0
    %1820 = vmatpush.msra.mxu0 0.0
    %1821 = vmatpush.msra.mxu0 0.0
    %1822 = vmatpush.msra.mxu0 0.0
    %1823 = vmatpush.msra.mxu0 0.0
    %1824 = vmatpush.msra.mxu0 0.0
    %1825 = vmatpush.msra.mxu0 %v1806
    %1826 = vmatmul.f32.gmra.mxu0 %v1808
    %v1827 = vpop.f32.mrf.mxu0
    %v1828 = vadd.f32 0.0, %v1827
    %1829 = vdwg.mxu0
    %v1830 = vadd.f32 %v1668, %v1828
    %v1831 = vld [vmem:[%s11] sm:$0x1]
    %v1833 = vperm.slane %v1831, 0
    %v1835 = vadd.f32 %v1830, %v1833
    %1836 = vst.msk [vmem:[#allocation14] sm:$0xff] %vm182, %v1186
    %1837 = vst.msk [vmem:[#allocation14 + $0x8] sm:$0xff] %vm182, %v1187
    %1838 = vst.msk [vmem:[#allocation15] sm:$0xff] %vm182, %v1835
    %s1839 = scalar_lea.vmem [#allocation7], 1
    %v1840 = vld [vmem:[%s1839] sm:$0x1]
    %s1841 = scalar_lea.vmem %s3, 1
    %v1842 = vld [vmem:[%s1841] sm:$0x1]
    %v1844 = vperm.slane %v1840, 0
    %1848 = vrot.lane.b32.xlu0 %v219, 96
    %v1849 = vpop.permute.xlu0 %1848
    %1850 = vrot.lane.b32.xlu0 %v222, 96
    %v1851 = vpop.permute.xlu0 %1850
    %v1852 = vsel %vm322, %v219, 0
    %v1854 = vsel %vm322, %v222, 0
    %v1856 = vsel %vm322, %v1849, 0
    %v1858 = vsel %vm322, %v1851, 0
    %1860 = vmatpush.xpose.msra.mxu0 0.0
    %1861 = vmatpush.xpose.msra.mxu0 0.0
    %1862 = vmatpush.xpose.msra.mxu0 0.0
    %1863 = vmatpush.xpose.msra.mxu0 0.0
    %1864 = vmatpush.xpose.msra.mxu0 0.0
    %1865 = vmatpush.xpose.msra.mxu0 0.0
    %1866 = vmatpush.xpose.msra.mxu0 0.0
    %1867 = vmatpush.xpose.msra.mxu0 0.0
    %1868 = vmatpush.xpose.msra.mxu0 0.0
    %1869 = vmatpush.xpose.msra.mxu0 0.0
    %1870 = vmatpush.xpose.msra.mxu0 0.0
    %1871 = vmatpush.xpose.msra.mxu0 0.0
    %1872 = vmatpush.xpose.msra.mxu0 0.0
    %1873 = vmatpush.xpose.msra.mxu0 0.0
    %1874 = vmatpush.xpose.msra.mxu0 %v1858
    %1875 = vmatpush.xpose.msra.mxu0 %v1856
    %1876 = vmatmul.f32.gmra.mxu0 %v1852
    %v1877 = vpop.f32.mrf.mxu0
    %v1878 = vadd.f32 %v1844, %v1877
    %1879 = vmatmul.f32.gmra.mxu0 %v1854
    %v1880 = vpop.f32.mrf.mxu0
    %v1881 = vadd.f32 %v1844, %v1880
    %1882 = vdwg.mxu0
    %v1884 = vperm.slane %v1842, 0
    %1886 = vrot.lane.b32.xlu0 %v219, 32
    %v1887 = vpop.permute.xlu0 %1886
    %1888 = vrot.lane.b32.xlu0 %v222, 32
    %v1889 = vpop.permute.xlu0 %1888
    %v1890 = vsel %vm322, %v1887, 0
    %v1892 = vsel %vm322, %v1889, 0
    %v1895 = vsel %vm322, %v286, 0
    %1897 = vmatpush.xpose.msra.mxu0 0.0
    %1898 = vmatpush.xpose.msra.mxu0 0.0
    %1899 = vmatpush.xpose.msra.mxu0 0.0
    %1900 = vmatpush.xpose.msra.mxu0 0.0
    %1901 = vmatpush.xpose.msra.mxu0 0.0
    %1902 = vmatpush.xpose.msra.mxu0 0.0
    %1903 = vmatpush.xpose.msra.mxu0 0.0
    %1904 = vmatpush.xpose.msra.mxu0 0.0
    %1905 = vmatpush.xpose.msra.mxu0 0.0
    %1906 = vmatpush.xpose.msra.mxu0 0.0
    %1907 = vmatpush.xpose.msra.mxu0 0.0
    %1908 = vmatpush.xpose.msra.mxu0 0.0
    %1909 = vmatpush.xpose.msra.mxu0 0.0
    %1910 = vmatpush.xpose.msra.mxu0 0.0
    %1911 = vmatpush.xpose.msra.mxu0 0.0
    %1912 = vmatpush.xpose.msra.mxu0 %v1895
    %1913 = vmatmul.f32.gmra.mxu0 %v1890
    %v1914 = vpop.f32.mrf.mxu0
    %v1915 = vadd.f32 %v1884, %v1914
    %1916 = vmatmul.f32.gmra.mxu0 %v1892
    %v1917 = vpop.f32.mrf.mxu0
    %v1918 = vadd.f32 %v1884, %v1917
    %1919 = vdwg.mxu0
    %v1920 = vsel %vm391, %v1878, -inf
    %1921 = vmax.xlane.f32.xlu0 %v1920
    %v1922 = vpop.xlane.xlu0 %1921
    %v1923 = vsel %vm391, %v1881, -inf
    %1924 = vmax.xlane.f32.xlu0 %v1923
    %v1925 = vpop.xlane.xlu0 %1924
    %v1926 = vsel %vm322, %v1915, -inf
    %1927 = vmax.xlane.f32.xlu0 %v1926
    %v1928 = vpop.xlane.xlu0 %1927
    %v1929 = vsel %vm322, %v1918, -inf
    %1930 = vmax.xlane.f32.xlu0 %v1929
    %v1931 = vpop.xlane.xlu0 %1930
    %v1932 = vmax.f32 %v1922, %v1928
    %v1933 = vmax.f32 %v1925, %v1931
    %v1934 = vsub.f32 %v1878, %v1932
    %v1935 = vsub.f32 %v1881, %v1933
    %v1936 = vmul.f32 %v1934, 1.442695
    %v1937 = vpow.pop %v1936
    %v1938 = vmul.f32 %v1935, 1.442695
    %v1939 = vpow.pop %v1938
    %v1940 = vsub.f32 %v1915, %v1932
    %v1941 = vsub.f32 %v1918, %v1933
    %v1942 = vmul.f32 %v1940, 1.442695
    %v1943 = vpow.pop %v1942
    %v1944 = vmul.f32 %v1941, 1.442695
    %v1945 = vpow.pop %v1944
    %v1946 = vsel %vm391, %v1937, 0.0
    %1947 = vadd.xlane.f32.xlu0 %v1946
    %v1948 = vpop.xlane.xlu0 %1947
    %v1949 = vsel %vm391, %v1939, 0.0
    %1950 = vadd.xlane.f32.xlu0 %v1949
    %v1951 = vpop.xlane.xlu0 %1950
    %v1952 = vsel %vm322, %v1943, 0.0
    %1953 = vadd.xlane.f32.xlu0 %v1952
    %v1954 = vpop.xlane.xlu0 %1953
    %v1955 = vsel %vm322, %v1945, 0.0
    %1956 = vadd.xlane.f32.xlu0 %v1955
    %v1957 = vpop.xlane.xlu0 %1956
    %v1958 = vadd.f32 %v1948, %v1954
    %v1959 = vadd.f32 %v1951, %v1957
    %v1960 = vrcp.pop %v1958
    %v1961 = vrcp.pop %v1959
    %1962 = vrot.lane.b32.xlu0 %v286, 96
    %v1963 = vpop.permute.xlu0 %1962
    %v1966 = vsel %vm322, %v1943, 0
    %v1969 = vsel %vm322, %v1945, 0
    %1971 = vmatpush.msra.mxu0 0.0
    %1972 = vmatpush.msra.mxu0 0.0
    %1973 = vmatpush.msra.mxu0 0.0
    %1974 = vmatpush.msra.mxu0 0.0
    %1975 = vmatpush.msra.mxu0 0.0
    %1976 = vmatpush.msra.mxu0 0.0
    %1977 = vmatpush.msra.mxu0 0.0
    %1978 = vmatpush.msra.mxu0 0.0
    %1979 = vmatpush.msra.mxu0 0.0
    %1980 = vmatpush.msra.mxu0 0.0
    %1981 = vmatpush.msra.mxu0 0.0
    %1982 = vmatpush.msra.mxu0 0.0
    %1983 = vmatpush.msra.mxu0 0.0
    %1984 = vmatpush.msra.mxu0 0.0
    %1985 = vmatpush.msra.mxu0 0.0
    %1986 = vmatpush.msra.mxu0 %v1963
    %1987 = vmatmul.f32.gmra.mxu0 %v1966
    %v1988 = vpop.f32.mrf.mxu0
    %v1989 = vadd.f32 0.0, %v1988
    %1990 = vmatmul.f32.gmra.mxu0 %v1969
    %v1991 = vpop.f32.mrf.mxu0
    %v1992 = vadd.f32 0.0, %v1991
    %1993 = vdwg.mxu0
    %1994 = vrot.lane.b32.xlu0 %v219, 64
    %v1995 = vpop.permute.xlu0 %1994
    %1996 = vrot.lane.b32.xlu0 %v222, 64
    %v1997 = vpop.permute.xlu0 %1996
    %v2001 = vsel %vm391, %v1937, 0
    %v2004 = vsel %vm391, %v1939, 0
    %2006 = vmatpush.msra.mxu0 0.0
    %2007 = vmatpush.msra.mxu0 0.0
    %2008 = vmatpush.msra.mxu0 0.0
    %2009 = vmatpush.msra.mxu0 0.0
    %2010 = vmatpush.msra.mxu0 0.0
    %2011 = vmatpush.msra.mxu0 0.0
    %2012 = vmatpush.msra.mxu0 0.0
    %2013 = vmatpush.msra.mxu0 0.0
    %2014 = vmatpush.msra.mxu0 0.0
    %2015 = vmatpush.msra.mxu0 0.0
    %2016 = vmatpush.msra.mxu0 0.0
    %2017 = vmatpush.msra.mxu0 0.0
    %2018 = vmatpush.msra.mxu0 0.0
    %2019 = vmatpush.msra.mxu0 0.0
    %2020 = vmatpush.msra.mxu0 %v1997
    %2021 = vmatpush.msra.mxu0 %v1995
    %2022 = vmatmul.f32.gmra.mxu0 %v2001
    %v2023 = vpop.f32.mrf.mxu0
    %v2024 = vadd.f32 %v1989, %v2023
    %2025 = vmatmul.f32.gmra.mxu0 %v2004
    %v2026 = vpop.f32.mrf.mxu0
    %v2027 = vadd.f32 %v1992, %v2026
    %2028 = vdwg.mxu0
    %v2029 = vmul.f32 %v2024, %v1960
    %v2030 = vmul.f32 %v2027, %v1961
    %v2031 = vld [vmem:[#allocation11] sm:$0xff]
    %2032 = vrot.lane.b32.xlu0 %v219, 120
    %v2033 = vpop.permute.xlu0 %2032
    %2034 = vrot.lane.b32.xlu0 %v222, 120
    %v2035 = vpop.permute.xlu0 %2034
    %2036 = vrot.lane.b32.xlu0 %v219, 88
    %v2037 = vpop.permute.xlu0 %2036
    %2038 = vrot.lane.b32.xlu0 %v222, 88
    %v2039 = vpop.permute.xlu0 %2038
    %v2040 = vsel %vm322, %v2033, 0
    %v2042 = vsel %vm322, %v2035, 0
    %v2044 = vsel %vm322, %v2037, 0
    %v2046 = vsel %vm322, %v2039, 0
    %2048 = vmatpush.xpose.msra.mxu0 0.0
    %2049 = vmatpush.xpose.msra.mxu0 0.0
    %2050 = vmatpush.xpose.msra.mxu0 0.0
    %2051 = vmatpush.xpose.msra.mxu0 0.0
    %2052 = vmatpush.xpose.msra.mxu0 0.0
    %2053 = vmatpush.xpose.msra.mxu0 0.0
    %2054 = vmatpush.xpose.msra.mxu0 0.0
    %2055 = vmatpush.xpose.msra.mxu0 0.0
    %2056 = vmatpush.xpose.msra.mxu0 0.0
    %2057 = vmatpush.xpose.msra.mxu0 0.0
    %2058 = vmatpush.xpose.msra.mxu0 0.0
    %2059 = vmatpush.xpose.msra.mxu0 0.0
    %2060 = vmatpush.xpose.msra.mxu0 0.0
    %2061 = vmatpush.xpose.msra.mxu0 0.0
    %2062 = vmatpush.xpose.msra.mxu0 %v2046
    %2063 = vmatpush.xpose.msra.mxu0 %v2044
    %2064 = vmatmul.f32.gmra.mxu0 %v2040
    %v2065 = vpop.f32.mrf.mxu0
    %v2066 = vadd.f32 %v1844, %v2065
    %2067 = vmatmul.f32.gmra.mxu0 %v2042
    %v2068 = vpop.f32.mrf.mxu0
    %v2069 = vadd.f32 %v1844, %v2068
    %2070 = vdwg.mxu0
    %2071 = vrot.lane.b32.xlu0 %v219, 24
    %v2072 = vpop.permute.xlu0 %2071
    %2073 = vrot.lane.b32.xlu0 %v222, 24
    %v2074 = vpop.permute.xlu0 %2073
    %2075 = vrot.lane.b32.xlu0 %v286, 120
    %v2076 = vpop.permute.xlu0 %2075
    %v2077 = vsel %vm322, %v2072, 0
    %v2079 = vsel %vm322, %v2074, 0
    %v2081 = vsel %vm322, %v2076, 0
    %2083 = vmatpush.xpose.msra.mxu0 0.0
    %2084 = vmatpush.xpose.msra.mxu0 0.0
    %2085 = vmatpush.xpose.msra.mxu0 0.0
    %2086 = vmatpush.xpose.msra.mxu0 0.0
    %2087 = vmatpush.xpose.msra.mxu0 0.0
    %2088 = vmatpush.xpose.msra.mxu0 0.0
    %2089 = vmatpush.xpose.msra.mxu0 0.0
    %2090 = vmatpush.xpose.msra.mxu0 0.0
    %2091 = vmatpush.xpose.msra.mxu0 0.0
    %2092 = vmatpush.xpose.msra.mxu0 0.0
    %2093 = vmatpush.xpose.msra.mxu0 0.0
    %2094 = vmatpush.xpose.msra.mxu0 0.0
    %2095 = vmatpush.xpose.msra.mxu0 0.0
    %2096 = vmatpush.xpose.msra.mxu0 0.0
    %2097 = vmatpush.xpose.msra.mxu0 0.0
    %2098 = vmatpush.xpose.msra.mxu0 %v2081
    %2099 = vmatmul.f32.gmra.mxu0 %v2077
    %v2100 = vpop.f32.mrf.mxu0
    %v2101 = vadd.f32 %v1884, %v2100
    %2102 = vmatmul.f32.gmra.mxu0 %v2079
    %v2103 = vpop.f32.mrf.mxu0
    %v2104 = vadd.f32 %v1884, %v2103
    %2105 = vdwg.mxu0
    %v2106 = vsel %vm391, %v2066, -inf
    %2107 = vmax.xlane.f32.xlu0 %v2106
    %v2108 = vpop.xlane.xlu0 %2107
    %v2109 = vsel %vm391, %v2069, -inf
    %2110 = vmax.xlane.f32.xlu0 %v2109
    %v2111 = vpop.xlane.xlu0 %2110
    %v2112 = vsel %vm322, %v2101, -inf
    %2113 = vmax.xlane.f32.xlu0 %v2112
    %v2114 = vpop.xlane.xlu0 %2113
    %v2115 = vsel %vm322, %v2104, -inf
    %2116 = vmax.xlane.f32.xlu0 %v2115
    %v2117 = vpop.xlane.xlu0 %2116
    %v2118 = vmax.f32 %v2108, %v2114
    %v2119 = vmax.f32 %v2111, %v2117
    %v2120 = vsub.f32 %v2066, %v2118
    %v2121 = vsub.f32 %v2069, %v2119
    %v2122 = vmul.f32 %v2120, 1.442695
    %v2123 = vpow.pop %v2122
    %v2124 = vmul.f32 %v2121, 1.442695
    %v2125 = vpow.pop %v2124
    %v2126 = vsub.f32 %v2101, %v2118
    %v2127 = vsub.f32 %v2104, %v2119
    %v2128 = vmul.f32 %v2126, 1.442695
    %v2129 = vpow.pop %v2128
    %v2130 = vmul.f32 %v2127, 1.442695
    %v2131 = vpow.pop %v2130
    %v2132 = vsel %vm391, %v2123, 0.0
    %2133 = vadd.xlane.f32.xlu0 %v2132
    %v2134 = vpop.xlane.xlu0 %2133
    %v2135 = vsel %vm391, %v2125, 0.0
    %2136 = vadd.xlane.f32.xlu0 %v2135
    %v2137 = vpop.xlane.xlu0 %2136
    %v2138 = vsel %vm322, %v2129, 0.0
    %2139 = vadd.xlane.f32.xlu0 %v2138
    %v2140 = vpop.xlane.xlu0 %2139
    %v2141 = vsel %vm322, %v2131, 0.0
    %2142 = vadd.xlane.f32.xlu0 %v2141
    %v2143 = vpop.xlane.xlu0 %2142
    %v2144 = vadd.f32 %v2134, %v2140
    %v2145 = vadd.f32 %v2137, %v2143
    %v2146 = vrcp.pop %v2144
    %v2147 = vrcp.pop %v2145
    %2148 = vrot.lane.b32.xlu0 %v286, 88
    %v2149 = vpop.permute.xlu0 %2148
    %v2152 = vsel %vm322, %v2129, 0
    %v2155 = vsel %vm322, %v2131, 0
    %2157 = vmatpush.msra.mxu0 0.0
    %2158 = vmatpush.msra.mxu0 0.0
    %2159 = vmatpush.msra.mxu0 0.0
    %2160 = vmatpush.msra.mxu0 0.0
    %2161 = vmatpush.msra.mxu0 0.0
    %2162 = vmatpush.msra.mxu0 0.0
    %2163 = vmatpush.msra.mxu0 0.0
    %2164 = vmatpush.msra.mxu0 0.0
    %2165 = vmatpush.msra.mxu0 0.0
    %2166 = vmatpush.msra.mxu0 0.0
    %2167 = vmatpush.msra.mxu0 0.0
    %2168 = vmatpush.msra.mxu0 0.0
    %2169 = vmatpush.msra.mxu0 0.0
    %2170 = vmatpush.msra.mxu0 0.0
    %2171 = vmatpush.msra.mxu0 0.0
    %2172 = vmatpush.msra.mxu0 %v2149
    %2173 = vmatmul.f32.gmra.mxu0 %v2152
    %v2174 = vpop.f32.mrf.mxu0
    %v2175 = vadd.f32 0.0, %v2174
    %2176 = vmatmul.f32.gmra.mxu0 %v2155
    %v2177 = vpop.f32.mrf.mxu0
    %v2178 = vadd.f32 0.0, %v2177
    %2179 = vdwg.mxu0
    %2180 = vrot.lane.b32.xlu0 %v219, 56
    %v2181 = vpop.permute.xlu0 %2180
    %2182 = vrot.lane.b32.xlu0 %v222, 56
    %v2183 = vpop.permute.xlu0 %2182
    %v2187 = vsel %vm391, %v2123, 0
    %v2190 = vsel %vm391, %v2125, 0
    %2192 = vmatpush.msra.mxu0 0.0
    %2193 = vmatpush.msra.mxu0 0.0
    %2194 = vmatpush.msra.mxu0 0.0
    %2195 = vmatpush.msra.mxu0 0.0
    %2196 = vmatpush.msra.mxu0 0.0
    %2197 = vmatpush.msra.mxu0 0.0
    %2198 = vmatpush.msra.mxu0 0.0
    %2199 = vmatpush.msra.mxu0 0.0
    %2200 = vmatpush.msra.mxu0 0.0
    %2201 = vmatpush.msra.mxu0 0.0
    %2202 = vmatpush.msra.mxu0 0.0
    %2203 = vmatpush.msra.mxu0 0.0
    %2204 = vmatpush.msra.mxu0 0.0
    %2205 = vmatpush.msra.mxu0 0.0
    %2206 = vmatpush.msra.mxu0 %v2183
    %2207 = vmatpush.msra.mxu0 %v2181
    %2208 = vmatmul.f32.gmra.mxu0 %v2187
    %v2209 = vpop.f32.mrf.mxu0
    %v2210 = vadd.f32 %v2175, %v2209
    %2211 = vmatmul.f32.gmra.mxu0 %v2190
    %v2212 = vpop.f32.mrf.mxu0
    %v2213 = vadd.f32 %v2178, %v2212
    %2214 = vdwg.mxu0
    %v2215 = vmul.f32 %v2210, %v2146
    %v2216 = vmul.f32 %v2213, %v2147
    %v2217 = vld [vmem:[#allocation11 + $0x8] sm:$0xff]
    %v2219 = vsel %vm322, %v2215, 0
    %v2222 = vsel %vm322, %v2216, 0
    %2224 = vmatpush.msra.mxu0 0.0
    %2225 = vmatpush.msra.mxu0 0.0
    %2226 = vmatpush.msra.mxu0 0.0
    %2227 = vmatpush.msra.mxu0 0.0
    %2228 = vmatpush.msra.mxu0 0.0
    %2229 = vmatpush.msra.mxu0 0.0
    %2230 = vmatpush.msra.mxu0 0.0
    %2231 = vmatpush.msra.mxu0 0.0
    %2232 = vmatpush.msra.mxu0 0.0
    %2233 = vmatpush.msra.mxu0 0.0
    %2234 = vmatpush.msra.mxu0 0.0
    %2235 = vmatpush.msra.mxu0 0.0
    %2236 = vmatpush.msra.mxu0 0.0
    %2237 = vmatpush.msra.mxu0 0.0
    %2238 = vmatpush.msra.mxu0 0.0
    %2239 = vmatpush.msra.mxu0 %v2217
    %2240 = vmatmul.f32.gmra.mxu0 %v2219
    %v2241 = vpop.f32.mrf.mxu0
    %v2242 = vadd.f32 0.0, %v2241
    %2243 = vmatmul.f32.gmra.mxu0 %v2222
    %v2244 = vpop.f32.mrf.mxu0
    %v2245 = vadd.f32 0.0, %v2244
    %2246 = vdwg.mxu0
    %v2248 = vsel %vm322, %v2029, 0
    %v2251 = vsel %vm322, %v2030, 0
    %2253 = vmatpush.msra.mxu0 0.0
    %2254 = vmatpush.msra.mxu0 0.0
    %2255 = vmatpush.msra.mxu0 0.0
    %2256 = vmatpush.msra.mxu0 0.0
    %2257 = vmatpush.msra.mxu0 0.0
    %2258 = vmatpush.msra.mxu0 0.0
    %2259 = vmatpush.msra.mxu0 0.0
    %2260 = vmatpush.msra.mxu0 0.0
    %2261 = vmatpush.msra.mxu0 0.0
    %2262 = vmatpush.msra.mxu0 0.0
    %2263 = vmatpush.msra.mxu0 0.0
    %2264 = vmatpush.msra.mxu0 0.0
    %2265 = vmatpush.msra.mxu0 0.0
    %2266 = vmatpush.msra.mxu0 0.0
    %2267 = vmatpush.msra.mxu0 0.0
    %2268 = vmatpush.msra.mxu0 %v2031
    %2269 = vmatmul.f32.gmra.mxu0 %v2248
    %v2270 = vpop.f32.mrf.mxu0
    %v2271 = vadd.f32 %v2242, %v2270
    %2272 = vmatmul.f32.gmra.mxu0 %v2251
    %v2273 = vpop.f32.mrf.mxu0
    %v2274 = vadd.f32 %v2245, %v2273
    %2275 = vdwg.mxu0
    %2276 = vrot.lane.b32.xlu0 %v219, 112
    %v2277 = vpop.permute.xlu0 %2276
    %2278 = vrot.lane.b32.xlu0 %v222, 112
    %v2279 = vpop.permute.xlu0 %2278
    %2280 = vrot.lane.b32.xlu0 %v219, 80
    %v2281 = vpop.permute.xlu0 %2280
    %2282 = vrot.lane.b32.xlu0 %v222, 80
    %v2283 = vpop.permute.xlu0 %2282
    %v2284 = vsel %vm322, %v2277, 0
    %v2286 = vsel %vm322, %v2279, 0
    %v2288 = vsel %vm322, %v2281, 0
    %v2290 = vsel %vm322, %v2283, 0
    %2292 = vmatpush.xpose.msra.mxu0 0.0
    %2293 = vmatpush.xpose.msra.mxu0 0.0
    %2294 = vmatpush.xpose.msra.mxu0 0.0
    %2295 = vmatpush.xpose.msra.mxu0 0.0
    %2296 = vmatpush.xpose.msra.mxu0 0.0
    %2297 = vmatpush.xpose.msra.mxu0 0.0
    %2298 = vmatpush.xpose.msra.mxu0 0.0
    %2299 = vmatpush.xpose.msra.mxu0 0.0
    %2300 = vmatpush.xpose.msra.mxu0 0.0
    %2301 = vmatpush.xpose.msra.mxu0 0.0
    %2302 = vmatpush.xpose.msra.mxu0 0.0
    %2303 = vmatpush.xpose.msra.mxu0 0.0
    %2304 = vmatpush.xpose.msra.mxu0 0.0
    %2305 = vmatpush.xpose.msra.mxu0 0.0
    %2306 = vmatpush.xpose.msra.mxu0 %v2290
    %2307 = vmatpush.xpose.msra.mxu0 %v2288
    %2308 = vmatmul.f32.gmra.mxu0 %v2284
    %v2309 = vpop.f32.mrf.mxu0
    %v2310 = vadd.f32 %v1844, %v2309
    %2311 = vmatmul.f32.gmra.mxu0 %v2286
    %v2312 = vpop.f32.mrf.mxu0
    %v2313 = vadd.f32 %v1844, %v2312
    %2314 = vdwg.mxu0
    %2315 = vrot.lane.b32.xlu0 %v219, 16
    %v2316 = vpop.permute.xlu0 %2315
    %2317 = vrot.lane.b32.xlu0 %v222, 16
    %v2318 = vpop.permute.xlu0 %2317
    %2319 = vrot.lane.b32.xlu0 %v286, 112
    %v2320 = vpop.permute.xlu0 %2319
    %v2321 = vsel %vm322, %v2316, 0
    %v2323 = vsel %vm322, %v2318, 0
    %v2325 = vsel %vm322, %v2320, 0
    %2327 = vmatpush.xpose.msra.mxu0 0.0
    %2328 = vmatpush.xpose.msra.mxu0 0.0
    %2329 = vmatpush.xpose.msra.mxu0 0.0
    %2330 = vmatpush.xpose.msra.mxu0 0.0
    %2331 = vmatpush.xpose.msra.mxu0 0.0
    %2332 = vmatpush.xpose.msra.mxu0 0.0
    %2333 = vmatpush.xpose.msra.mxu0 0.0
    %2334 = vmatpush.xpose.msra.mxu0 0.0
    %2335 = vmatpush.xpose.msra.mxu0 0.0
    %2336 = vmatpush.xpose.msra.mxu0 0.0
    %2337 = vmatpush.xpose.msra.mxu0 0.0
    %2338 = vmatpush.xpose.msra.mxu0 0.0
    %2339 = vmatpush.xpose.msra.mxu0 0.0
    %2340 = vmatpush.xpose.msra.mxu0 0.0
    %2341 = vmatpush.xpose.msra.mxu0 0.0
    %2342 = vmatpush.xpose.msra.mxu0 %v2325
    %2343 = vmatmul.f32.gmra.mxu0 %v2321
    %v2344 = vpop.f32.mrf.mxu0
    %v2345 = vadd.f32 %v1884, %v2344
    %2346 = vmatmul.f32.gmra.mxu0 %v2323
    %v2347 = vpop.f32.mrf.mxu0
    %v2348 = vadd.f32 %v1884, %v2347
    %2349 = vdwg.mxu0
    %v2350 = vsel %vm391, %v2310, -inf
    %2351 = vmax.xlane.f32.xlu0 %v2350
    %v2352 = vpop.xlane.xlu0 %2351
    %v2353 = vsel %vm391, %v2313, -inf
    %2354 = vmax.xlane.f32.xlu0 %v2353
    %v2355 = vpop.xlane.xlu0 %2354
    %v2356 = vsel %vm322, %v2345, -inf
    %2357 = vmax.xlane.f32.xlu0 %v2356
    %v2358 = vpop.xlane.xlu0 %2357
    %v2359 = vsel %vm322, %v2348, -inf
    %2360 = vmax.xlane.f32.xlu0 %v2359
    %v2361 = vpop.xlane.xlu0 %2360
    %v2362 = vmax.f32 %v2352, %v2358
    %v2363 = vmax.f32 %v2355, %v2361
    %v2364 = vsub.f32 %v2310, %v2362
    %v2365 = vsub.f32 %v2313, %v2363
    %v2366 = vmul.f32 %v2364, 1.442695
    %v2367 = vpow.pop %v2366
    %v2368 = vmul.f32 %v2365, 1.442695
    %v2369 = vpow.pop %v2368
    %v2370 = vsub.f32 %v2345, %v2362
    %v2371 = vsub.f32 %v2348, %v2363
    %v2372 = vmul.f32 %v2370, 1.442695
    %v2373 = vpow.pop %v2372
    %v2374 = vmul.f32 %v2371, 1.442695
    %v2375 = vpow.pop %v2374
    %v2376 = vsel %vm391, %v2367, 0.0
    %2377 = vadd.xlane.f32.xlu0 %v2376
    %v2378 = vpop.xlane.xlu0 %2377
    %v2379 = vsel %vm391, %v2369, 0.0
    %2380 = vadd.xlane.f32.xlu0 %v2379
    %v2381 = vpop.xlane.xlu0 %2380
    %v2382 = vsel %vm322, %v2373, 0.0
    %2383 = vadd.xlane.f32.xlu0 %v2382
    %v2384 = vpop.xlane.xlu0 %2383
    %v2385 = vsel %vm322, %v2375, 0.0
    %2386 = vadd.xlane.f32.xlu0 %v2385
    %v2387 = vpop.xlane.xlu0 %2386
    %v2388 = vadd.f32 %v2378, %v2384
    %v2389 = vadd.f32 %v2381, %v2387
    %v2390 = vrcp.pop %v2388
    %v2391 = vrcp.pop %v2389
    %2392 = vrot.lane.b32.xlu0 %v286, 80
    %v2393 = vpop.permute.xlu0 %2392
    %v2396 = vsel %vm322, %v2373, 0
    %v2399 = vsel %vm322, %v2375, 0
    %2401 = vmatpush.msra.mxu0 0.0
    %2402 = vmatpush.msra.mxu0 0.0
    %2403 = vmatpush.msra.mxu0 0.0
    %2404 = vmatpush.msra.mxu0 0.0
    %2405 = vmatpush.msra.mxu0 0.0
    %2406 = vmatpush.msra.mxu0 0.0
    %2407 = vmatpush.msra.mxu0 0.0
    %2408 = vmatpush.msra.mxu0 0.0
    %2409 = vmatpush.msra.mxu0 0.0
    %2410 = vmatpush.msra.mxu0 0.0
    %2411 = vmatpush.msra.mxu0 0.0
    %2412 = vmatpush.msra.mxu0 0.0
    %2413 = vmatpush.msra.mxu0 0.0
    %2414 = vmatpush.msra.mxu0 0.0
    %2415 = vmatpush.msra.mxu0 0.0
    %2416 = vmatpush.msra.mxu0 %v2393
    %2417 = vmatmul.f32.gmra.mxu0 %v2396
    %v2418 = vpop.f32.mrf.mxu0
    %v2419 = vadd.f32 0.0, %v2418
    %2420 = vmatmul.f32.gmra.mxu0 %v2399
    %v2421 = vpop.f32.mrf.mxu0
    %v2422 = vadd.f32 0.0, %v2421
    %2423 = vdwg.mxu0
    %2424 = vrot.lane.b32.xlu0 %v219, 48
    %v2425 = vpop.permute.xlu0 %2424
    %2426 = vrot.lane.b32.xlu0 %v222, 48
    %v2427 = vpop.permute.xlu0 %2426
    %v2431 = vsel %vm391, %v2367, 0
    %v2434 = vsel %vm391, %v2369, 0
    %2436 = vmatpush.msra.mxu0 0.0
    %2437 = vmatpush.msra.mxu0 0.0
    %2438 = vmatpush.msra.mxu0 0.0
    %2439 = vmatpush.msra.mxu0 0.0
    %2440 = vmatpush.msra.mxu0 0.0
    %2441 = vmatpush.msra.mxu0 0.0
    %2442 = vmatpush.msra.mxu0 0.0
    %2443 = vmatpush.msra.mxu0 0.0
    %2444 = vmatpush.msra.mxu0 0.0
    %2445 = vmatpush.msra.mxu0 0.0
    %2446 = vmatpush.msra.mxu0 0.0
    %2447 = vmatpush.msra.mxu0 0.0
    %2448 = vmatpush.msra.mxu0 0.0
    %2449 = vmatpush.msra.mxu0 0.0
    %2450 = vmatpush.msra.mxu0 %v2427
    %2451 = vmatpush.msra.mxu0 %v2425
    %2452 = vmatmul.f32.gmra.mxu0 %v2431
    %v2453 = vpop.f32.mrf.mxu0
    %v2454 = vadd.f32 %v2419, %v2453
    %2455 = vmatmul.f32.gmra.mxu0 %v2434
    %v2456 = vpop.f32.mrf.mxu0
    %v2457 = vadd.f32 %v2422, %v2456
    %2458 = vdwg.mxu0
    %v2459 = vmul.f32 %v2454, %v2390
    %v2460 = vmul.f32 %v2457, %v2391
    %v2461 = vld [vmem:[#allocation11 + $0x10] sm:$0xff]
    %v2463 = vsel %vm322, %v2459, 0
    %v2466 = vsel %vm322, %v2460, 0
    %2468 = vmatpush.msra.mxu0 0.0
    %2469 = vmatpush.msra.mxu0 0.0
    %2470 = vmatpush.msra.mxu0 0.0
    %2471 = vmatpush.msra.mxu0 0.0
    %2472 = vmatpush.msra.mxu0 0.0
    %2473 = vmatpush.msra.mxu0 0.0
    %2474 = vmatpush.msra.mxu0 0.0
    %2475 = vmatpush.msra.mxu0 0.0
    %2476 = vmatpush.msra.mxu0 0.0
    %2477 = vmatpush.msra.mxu0 0.0
    %2478 = vmatpush.msra.mxu0 0.0
    %2479 = vmatpush.msra.mxu0 0.0
    %2480 = vmatpush.msra.mxu0 0.0
    %2481 = vmatpush.msra.mxu0 0.0
    %2482 = vmatpush.msra.mxu0 0.0
    %2483 = vmatpush.msra.mxu0 %v2461
    %2484 = vmatmul.f32.gmra.mxu0 %v2463
    %v2485 = vpop.f32.mrf.mxu0
    %v2486 = vadd.f32 0.0, %v2485
    %2487 = vmatmul.f32.gmra.mxu0 %v2466
    %v2488 = vpop.f32.mrf.mxu0
    %v2489 = vadd.f32 0.0, %v2488
    %2490 = vdwg.mxu0
    %v2491 = vadd.f32 %v2271, %v2486
    %v2492 = vadd.f32 %v2274, %v2489
    %2493 = vrot.lane.b32.xlu0 %v219, 104
    %v2494 = vpop.permute.xlu0 %2493
    %2495 = vrot.lane.b32.xlu0 %v222, 104
    %v2496 = vpop.permute.xlu0 %2495
    %2497 = vrot.lane.b32.xlu0 %v219, 72
    %v2498 = vpop.permute.xlu0 %2497
    %2499 = vrot.lane.b32.xlu0 %v222, 72
    %v2500 = vpop.permute.xlu0 %2499
    %v2501 = vsel %vm322, %v2494, 0
    %v2503 = vsel %vm322, %v2496, 0
    %v2505 = vsel %vm322, %v2498, 0
    %v2507 = vsel %vm322, %v2500, 0
    %2509 = vmatpush.xpose.msra.mxu0 0.0
    %2510 = vmatpush.xpose.msra.mxu0 0.0
    %2511 = vmatpush.xpose.msra.mxu0 0.0
    %2512 = vmatpush.xpose.msra.mxu0 0.0
    %2513 = vmatpush.xpose.msra.mxu0 0.0
    %2514 = vmatpush.xpose.msra.mxu0 0.0
    %2515 = vmatpush.xpose.msra.mxu0 0.0
    %2516 = vmatpush.xpose.msra.mxu0 0.0
    %2517 = vmatpush.xpose.msra.mxu0 0.0
    %2518 = vmatpush.xpose.msra.mxu0 0.0
    %2519 = vmatpush.xpose.msra.mxu0 0.0
    %2520 = vmatpush.xpose.msra.mxu0 0.0
    %2521 = vmatpush.xpose.msra.mxu0 0.0
    %2522 = vmatpush.xpose.msra.mxu0 0.0
    %2523 = vmatpush.xpose.msra.mxu0 %v2507
    %2524 = vmatpush.xpose.msra.mxu0 %v2505
    %2525 = vmatmul.f32.gmra.mxu0 %v2501
    %v2526 = vpop.f32.mrf.mxu0
    %v2527 = vadd.f32 %v1844, %v2526
    %2528 = vmatmul.f32.gmra.mxu0 %v2503
    %v2529 = vpop.f32.mrf.mxu0
    %v2530 = vadd.f32 %v1844, %v2529
    %2531 = vdwg.mxu0
    %2532 = vrot.lane.b32.xlu0 %v219, 8
    %v2533 = vpop.permute.xlu0 %2532
    %2534 = vrot.lane.b32.xlu0 %v222, 8
    %v2535 = vpop.permute.xlu0 %2534
    %2536 = vrot.lane.b32.xlu0 %v286, 104
    %v2537 = vpop.permute.xlu0 %2536
    %v2538 = vsel %vm322, %v2533, 0
    %v2540 = vsel %vm322, %v2535, 0
    %v2542 = vsel %vm322, %v2537, 0
    %2544 = vmatpush.xpose.msra.mxu0 0.0
    %2545 = vmatpush.xpose.msra.mxu0 0.0
    %2546 = vmatpush.xpose.msra.mxu0 0.0
    %2547 = vmatpush.xpose.msra.mxu0 0.0
    %2548 = vmatpush.xpose.msra.mxu0 0.0
    %2549 = vmatpush.xpose.msra.mxu0 0.0
    %2550 = vmatpush.xpose.msra.mxu0 0.0
    %2551 = vmatpush.xpose.msra.mxu0 0.0
    %2552 = vmatpush.xpose.msra.mxu0 0.0
    %2553 = vmatpush.xpose.msra.mxu0 0.0
    %2554 = vmatpush.xpose.msra.mxu0 0.0
    %2555 = vmatpush.xpose.msra.mxu0 0.0
    %2556 = vmatpush.xpose.msra.mxu0 0.0
    %2557 = vmatpush.xpose.msra.mxu0 0.0
    %2558 = vmatpush.xpose.msra.mxu0 0.0
    %2559 = vmatpush.xpose.msra.mxu0 %v2542
    %2560 = vmatmul.f32.gmra.mxu0 %v2538
    %v2561 = vpop.f32.mrf.mxu0
    %v2562 = vadd.f32 %v1884, %v2561
    %2563 = vmatmul.f32.gmra.mxu0 %v2540
    %v2564 = vpop.f32.mrf.mxu0
    %v2565 = vadd.f32 %v1884, %v2564
    %2566 = vdwg.mxu0
    %v2567 = vsel %vm391, %v2527, -inf
    %2568 = vmax.xlane.f32.xlu0 %v2567
    %v2569 = vpop.xlane.xlu0 %2568
    %v2570 = vsel %vm391, %v2530, -inf
    %2571 = vmax.xlane.f32.xlu0 %v2570
    %v2572 = vpop.xlane.xlu0 %2571
    %v2573 = vsel %vm322, %v2562, -inf
    %2574 = vmax.xlane.f32.xlu0 %v2573
    %v2575 = vpop.xlane.xlu0 %2574
    %v2576 = vsel %vm322, %v2565, -inf
    %2577 = vmax.xlane.f32.xlu0 %v2576
    %v2578 = vpop.xlane.xlu0 %2577
    %v2579 = vmax.f32 %v2569, %v2575
    %v2580 = vmax.f32 %v2572, %v2578
    %v2581 = vsub.f32 %v2527, %v2579
    %v2582 = vsub.f32 %v2530, %v2580
    %v2583 = vmul.f32 %v2581, 1.442695
    %v2584 = vpow.pop %v2583
    %v2585 = vmul.f32 %v2582, 1.442695
    %v2586 = vpow.pop %v2585
    %v2587 = vsub.f32 %v2562, %v2579
    %v2588 = vsub.f32 %v2565, %v2580
    %v2589 = vmul.f32 %v2587, 1.442695
    %v2590 = vpow.pop %v2589
    %v2591 = vmul.f32 %v2588, 1.442695
    %v2592 = vpow.pop %v2591
    %v2593 = vsel %vm391, %v2584, 0.0
    %2594 = vadd.xlane.f32.xlu0 %v2593
    %v2595 = vpop.xlane.xlu0 %2594
    %v2596 = vsel %vm391, %v2586, 0.0
    %2597 = vadd.xlane.f32.xlu0 %v2596
    %v2598 = vpop.xlane.xlu0 %2597
    %v2599 = vsel %vm322, %v2590, 0.0
    %2600 = vadd.xlane.f32.xlu0 %v2599
    %v2601 = vpop.xlane.xlu0 %2600
    %v2602 = vsel %vm322, %v2592, 0.0
    %2603 = vadd.xlane.f32.xlu0 %v2602
    %v2604 = vpop.xlane.xlu0 %2603
    %v2605 = vadd.f32 %v2595, %v2601
    %v2606 = vadd.f32 %v2598, %v2604
    %v2607 = vrcp.pop %v2605
    %v2608 = vrcp.pop %v2606
    %2609 = vrot.lane.b32.xlu0 %v286, 72
    %v2610 = vpop.permute.xlu0 %2609
    %v2613 = vsel %vm322, %v2590, 0
    %v2616 = vsel %vm322, %v2592, 0
    %2618 = vmatpush.msra.mxu0 0.0
    %2619 = vmatpush.msra.mxu0 0.0
    %2620 = vmatpush.msra.mxu0 0.0
    %2621 = vmatpush.msra.mxu0 0.0
    %2622 = vmatpush.msra.mxu0 0.0
    %2623 = vmatpush.msra.mxu0 0.0
    %2624 = vmatpush.msra.mxu0 0.0
    %2625 = vmatpush.msra.mxu0 0.0
    %2626 = vmatpush.msra.mxu0 0.0
    %2627 = vmatpush.msra.mxu0 0.0
    %2628 = vmatpush.msra.mxu0 0.0
    %2629 = vmatpush.msra.mxu0 0.0
    %2630 = vmatpush.msra.mxu0 0.0
    %2631 = vmatpush.msra.mxu0 0.0
    %2632 = vmatpush.msra.mxu0 0.0
    %2633 = vmatpush.msra.mxu0 %v2610
    %2634 = vmatmul.f32.gmra.mxu0 %v2613
    %v2635 = vpop.f32.mrf.mxu0
    %v2636 = vadd.f32 0.0, %v2635
    %2637 = vmatmul.f32.gmra.mxu0 %v2616
    %v2638 = vpop.f32.mrf.mxu0
    %v2639 = vadd.f32 0.0, %v2638
    %2640 = vdwg.mxu0
    %2641 = vrot.lane.b32.xlu0 %v219, 40
    %v2642 = vpop.permute.xlu0 %2641
    %2643 = vrot.lane.b32.xlu0 %v222, 40
    %v2644 = vpop.permute.xlu0 %2643
    %v2648 = vsel %vm391, %v2584, 0
    %v2651 = vsel %vm391, %v2586, 0
    %2653 = vmatpush.msra.mxu0 0.0
    %2654 = vmatpush.msra.mxu0 0.0
    %2655 = vmatpush.msra.mxu0 0.0
    %2656 = vmatpush.msra.mxu0 0.0
    %2657 = vmatpush.msra.mxu0 0.0
    %2658 = vmatpush.msra.mxu0 0.0
    %2659 = vmatpush.msra.mxu0 0.0
    %2660 = vmatpush.msra.mxu0 0.0
    %2661 = vmatpush.msra.mxu0 0.0
    %2662 = vmatpush.msra.mxu0 0.0
    %2663 = vmatpush.msra.mxu0 0.0
    %2664 = vmatpush.msra.mxu0 0.0
    %2665 = vmatpush.msra.mxu0 0.0
    %2666 = vmatpush.msra.mxu0 0.0
    %2667 = vmatpush.msra.mxu0 %v2644
    %2668 = vmatpush.msra.mxu0 %v2642
    %2669 = vmatmul.f32.gmra.mxu0 %v2648
    %v2670 = vpop.f32.mrf.mxu0
    %v2671 = vadd.f32 %v2636, %v2670
    %2672 = vmatmul.f32.gmra.mxu0 %v2651
    %v2673 = vpop.f32.mrf.mxu0
    %v2674 = vadd.f32 %v2639, %v2673
    %2675 = vdwg.mxu0
    %v2676 = vmul.f32 %v2671, %v2607
    %v2677 = vmul.f32 %v2674, %v2608
    %v2678 = vld [vmem:[#allocation11 + $0x18] sm:$0xff]
    %v2680 = vsel %vm322, %v2676, 0
    %v2683 = vsel %vm322, %v2677, 0
    %2685 = vmatpush.msra.mxu0 0.0
    %2686 = vmatpush.msra.mxu0 0.0
    %2687 = vmatpush.msra.mxu0 0.0
    %2688 = vmatpush.msra.mxu0 0.0
    %2689 = vmatpush.msra.mxu0 0.0
    %2690 = vmatpush.msra.mxu0 0.0
    %2691 = vmatpush.msra.mxu0 0.0
    %2692 = vmatpush.msra.mxu0 0.0
    %2693 = vmatpush.msra.mxu0 0.0
    %2694 = vmatpush.msra.mxu0 0.0
    %2695 = vmatpush.msra.mxu0 0.0
    %2696 = vmatpush.msra.mxu0 0.0
    %2697 = vmatpush.msra.mxu0 0.0
    %2698 = vmatpush.msra.mxu0 0.0
    %2699 = vmatpush.msra.mxu0 0.0
    %2700 = vmatpush.msra.mxu0 %v2678
    %2701 = vmatmul.f32.gmra.mxu0 %v2680
    %v2702 = vpop.f32.mrf.mxu0
    %v2703 = vadd.f32 0.0, %v2702
    %2704 = vmatmul.f32.gmra.mxu0 %v2683
    %v2705 = vpop.f32.mrf.mxu0
    %v2706 = vadd.f32 0.0, %v2705
    %2707 = vdwg.mxu0
    %v2708 = vadd.f32 %v2491, %v2703
    %v2709 = vadd.f32 %v2492, %v2706
    %v2710 = vld [vmem:[%s9] sm:$0x1]
    %v2712 = vperm.slane %v2710, 0
    %v2714 = vadd.f32 %v2708, %v2712
    %v2715 = vadd.f32 %v2709, %v2712
    %2716 = vrot.lane.b32.xlu0 %v286, 64
    %v2717 = vpop.permute.xlu0 %2716
    %v2718 = vsel %vm322, %v2717, 0
    %v2721 = vsel %vm322, %v248, 0
    %v2724 = vsel %vm322, %v251, 0
    %2726 = vmatpush.xpose.msra.mxu0 0.0
    %2727 = vmatpush.xpose.msra.mxu0 0.0
    %2728 = vmatpush.xpose.msra.mxu0 0.0
    %2729 = vmatpush.xpose.msra.mxu0 0.0
    %2730 = vmatpush.xpose.msra.mxu0 0.0
    %2731 = vmatpush.xpose.msra.mxu0 0.0
    %2732 = vmatpush.xpose.msra.mxu0 0.0
    %2733 = vmatpush.xpose.msra.mxu0 0.0
    %2734 = vmatpush.xpose.msra.mxu0 0.0
    %2735 = vmatpush.xpose.msra.mxu0 0.0
    %2736 = vmatpush.xpose.msra.mxu0 0.0
    %2737 = vmatpush.xpose.msra.mxu0 0.0
    %2738 = vmatpush.xpose.msra.mxu0 0.0
    %2739 = vmatpush.xpose.msra.mxu0 0.0
    %2740 = vmatpush.xpose.msra.mxu0 %v2724
    %2741 = vmatpush.xpose.msra.mxu0 %v2721
    %2742 = vmatmul.f32.gmra.mxu0 %v2718
    %v2743 = vpop.f32.mrf.mxu0
    %v2744 = vadd.f32 %v1844, %v2743
    %2745 = vdwg.mxu0
    %2746 = vrot.lane.b32.xlu0 %v286, 32
    %v2747 = vpop.permute.xlu0 %2746
    %v2748 = vsel %vm322, %v2747, 0
    %v2751 = vsel %vm322, %v309, 0
    %2753 = vmatpush.xpose.msra.mxu0 0.0
    %2754 = vmatpush.xpose.msra.mxu0 0.0
    %2755 = vmatpush.xpose.msra.mxu0 0.0
    %2756 = vmatpush.xpose.msra.mxu0 0.0
    %2757 = vmatpush.xpose.msra.mxu0 0.0
    %2758 = vmatpush.xpose.msra.mxu0 0.0
    %2759 = vmatpush.xpose.msra.mxu0 0.0
    %2760 = vmatpush.xpose.msra.mxu0 0.0
    %2761 = vmatpush.xpose.msra.mxu0 0.0
    %2762 = vmatpush.xpose.msra.mxu0 0.0
    %2763 = vmatpush.xpose.msra.mxu0 0.0
    %2764 = vmatpush.xpose.msra.mxu0 0.0
    %2765 = vmatpush.xpose.msra.mxu0 0.0
    %2766 = vmatpush.xpose.msra.mxu0 0.0
    %2767 = vmatpush.xpose.msra.mxu0 0.0
    %2768 = vmatpush.xpose.msra.mxu0 %v2751
    %2769 = vmatmul.f32.gmra.mxu0 %v2748
    %v2770 = vpop.f32.mrf.mxu0
    %v2771 = vadd.f32 %v1884, %v2770
    %2772 = vdwg.mxu0
    %v2773 = vsel %vm391, %v2744, -inf
    %2774 = vmax.xlane.f32.xlu0 %v2773
    %v2775 = vpop.xlane.xlu0 %2774
    %v2776 = vsel %vm322, %v2771, -inf
    %2777 = vmax.xlane.f32.xlu0 %v2776
    %v2778 = vpop.xlane.xlu0 %2777
    %v2779 = vmax.f32 %v2775, %v2778
    %v2780 = vsub.f32 %v2744, %v2779
    %v2781 = vmul.f32 %v2780, 1.442695
    %v2782 = vpow.pop %v2781
    %v2783 = vsub.f32 %v2771, %v2779
    %v2784 = vmul.f32 %v2783, 1.442695
    %v2785 = vpow.pop %v2784
    %v2786 = vsel %vm391, %v2782, 0.0
    %2787 = vadd.xlane.f32.xlu0 %v2786
    %v2788 = vpop.xlane.xlu0 %2787
    %v2789 = vsel %vm322, %v2785, 0.0
    %2790 = vadd.xlane.f32.xlu0 %v2789
    %v2791 = vpop.xlane.xlu0 %2790
    %v2792 = vadd.f32 %v2788, %v2791
    %v2793 = vrcp.pop %v2792
    %2794 = vrot.lane.b32.xlu0 %v309, 96
    %v2795 = vpop.permute.xlu0 %2794
    %v2798 = vsel %vm322, %v2785, 0
    %2800 = vmatpush.msra.mxu0 0.0
    %2801 = vmatpush.msra.mxu0 0.0
    %2802 = vmatpush.msra.mxu0 0.0
    %2803 = vmatpush.msra.mxu0 0.0
    %2804 = vmatpush.msra.mxu0 0.0
    %2805 = vmatpush.msra.mxu0 0.0
    %2806 = vmatpush.msra.mxu0 0.0
    %2807 = vmatpush.msra.mxu0 0.0
    %2808 = vmatpush.msra.mxu0 0.0
    %2809 = vmatpush.msra.mxu0 0.0
    %2810 = vmatpush.msra.mxu0 0.0
    %2811 = vmatpush.msra.mxu0 0.0
    %2812 = vmatpush.msra.mxu0 0.0
    %2813 = vmatpush.msra.mxu0 0.0
    %2814 = vmatpush.msra.mxu0 0.0
    %2815 = vmatpush.msra.mxu0 %v2795
    %2816 = vmatmul.f32.gmra.mxu0 %v2798
    %v2817 = vpop.f32.mrf.mxu0
    %v2818 = vadd.f32 0.0, %v2817
    %2819 = vdwg.mxu0
    %2820 = vrot.lane.b32.xlu0 %v248, 96
    %v2821 = vpop.permute.xlu0 %2820
    %2822 = vrot.lane.b32.xlu0 %v251, 96
    %v2823 = vpop.permute.xlu0 %2822
    %v2827 = vsel %vm391, %v2782, 0
    %2829 = vmatpush.msra.mxu0 0.0
    %2830 = vmatpush.msra.mxu0 0.0
    %2831 = vmatpush.msra.mxu0 0.0
    %2832 = vmatpush.msra.mxu0 0.0
    %2833 = vmatpush.msra.mxu0 0.0
    %2834 = vmatpush.msra.mxu0 0.0
    %2835 = vmatpush.msra.mxu0 0.0
    %2836 = vmatpush.msra.mxu0 0.0
    %2837 = vmatpush.msra.mxu0 0.0
    %2838 = vmatpush.msra.mxu0 0.0
    %2839 = vmatpush.msra.mxu0 0.0
    %2840 = vmatpush.msra.mxu0 0.0
    %2841 = vmatpush.msra.mxu0 0.0
    %2842 = vmatpush.msra.mxu0 0.0
    %2843 = vmatpush.msra.mxu0 %v2823
    %2844 = vmatpush.msra.mxu0 %v2821
    %2845 = vmatmul.f32.gmra.mxu0 %v2827
    %v2846 = vpop.f32.mrf.mxu0
    %v2847 = vadd.f32 %v2818, %v2846
    %2848 = vdwg.mxu0
    %v2849 = vmul.f32 %v2847, %v2793
    %v2850 = vld [vmem:[#allocation13] sm:$0xff]
    %2851 = vrot.lane.b32.xlu0 %v286, 56
    %v2852 = vpop.permute.xlu0 %2851
    %2853 = vrot.lane.b32.xlu0 %v248, 120
    %v2854 = vpop.permute.xlu0 %2853
    %2855 = vrot.lane.b32.xlu0 %v251, 120
    %v2856 = vpop.permute.xlu0 %2855
    %v2857 = vsel %vm322, %v2852, 0
    %v2859 = vsel %vm322, %v2854, 0
    %v2861 = vsel %vm322, %v2856, 0
    %2863 = vmatpush.xpose.msra.mxu0 0.0
    %2864 = vmatpush.xpose.msra.mxu0 0.0
    %2865 = vmatpush.xpose.msra.mxu0 0.0
    %2866 = vmatpush.xpose.msra.mxu0 0.0
    %2867 = vmatpush.xpose.msra.mxu0 0.0
    %2868 = vmatpush.xpose.msra.mxu0 0.0
    %2869 = vmatpush.xpose.msra.mxu0 0.0
    %2870 = vmatpush.xpose.msra.mxu0 0.0
    %2871 = vmatpush.xpose.msra.mxu0 0.0
    %2872 = vmatpush.xpose.msra.mxu0 0.0
    %2873 = vmatpush.xpose.msra.mxu0 0.0
    %2874 = vmatpush.xpose.msra.mxu0 0.0
    %2875 = vmatpush.xpose.msra.mxu0 0.0
    %2876 = vmatpush.xpose.msra.mxu0 0.0
    %2877 = vmatpush.xpose.msra.mxu0 %v2861
    %2878 = vmatpush.xpose.msra.mxu0 %v2859
    %2879 = vmatmul.f32.gmra.mxu0 %v2857
    %v2880 = vpop.f32.mrf.mxu0
    %v2881 = vadd.f32 %v1844, %v2880
    %2882 = vdwg.mxu0
    %2883 = vrot.lane.b32.xlu0 %v286, 24
    %v2884 = vpop.permute.xlu0 %2883
    %2885 = vrot.lane.b32.xlu0 %v309, 120
    %v2886 = vpop.permute.xlu0 %2885
    %v2887 = vsel %vm322, %v2884, 0
    %v2889 = vsel %vm322, %v2886, 0
    %2891 = vmatpush.xpose.msra.mxu0 0.0
    %2892 = vmatpush.xpose.msra.mxu0 0.0
    %2893 = vmatpush.xpose.msra.mxu0 0.0
    %2894 = vmatpush.xpose.msra.mxu0 0.0
    %2895 = vmatpush.xpose.msra.mxu0 0.0
    %2896 = vmatpush.xpose.msra.mxu0 0.0
    %2897 = vmatpush.xpose.msra.mxu0 0.0
    %2898 = vmatpush.xpose.msra.mxu0 0.0
    %2899 = vmatpush.xpose.msra.mxu0 0.0
    %2900 = vmatpush.xpose.msra.mxu0 0.0
    %2901 = vmatpush.xpose.msra.mxu0 0.0
    %2902 = vmatpush.xpose.msra.mxu0 0.0
    %2903 = vmatpush.xpose.msra.mxu0 0.0
    %2904 = vmatpush.xpose.msra.mxu0 0.0
    %2905 = vmatpush.xpose.msra.mxu0 0.0
    %2906 = vmatpush.xpose.msra.mxu0 %v2889
    %2907 = vmatmul.f32.gmra.mxu0 %v2887
    %v2908 = vpop.f32.mrf.mxu0
    %v2909 = vadd.f32 %v1884, %v2908
    %2910 = vdwg.mxu0
    %v2911 = vsel %vm391, %v2881, -inf
    %2912 = vmax.xlane.f32.xlu0 %v2911
    %v2913 = vpop.xlane.xlu0 %2912
    %v2914 = vsel %vm322, %v2909, -inf
    %2915 = vmax.xlane.f32.xlu0 %v2914
    %v2916 = vpop.xlane.xlu0 %2915
    %v2917 = vmax.f32 %v2913, %v2916
    %v2918 = vsub.f32 %v2881, %v2917
    %v2919 = vmul.f32 %v2918, 1.442695
    %v2920 = vpow.pop %v2919
    %v2921 = vsub.f32 %v2909, %v2917
    %v2922 = vmul.f32 %v2921, 1.442695
    %v2923 = vpow.pop %v2922
    %v2924 = vsel %vm391, %v2920, 0.0
    %2925 = vadd.xlane.f32.xlu0 %v2924
    %v2926 = vpop.xlane.xlu0 %2925
    %v2927 = vsel %vm322, %v2923, 0.0
    %2928 = vadd.xlane.f32.xlu0 %v2927
    %v2929 = vpop.xlane.xlu0 %2928
    %v2930 = vadd.f32 %v2926, %v2929
    %v2931 = vrcp.pop %v2930
    %2932 = vrot.lane.b32.xlu0 %v309, 88
    %v2933 = vpop.permute.xlu0 %2932
    %v2936 = vsel %vm322, %v2923, 0
    %2938 = vmatpush.msra.mxu0 0.0
    %2939 = vmatpush.msra.mxu0 0.0
    %2940 = vmatpush.msra.mxu0 0.0
    %2941 = vmatpush.msra.mxu0 0.0
    %2942 = vmatpush.msra.mxu0 0.0
    %2943 = vmatpush.msra.mxu0 0.0
    %2944 = vmatpush.msra.mxu0 0.0
    %2945 = vmatpush.msra.mxu0 0.0
    %2946 = vmatpush.msra.mxu0 0.0
    %2947 = vmatpush.msra.mxu0 0.0
    %2948 = vmatpush.msra.mxu0 0.0
    %2949 = vmatpush.msra.mxu0 0.0
    %2950 = vmatpush.msra.mxu0 0.0
    %2951 = vmatpush.msra.mxu0 0.0
    %2952 = vmatpush.msra.mxu0 0.0
    %2953 = vmatpush.msra.mxu0 %v2933
    %2954 = vmatmul.f32.gmra.mxu0 %v2936
    %v2955 = vpop.f32.mrf.mxu0
    %v2956 = vadd.f32 0.0, %v2955
    %2957 = vdwg.mxu0
    %2958 = vrot.lane.b32.xlu0 %v248, 88
    %v2959 = vpop.permute.xlu0 %2958
    %2960 = vrot.lane.b32.xlu0 %v251, 88
    %v2961 = vpop.permute.xlu0 %2960
    %v2965 = vsel %vm391, %v2920, 0
    %2967 = vmatpush.msra.mxu0 0.0
    %2968 = vmatpush.msra.mxu0 0.0
    %2969 = vmatpush.msra.mxu0 0.0
    %2970 = vmatpush.msra.mxu0 0.0
    %2971 = vmatpush.msra.mxu0 0.0
    %2972 = vmatpush.msra.mxu0 0.0
    %2973 = vmatpush.msra.mxu0 0.0
    %2974 = vmatpush.msra.mxu0 0.0
    %2975 = vmatpush.msra.mxu0 0.0
    %2976 = vmatpush.msra.mxu0 0.0
    %2977 = vmatpush.msra.mxu0 0.0
    %2978 = vmatpush.msra.mxu0 0.0
    %2979 = vmatpush.msra.mxu0 0.0
    %2980 = vmatpush.msra.mxu0 0.0
    %2981 = vmatpush.msra.mxu0 %v2961
    %2982 = vmatpush.msra.mxu0 %v2959
    %2983 = vmatmul.f32.gmra.mxu0 %v2965
    %v2984 = vpop.f32.mrf.mxu0
    %v2985 = vadd.f32 %v2956, %v2984
    %2986 = vdwg.mxu0
    %v2987 = vmul.f32 %v2985, %v2931
    %v2988 = vld [vmem:[#allocation13 + $0x8] sm:$0xff]
    %v2990 = vsel %vm322, %v2987, 0
    %2992 = vmatpush.msra.mxu0 0.0
    %2993 = vmatpush.msra.mxu0 0.0
    %2994 = vmatpush.msra.mxu0 0.0
    %2995 = vmatpush.msra.mxu0 0.0
    %2996 = vmatpush.msra.mxu0 0.0
    %2997 = vmatpush.msra.mxu0 0.0
    %2998 = vmatpush.msra.mxu0 0.0
    %2999 = vmatpush.msra.mxu0 0.0
    %3000 = vmatpush.msra.mxu0 0.0
    %3001 = vmatpush.msra.mxu0 0.0
    %3002 = vmatpush.msra.mxu0 0.0
    %3003 = vmatpush.msra.mxu0 0.0
    %3004 = vmatpush.msra.mxu0 0.0
    %3005 = vmatpush.msra.mxu0 0.0
    %3006 = vmatpush.msra.mxu0 0.0
    %3007 = vmatpush.msra.mxu0 %v2988
    %3008 = vmatmul.f32.gmra.mxu0 %v2990
    %v3009 = vpop.f32.mrf.mxu0
    %v3010 = vadd.f32 0.0, %v3009
    %3011 = vdwg.mxu0
    %v3013 = vsel %vm322, %v2849, 0
    %3015 = vmatpush.msra.mxu0 0.0
    %3016 = vmatpush.msra.mxu0 0.0
    %3017 = vmatpush.msra.mxu0 0.0
    %3018 = vmatpush.msra.mxu0 0.0
    %3019 = vmatpush.msra.mxu0 0.0
    %3020 = vmatpush.msra.mxu0 0.0
    %3021 = vmatpush.msra.mxu0 0.0
    %3022 = vmatpush.msra.mxu0 0.0
    %3023 = vmatpush.msra.mxu0 0.0
    %3024 = vmatpush.msra.mxu0 0.0
    %3025 = vmatpush.msra.mxu0 0.0
    %3026 = vmatpush.msra.mxu0 0.0
    %3027 = vmatpush.msra.mxu0 0.0
    %3028 = vmatpush.msra.mxu0 0.0
    %3029 = vmatpush.msra.mxu0 0.0
    %3030 = vmatpush.msra.mxu0 %v2850
    %3031 = vmatmul.f32.gmra.mxu0 %v3013
    %v3032 = vpop.f32.mrf.mxu0
    %v3033 = vadd.f32 %v3010, %v3032
    %3034 = vdwg.mxu0
    %3035 = vrot.lane.b32.xlu0 %v286, 48
    %v3036 = vpop.permute.xlu0 %3035
    %3037 = vrot.lane.b32.xlu0 %v248, 112
    %v3038 = vpop.permute.xlu0 %3037
    %3039 = vrot.lane.b32.xlu0 %v251, 112
    %v3040 = vpop.permute.xlu0 %3039
    %v3041 = vsel %vm322, %v3036, 0
    %v3043 = vsel %vm322, %v3038, 0
    %v3045 = vsel %vm322, %v3040, 0
    %3047 = vmatpush.xpose.msra.mxu0 0.0
    %3048 = vmatpush.xpose.msra.mxu0 0.0
    %3049 = vmatpush.xpose.msra.mxu0 0.0
    %3050 = vmatpush.xpose.msra.mxu0 0.0
    %3051 = vmatpush.xpose.msra.mxu0 0.0
    %3052 = vmatpush.xpose.msra.mxu0 0.0
    %3053 = vmatpush.xpose.msra.mxu0 0.0
    %3054 = vmatpush.xpose.msra.mxu0 0.0
    %3055 = vmatpush.xpose.msra.mxu0 0.0
    %3056 = vmatpush.xpose.msra.mxu0 0.0
    %3057 = vmatpush.xpose.msra.mxu0 0.0
    %3058 = vmatpush.xpose.msra.mxu0 0.0
    %3059 = vmatpush.xpose.msra.mxu0 0.0
    %3060 = vmatpush.xpose.msra.mxu0 0.0
    %3061 = vmatpush.xpose.msra.mxu0 %v3045
    %3062 = vmatpush.xpose.msra.mxu0 %v3043
    %3063 = vmatmul.f32.gmra.mxu0 %v3041
    %v3064 = vpop.f32.mrf.mxu0
    %v3065 = vadd.f32 %v1844, %v3064
    %3066 = vdwg.mxu0
    %3067 = vrot.lane.b32.xlu0 %v286, 16
    %v3068 = vpop.permute.xlu0 %3067
    %3069 = vrot.lane.b32.xlu0 %v309, 112
    %v3070 = vpop.permute.xlu0 %3069
    %v3071 = vsel %vm322, %v3068, 0
    %v3073 = vsel %vm322, %v3070, 0
    %3075 = vmatpush.xpose.msra.mxu0 0.0
    %3076 = vmatpush.xpose.msra.mxu0 0.0
    %3077 = vmatpush.xpose.msra.mxu0 0.0
    %3078 = vmatpush.xpose.msra.mxu0 0.0
    %3079 = vmatpush.xpose.msra.mxu0 0.0
    %3080 = vmatpush.xpose.msra.mxu0 0.0
    %3081 = vmatpush.xpose.msra.mxu0 0.0
    %3082 = vmatpush.xpose.msra.mxu0 0.0
    %3083 = vmatpush.xpose.msra.mxu0 0.0
    %3084 = vmatpush.xpose.msra.mxu0 0.0
    %3085 = vmatpush.xpose.msra.mxu0 0.0
    %3086 = vmatpush.xpose.msra.mxu0 0.0
    %3087 = vmatpush.xpose.msra.mxu0 0.0
    %3088 = vmatpush.xpose.msra.mxu0 0.0
    %3089 = vmatpush.xpose.msra.mxu0 0.0
    %3090 = vmatpush.xpose.msra.mxu0 %v3073
    %3091 = vmatmul.f32.gmra.mxu0 %v3071
    %v3092 = vpop.f32.mrf.mxu0
    %v3093 = vadd.f32 %v1884, %v3092
    %3094 = vdwg.mxu0
    %v3095 = vsel %vm391, %v3065, -inf
    %3096 = vmax.xlane.f32.xlu0 %v3095
    %v3097 = vpop.xlane.xlu0 %3096
    %v3098 = vsel %vm322, %v3093, -inf
    %3099 = vmax.xlane.f32.xlu0 %v3098
    %v3100 = vpop.xlane.xlu0 %3099
    %v3101 = vmax.f32 %v3097, %v3100
    %v3102 = vsub.f32 %v3065, %v3101
    %v3103 = vmul.f32 %v3102, 1.442695
    %v3104 = vpow.pop %v3103
    %v3105 = vsub.f32 %v3093, %v3101
    %v3106 = vmul.f32 %v3105, 1.442695
    %v3107 = vpow.pop %v3106
    %v3108 = vsel %vm391, %v3104, 0.0
    %3109 = vadd.xlane.f32.xlu0 %v3108
    %v3110 = vpop.xlane.xlu0 %3109
    %v3111 = vsel %vm322, %v3107, 0.0
    %3112 = vadd.xlane.f32.xlu0 %v3111
    %v3113 = vpop.xlane.xlu0 %3112
    %v3114 = vadd.f32 %v3110, %v3113
    %v3115 = vrcp.pop %v3114
    %3116 = vrot.lane.b32.xlu0 %v309, 80
    %v3117 = vpop.permute.xlu0 %3116
    %v3120 = vsel %vm322, %v3107, 0
    %3122 = vmatpush.msra.mxu0 0.0
    %3123 = vmatpush.msra.mxu0 0.0
    %3124 = vmatpush.msra.mxu0 0.0
    %3125 = vmatpush.msra.mxu0 0.0
    %3126 = vmatpush.msra.mxu0 0.0
    %3127 = vmatpush.msra.mxu0 0.0
    %3128 = vmatpush.msra.mxu0 0.0
    %3129 = vmatpush.msra.mxu0 0.0
    %3130 = vmatpush.msra.mxu0 0.0
    %3131 = vmatpush.msra.mxu0 0.0
    %3132 = vmatpush.msra.mxu0 0.0
    %3133 = vmatpush.msra.mxu0 0.0
    %3134 = vmatpush.msra.mxu0 0.0
    %3135 = vmatpush.msra.mxu0 0.0
    %3136 = vmatpush.msra.mxu0 0.0
    %3137 = vmatpush.msra.mxu0 %v3117
    %3138 = vmatmul.f32.gmra.mxu0 %v3120
    %v3139 = vpop.f32.mrf.mxu0
    %v3140 = vadd.f32 0.0, %v3139
    %3141 = vdwg.mxu0
    %3142 = vrot.lane.b32.xlu0 %v248, 80
    %v3143 = vpop.permute.xlu0 %3142
    %3144 = vrot.lane.b32.xlu0 %v251, 80
    %v3145 = vpop.permute.xlu0 %3144
    %v3149 = vsel %vm391, %v3104, 0
    %3151 = vmatpush.msra.mxu0 0.0
    %3152 = vmatpush.msra.mxu0 0.0
    %3153 = vmatpush.msra.mxu0 0.0
    %3154 = vmatpush.msra.mxu0 0.0
    %3155 = vmatpush.msra.mxu0 0.0
    %3156 = vmatpush.msra.mxu0 0.0
    %3157 = vmatpush.msra.mxu0 0.0
    %3158 = vmatpush.msra.mxu0 0.0
    %3159 = vmatpush.msra.mxu0 0.0
    %3160 = vmatpush.msra.mxu0 0.0
    %3161 = vmatpush.msra.mxu0 0.0
    %3162 = vmatpush.msra.mxu0 0.0
    %3163 = vmatpush.msra.mxu0 0.0
    %3164 = vmatpush.msra.mxu0 0.0
    %3165 = vmatpush.msra.mxu0 %v3145
    %3166 = vmatpush.msra.mxu0 %v3143
    %3167 = vmatmul.f32.gmra.mxu0 %v3149
    %v3168 = vpop.f32.mrf.mxu0
    %v3169 = vadd.f32 %v3140, %v3168
    %3170 = vdwg.mxu0
    %v3171 = vmul.f32 %v3169, %v3115
    %v3172 = vld [vmem:[#allocation13 + $0x10] sm:$0xff]
    %v3174 = vsel %vm322, %v3171, 0
    %3176 = vmatpush.msra.mxu0 0.0
    %3177 = vmatpush.msra.mxu0 0.0
    %3178 = vmatpush.msra.mxu0 0.0
    %3179 = vmatpush.msra.mxu0 0.0
    %3180 = vmatpush.msra.mxu0 0.0
    %3181 = vmatpush.msra.mxu0 0.0
    %3182 = vmatpush.msra.mxu0 0.0
    %3183 = vmatpush.msra.mxu0 0.0
    %3184 = vmatpush.msra.mxu0 0.0
    %3185 = vmatpush.msra.mxu0 0.0
    %3186 = vmatpush.msra.mxu0 0.0
    %3187 = vmatpush.msra.mxu0 0.0
    %3188 = vmatpush.msra.mxu0 0.0
    %3189 = vmatpush.msra.mxu0 0.0
    %3190 = vmatpush.msra.mxu0 0.0
    %3191 = vmatpush.msra.mxu0 %v3172
    %3192 = vmatmul.f32.gmra.mxu0 %v3174
    %v3193 = vpop.f32.mrf.mxu0
    %v3194 = vadd.f32 0.0, %v3193
    %3195 = vdwg.mxu0
    %v3196 = vadd.f32 %v3033, %v3194
    %3197 = vrot.lane.b32.xlu0 %v286, 40
    %v3198 = vpop.permute.xlu0 %3197
    %3199 = vrot.lane.b32.xlu0 %v248, 104
    %v3200 = vpop.permute.xlu0 %3199
    %3201 = vrot.lane.b32.xlu0 %v251, 104
    %v3202 = vpop.permute.xlu0 %3201
    %v3203 = vsel %vm322, %v3198, 0
    %v3205 = vsel %vm322, %v3200, 0
    %v3207 = vsel %vm322, %v3202, 0
    %3209 = vmatpush.xpose.msra.mxu0 0.0
    %3210 = vmatpush.xpose.msra.mxu0 0.0
    %3211 = vmatpush.xpose.msra.mxu0 0.0
    %3212 = vmatpush.xpose.msra.mxu0 0.0
    %3213 = vmatpush.xpose.msra.mxu0 0.0
    %3214 = vmatpush.xpose.msra.mxu0 0.0
    %3215 = vmatpush.xpose.msra.mxu0 0.0
    %3216 = vmatpush.xpose.msra.mxu0 0.0
    %3217 = vmatpush.xpose.msra.mxu0 0.0
    %3218 = vmatpush.xpose.msra.mxu0 0.0
    %3219 = vmatpush.xpose.msra.mxu0 0.0
    %3220 = vmatpush.xpose.msra.mxu0 0.0
    %3221 = vmatpush.xpose.msra.mxu0 0.0
    %3222 = vmatpush.xpose.msra.mxu0 0.0
    %3223 = vmatpush.xpose.msra.mxu0 %v3207
    %3224 = vmatpush.xpose.msra.mxu0 %v3205
    %3225 = vmatmul.f32.gmra.mxu0 %v3203
    %v3226 = vpop.f32.mrf.mxu0
    %v3227 = vadd.f32 %v1844, %v3226
    %3228 = vdwg.mxu0
    %3229 = vrot.lane.b32.xlu0 %v286, 8
    %v3230 = vpop.permute.xlu0 %3229
    %3231 = vrot.lane.b32.xlu0 %v309, 104
    %v3232 = vpop.permute.xlu0 %3231
    %v3233 = vsel %vm322, %v3230, 0
    %v3235 = vsel %vm322, %v3232, 0
    %3237 = vmatpush.xpose.msra.mxu0 0.0
    %3238 = vmatpush.xpose.msra.mxu0 0.0
    %3239 = vmatpush.xpose.msra.mxu0 0.0
    %3240 = vmatpush.xpose.msra.mxu0 0.0
    %3241 = vmatpush.xpose.msra.mxu0 0.0
    %3242 = vmatpush.xpose.msra.mxu0 0.0
    %3243 = vmatpush.xpose.msra.mxu0 0.0
    %3244 = vmatpush.xpose.msra.mxu0 0.0
    %3245 = vmatpush.xpose.msra.mxu0 0.0
    %3246 = vmatpush.xpose.msra.mxu0 0.0
    %3247 = vmatpush.xpose.msra.mxu0 0.0
    %3248 = vmatpush.xpose.msra.mxu0 0.0
    %3249 = vmatpush.xpose.msra.mxu0 0.0
    %3250 = vmatpush.xpose.msra.mxu0 0.0
    %3251 = vmatpush.xpose.msra.mxu0 0.0
    %3252 = vmatpush.xpose.msra.mxu0 %v3235
    %3253 = vmatmul.f32.gmra.mxu0 %v3233
    %v3254 = vpop.f32.mrf.mxu0
    %v3255 = vadd.f32 %v1884, %v3254
    %3256 = vdwg.mxu0
    %v3257 = vsel %vm391, %v3227, -inf
    %3258 = vmax.xlane.f32.xlu0 %v3257
    %v3259 = vpop.xlane.xlu0 %3258
    %v3260 = vsel %vm322, %v3255, -inf
    %3261 = vmax.xlane.f32.xlu0 %v3260
    %v3262 = vpop.xlane.xlu0 %3261
    %v3263 = vmax.f32 %v3259, %v3262
    %v3264 = vsub.f32 %v3227, %v3263
    %v3265 = vmul.f32 %v3264, 1.442695
    %v3266 = vpow.pop %v3265
    %v3267 = vsub.f32 %v3255, %v3263
    %v3268 = vmul.f32 %v3267, 1.442695
    %v3269 = vpow.pop %v3268
    %v3270 = vsel %vm391, %v3266, 0.0
    %3271 = vadd.xlane.f32.xlu0 %v3270
    %v3272 = vpop.xlane.xlu0 %3271
    %v3273 = vsel %vm322, %v3269, 0.0
    %3274 = vadd.xlane.f32.xlu0 %v3273
    %v3275 = vpop.xlane.xlu0 %3274
    %v3276 = vadd.f32 %v3272, %v3275
    %v3277 = vrcp.pop %v3276
    %3278 = vrot.lane.b32.xlu0 %v309, 72
    %v3279 = vpop.permute.xlu0 %3278
    %v3282 = vsel %vm322, %v3269, 0
    %3284 = vmatpush.msra.mxu0 0.0
    %3285 = vmatpush.msra.mxu0 0.0
    %3286 = vmatpush.msra.mxu0 0.0
    %3287 = vmatpush.msra.mxu0 0.0
    %3288 = vmatpush.msra.mxu0 0.0
    %3289 = vmatpush.msra.mxu0 0.0
    %3290 = vmatpush.msra.mxu0 0.0
    %3291 = vmatpush.msra.mxu0 0.0
    %3292 = vmatpush.msra.mxu0 0.0
    %3293 = vmatpush.msra.mxu0 0.0
    %3294 = vmatpush.msra.mxu0 0.0
    %3295 = vmatpush.msra.mxu0 0.0
    %3296 = vmatpush.msra.mxu0 0.0
    %3297 = vmatpush.msra.mxu0 0.0
    %3298 = vmatpush.msra.mxu0 0.0
    %3299 = vmatpush.msra.mxu0 %v3279
    %3300 = vmatmul.f32.gmra.mxu0 %v3282
    %v3301 = vpop.f32.mrf.mxu0
    %v3302 = vadd.f32 0.0, %v3301
    %3303 = vdwg.mxu0
    %3304 = vrot.lane.b32.xlu0 %v248, 72
    %v3305 = vpop.permute.xlu0 %3304
    %3306 = vrot.lane.b32.xlu0 %v251, 72
    %v3307 = vpop.permute.xlu0 %3306
    %v3311 = vsel %vm391, %v3266, 0
    %3313 = vmatpush.msra.mxu0 0.0
    %3314 = vmatpush.msra.mxu0 0.0
    %3315 = vmatpush.msra.mxu0 0.0
    %3316 = vmatpush.msra.mxu0 0.0
    %3317 = vmatpush.msra.mxu0 0.0
    %3318 = vmatpush.msra.mxu0 0.0
    %3319 = vmatpush.msra.mxu0 0.0
    %3320 = vmatpush.msra.mxu0 0.0
    %3321 = vmatpush.msra.mxu0 0.0
    %3322 = vmatpush.msra.mxu0 0.0
    %3323 = vmatpush.msra.mxu0 0.0
    %3324 = vmatpush.msra.mxu0 0.0
    %3325 = vmatpush.msra.mxu0 0.0
    %3326 = vmatpush.msra.mxu0 0.0
    %3327 = vmatpush.msra.mxu0 %v3307
    %3328 = vmatpush.msra.mxu0 %v3305
    %3329 = vmatmul.f32.gmra.mxu0 %v3311
    %v3330 = vpop.f32.mrf.mxu0
    %v3331 = vadd.f32 %v3302, %v3330
    %3332 = vdwg.mxu0
    %v3333 = vmul.f32 %v3331, %v3277
    %v3334 = vld [vmem:[#allocation13 + $0x18] sm:$0xff]
    %v3336 = vsel %vm322, %v3333, 0
    %3338 = vmatpush.msra.mxu0 0.0
    %3339 = vmatpush.msra.mxu0 0.0
    %3340 = vmatpush.msra.mxu0 0.0
    %3341 = vmatpush.msra.mxu0 0.0
    %3342 = vmatpush.msra.mxu0 0.0
    %3343 = vmatpush.msra.mxu0 0.0
    %3344 = vmatpush.msra.mxu0 0.0
    %3345 = vmatpush.msra.mxu0 0.0
    %3346 = vmatpush.msra.mxu0 0.0
    %3347 = vmatpush.msra.mxu0 0.0
    %3348 = vmatpush.msra.mxu0 0.0
    %3349 = vmatpush.msra.mxu0 0.0
    %3350 = vmatpush.msra.mxu0 0.0
    %3351 = vmatpush.msra.mxu0 0.0
    %3352 = vmatpush.msra.mxu0 0.0
    %3353 = vmatpush.msra.mxu0 %v3334
    %3354 = vmatmul.f32.gmra.mxu0 %v3336
    %v3355 = vpop.f32.mrf.mxu0
    %v3356 = vadd.f32 0.0, %v3355
    %3357 = vdwg.mxu0
    %v3358 = vadd.f32 %v3196, %v3356
    %v3359 = vld [vmem:[%s11] sm:$0x1]
    %v3361 = vperm.slane %v3359, 0
    %v3363 = vadd.f32 %v3358, %v3361
    %3364 = vst.msk [vmem:[#allocation14 + $0x10] sm:$0xff] %vm182, %v2714
    %3365 = vst.msk [vmem:[#allocation14 + $0x18] sm:$0xff] %vm182, %v2715
    %3366 = vst.msk [vmem:[#allocation15 + $0x8] sm:$0xff] %vm182, %v3363
    // Predicated region
    $region78: #{tpu_custom_call.1} parent=1 // pred_check
      _
    $region79: #{tpu_custom_call.1} parent=1 // pred_check_branch
      %3368 = sbr.rel (0) target = $region81
    $region80: #{tpu_custom_call.1} parent=1 // pred_region
      %3370 = vsyncadd [#allocation4], 0
      %s3371 = sshll.u32 [#allocation14], 4
      %s3372 = int_to_ptr.vmem [resolvable:$true] %s3371
      %s3373 = sshll.u32 %s12, 4
      %s3374 = int_to_ptr.hbm [resolvable:$true] %s3373
      %3379 = dma.vmem_to_hbm [thread:$0]  %s3372, 512, %s3374, [#allocation4], 128, 128, 8
    $region81: #{tpu_custom_call.1} parent=1 // pred_fallthru
      _
    // Predicated region
    $region82: #{tpu_custom_call.1} parent=1 // pred_check
      _
    $region83: #{tpu_custom_call.1} parent=1 // pred_check_branch
      %3381 = sbr.rel (0) target = $region85
    $region84: #{tpu_custom_call.1} parent=1 // pred_region
      %3383 = vsyncadd [#allocation16], 0
      %s3384 = sshll.u32 [#allocation15], 4
      %s3385 = int_to_ptr.vmem [resolvable:$true] %s3384
      %s3386 = sshll.u32 %s13, 4
      %s3387 = int_to_ptr.hbm [resolvable:$true] %s3386
      %3392 = dma.vmem_to_hbm [thread:$0]  %s3385, 256, %s3387, [#allocation16], 128, 128, 8
    $region85: #{tpu_custom_call.1} parent=1 // pred_fallthru
      _
    // Predicated region
    $region86: #{tpu_custom_call.1} parent=1 // pred_check
      _
    $region87: #{tpu_custom_call.1} parent=1 // pred_check_branch
      %3394 = sbr.rel (0) target = $region89
    $region88: #{tpu_custom_call.1} parent=1 // pred_region
      %3396 = dma.done [#allocation4], 512
    $region89: #{tpu_custom_call.1} parent=1 // pred_fallthru
      _
    // Predicated region
    $region90: #{tpu_custom_call.1} parent=1 // pred_check
      _
    $region91: #{tpu_custom_call.1} parent=1 // pred_check_branch
      %3398 = sbr.rel (0) target = $region93
    $region92: #{tpu_custom_call.1} parent=1 // pred_region
      %3400 = dma.done [#allocation16], 256
    $region93: #{tpu_custom_call.1} parent=1 // pred_fallthru
      _
    %3401 = vsyncpa [#allocation3], 1
    %3402 = vsyncpa [#allocation6], 1
    %3403 = vsyncpa [#allocation9], 1
    %3404 = vsyncpa [#allocation12], 1
    %3405 = vsyncpa [#allocation4], 1
    %3406 = vsyncpa [#allocation16], 1

</llo_original>
